<compile_context>
chip_gen: v7x
topology: tpu7x:2x2x1
jax: 0.10.0
libtpu: 0.0.40
codegen_flags: <defaults>
</compile_context>

<pallas_src>
import functools

import jax
import jax.numpy as jnp
from jax import lax
from jax.experimental import pallas as pl
from jax.experimental.pallas import tpu as pltpu

# Small test shapes (real model uses BIGNET_DIM=1024); must be a multiple of
# 128 (lane width) and of 2*GROUP_SIZE.
BIGNET_DIM = 128
LORA_DIM = 32
GROUP_SIZE = 16
NUM_BLOCKS = 6          # Block, LN, Block, LN, Block, LN, Block, LN, Block, LN, Block
LN_EPS = 1e-5


# ---------------------------------------------------------------------------
# Fused Pallas kernel: one grid step == one QLoRA Block (+ trailing LayerNorm)
# for one row tile of the activation.
# ---------------------------------------------------------------------------
def qlora_bignet_kernel(x_ref, wq_ref, sc_ref, bias_ref, a_ref, bT_ref,
                        ln_g_ref, ln_b_ref, out_ref):
    """Grid = (row_tiles [parallel], NUM_BLOCKS [arbitrary]).

    Per-step ref shapes (C = BIGNET_DIM, H = C//2, G = C//GROUP_SIZE, R = 32):
      x_ref    (N, C)   f32   network input row tile (read only at block 0)
      wq_ref   (3, H, C) int8 packed 4-bit codes: high nibble = SIGNED code of
                               input row r + H, low nibble = offset-8 code of r
      sc_ref   (3, G, C) bf16 compact per-group scales (group g = rows 16g..)
      bias_ref (3, 1, C) f32
      a_ref    (3, C, R) bf16  lora_a.T (true rank, unpadded)
      bT_ref   (3, R, C) bf16  lora_b.T
      ln_g_ref (1, C)   f32   LayerNorm weight for this step (identity pad last)
      ln_b_ref (1, C)   f32   LayerNorm bias
      out_ref  (N, C)   f32   VMEM-resident activation carry / final output
    """
    b = pl.program_id(1)
    nblocks = pl.num_programs(1)

    half = wq_ref.shape[1]              # C // 2
    c_out = wq_ref.shape[2]             # C
    gh = sc_ref.shape[1] // 2           # groups per packed half

    # Block 0 of each row tile: load the network input into the carry buffer.
    @pl.when(b == 0)
    def _():
        out_ref[...] = x_ref[...]

    x = out_ref[...]                    # carried activation (f32)

    def linear(i, h):
        # --- unpack two 4-bit codes per byte (VPU) ---
        p = wq_ref[i].astype(jnp.int32)                  # (half, C), sign-extended
        hi = (p >> 4).astype(jnp.bfloat16)               # arithmetic shift -> signed code
        lo = ((p & 0xF) - 8).astype(jnp.bfloat16)        # offset-8 low nibble

        # --- expand the small (G/2, C) scale tiles; single 2-D bf16 multiply ---
        sc = sc_ref[i]                                   # (G, C) bf16
        sc_lo = jnp.broadcast_to(sc[:gh, None, :],
                                 (gh, GROUP_SIZE, c_out)).reshape(half, c_out)
        sc_hi = jnp.broadcast_to(sc[gh:, None, :],
                                 (gh, GROUP_SIZE, c_out)).reshape(half, c_out)
        w_lo = lo * sc_lo                                # bf16 dequant
        w_hi = hi * sc_hi

        # --- base path: split matmul over the packed halves (bf16 MXU, f32 acc) ---
        h_b = h.astype(jnp.bfloat16)
        base = (jnp.dot(h_b[:, :half], w_lo, preferred_element_type=jnp.float32)
                + jnp.dot(h_b[:, half:], w_hi, preferred_element_type=jnp.float32)
                + bias_ref[i])

        # --- LoRA path: bf16 inputs, f32 accumulation, true rank 32 ---
        mid = jnp.dot(h_b, a_ref[i], preferred_element_type=jnp.float32)
        lora = jnp.dot(mid.astype(jnp.bfloat16), bT_ref[i],
                       preferred_element_type=jnp.float32)

        h = base + lora
        # ReLU between the first two linears only.
        return jnp.where(i < 2, jnp.maximum(h, 0.0), h)

    # fori_loop bounds live ranges of the per-linear dequant temporaries.
    h = lax.fori_loop(0, 3, linear, x, unroll=True)
    h = h + x                                            # residual

    # Epilogue: LayerNorm between blocks (skipped after the last block).
    @pl.when(b < nblocks - 1)
    def _():
        mean = jnp.mean(h, axis=-1, keepdims=True)
        hc = h - mean
        var = jnp.mean(hc * hc, axis=-1, keepdims=True)
        inv = lax.rsqrt(var + LN_EPS)
        out_ref[...] = hc * inv * ln_g_ref[...] + ln_b_ref[...]

    @pl.when(b == nblocks - 1)
    def _():
        out_ref[...] = h


# ---------------------------------------------------------------------------
# pallas_call wrapper
# ---------------------------------------------------------------------------
def qlora_bignet_forward(x, params, row_tile=None):
    orig_dtype = x.dtype
    x32 = x.astype(jnp.float32)
    n, c = x32.shape
    half = c // 2
    g = c // GROUP_SIZE
    r = LORA_DIM

    if row_tile is None:
        row_tile = min(n, 256)
    assert n % row_tile == 0 and row_tile % 8 == 0, (n, row_tile)
    n_tiles = n // row_tile

    out = pl.pallas_call(
        qlora_bignet_kernel,
        out_shape=jax.ShapeDtypeStruct((n, c), jnp.float32),
        grid_spec=pltpu.PrefetchScalarGridSpec(
            num_scalar_prefetch=0,
            grid=(n_tiles, NUM_BLOCKS),
            in_specs=[
                # activation row tile: constant across the block axis
                pl.BlockSpec((row_tile, c), lambda rt, blk: (rt, 0)),
                # per-block stacked weights: streamed block-by-block
                pl.BlockSpec((None, 3, half, c), lambda rt, blk: (blk, 0, 0, 0)),
                pl.BlockSpec((None, 3, g, c), lambda rt, blk: (blk, 0, 0, 0)),
                pl.BlockSpec((None, 3, 1, c), lambda rt, blk: (blk, 0, 0, 0)),
                pl.BlockSpec((None, 3, c, r), lambda rt, blk: (blk, 0, 0, 0)),
                pl.BlockSpec((None, 3, r, c), lambda rt, blk: (blk, 0, 0, 0)),
                # per-block LayerNorm params (last entry is identity padding)
                pl.BlockSpec((None, 1, c), lambda rt, blk: (blk, 0, 0)),
                pl.BlockSpec((None, 1, c), lambda rt, blk: (blk, 0, 0)),
            ],
            # same output block across the block axis -> VMEM activation carry
            out_specs=pl.BlockSpec((row_tile, c), lambda rt, blk: (rt, 0)),
        ),
        compiler_params=pltpu.CompilerParams(
            # row tiles are independent (second TC on v7x); blocks are sequential
            dimension_semantics=("parallel", "arbitrary"),
            # above v5e/v6e default scoped limits, below v7x 64 MiB physical
            vmem_limit_bytes=48 * 1024 * 1024,
        ),
    )(x32, params["wq"], params["sc"], params["bias"], params["a"],
      params["bT"], params["ln_g"], params["ln_b"])
    return out.astype(orig_dtype)


# ---------------------------------------------------------------------------
# Parameter construction (deterministic, synthetic) + 4-bit quantization glue
# ---------------------------------------------------------------------------
def quantize_4bit(w, group_size):
    """Symmetric group-wise absmax 4-bit quantization along in_features.

    w: (out, in) f32.  Returns codes (out, in) int32 in [-7, 7] and COMPACT
    scales (out, in // group_size) f32.
    """
    out_f, in_f = w.shape
    wg = w.reshape(out_f, in_f // group_size, group_size)
    absmax = jnp.max(jnp.abs(wg), axis=-1, keepdims=True)
    scale = jnp.maximum(absmax, 1e-8) / 7.0
    codes = jnp.clip(jnp.round(wg / scale), -7.0, 7.0).astype(jnp.int32)
    return codes.reshape(out_f, in_f), scale[..., 0].astype(jnp.float32)


def make_qlora_linear_params(key, in_f, out_f, lora_dim, group_size):
    k_w, k_b, k_a = jax.random.split(key, 3)
    bound = 1.0 / float(in_f) ** 0.5
    w = jax.random.uniform(k_w, (out_f, in_f), jnp.float32, -bound, bound)
    bias = jax.random.uniform(k_b, (out_f,), jnp.float32, -bound, bound)
    lora_a = 0.001 * jax.random.normal(k_a, (lora_dim, in_f), jnp.float32)
    lora_b = jnp.zeros((out_f, lora_dim), jnp.float32)    # zero-init per spec

    codes, scales = quantize_4bit(w, group_size)
    codes_t = codes.T                      # (in, out) int32 in [-7, 7]
    scales_t = scales.T                    # (in//gs, out)

    half = in_f // 2
    assert half % group_size == 0, "groups must not straddle the packing split"
    # Pack: high nibble = SIGNED code of input row r+half (sign position ->
    # recovered by a single arithmetic >>4); low nibble = offset-8 code of row r.
    lo_u = (codes_t[:half] + 8).astype(jnp.int32)          # [1, 15]
    hi_s = codes_t[half:].astype(jnp.int32)                # [-7, 7]
    packed = (((hi_s & 0xF) << 4) | (lo_u & 0xF)).astype(jnp.uint8)
    packed = lax.bitcast_convert_type(packed, jnp.int8)    # store as i8

    # LoRA weights, pre-transposed, TRUE rank, bf16 storage.
    a_t = lora_a.T.astype(jnp.bfloat16)    # (in, r)
    b_t = lora_b.T.astype(jnp.bfloat16)    # (r, out)

    return (packed, scales_t.astype(jnp.bfloat16),
            bias.reshape(1, out_f), a_t, b_t)


def make_params(key):
    wq, sc, bias, a_t, b_t = [], [], [], [], []
    for _ in range(NUM_BLOCKS):
        lw, ls, lb, la, lbt = [], [], [], [], []
        for _ in range(3):
            key, sub = jax.random.split(key)
            p = make_qlora_linear_params(sub, BIGNET_DIM, BIGNET_DIM,
                                         LORA_DIM, GROUP_SIZE)
            lw.append(p[0]); ls.append(p[1]); lb.append(p[2])
            la.append(p[3]); lbt.append(p[4])
        wq.append(jnp.stack(lw)); sc.append(jnp.stack(ls)); bias.append(jnp.stack(lb))
        a_t.append(jnp.stack(la)); b_t.append(jnp.stack(lbt))
    return {
        "wq": jnp.stack(wq),       # (B, 3, C//2, C)   int8 (packed nibbles)
        "sc": jnp.stack(sc),       # (B, 3, C//GS, C)  bf16 compact scales
        "bias": jnp.stack(bias),   # (B, 3, 1, C)      f32
        "a": jnp.stack(a_t),       # (B, 3, C, 32)     bf16
        "bT": jnp.stack(b_t),      # (B, 3, 32, C)     bf16
        # 5 real LayerNorms + 1 identity pad (skipped via pl.when at step B-1)
        "ln_g": jnp.ones((NUM_BLOCKS, 1, BIGNET_DIM), jnp.float32),
        "ln_b": jnp.zeros((NUM_BLOCKS, 1, BIGNET_DIM), jnp.float32),
    }


# ---------------------------------------------------------------------------
# Plain-JAX reference (same quantized weights, same bf16 numerics)
# ---------------------------------------------------------------------------
def reference_forward(x, params):
    h = x.astype(jnp.float32)
    c = BIGNET_DIM
    half = c // 2
    gh = half // GROUP_SIZE
    for b in range(NUM_BLOCKS):
        x_in = h
        t = h
        for i in range(3):
            p = params["wq"][b, i].astype(jnp.int32)
            hi = (p >> 4).astype(jnp.bfloat16)
            lo = ((p & 0xF) - 8).astype(jnp.bfloat16)
            sc = params["sc"][b, i]
            w_lo = lo * jnp.repeat(sc[:gh], GROUP_SIZE, axis=0)
            w_hi = hi * jnp.repeat(sc[gh:], GROUP_SIZE, axis=0)
            tb = t.astype(jnp.bfloat16)
            base = (jnp.dot(tb[:, :half], w_lo, preferred_element_type=jnp.float32)
                    + jnp.dot(tb[:, half:], w_hi, preferred_element_type=jnp.float32)
                    + params["bias"][b, i])
            mid = jnp.dot(tb, params["a"][b, i], preferred_element_type=jnp.float32)
            lora = jnp.dot(mid.astype(jnp.bfloat16), params["bT"][b, i],
                           preferred_element_type=jnp.float32)
            t = base + lora
            if i < 2:
                t = jnp.maximum(t, 0.0)
        h = t + x_in
        if b < NUM_BLOCKS - 1:
            mean = jnp.mean(h, axis=-1, keepdims=True)
            hc = h - mean
            var = jnp.mean(hc * hc, axis=-1, keepdims=True)
            h = hc * lax.rsqrt(var + LN_EPS) * params["ln_g"][b] + params["ln_b"][b]
    return h.astype(x.dtype)


if __name__ == "__main__":
    key = jax.random.PRNGKey(0)
    key, pkey, xkey = jax.random.split(key, 3)

    params = make_params(pkey)
    # 128 rows: one full MXU row tile so dequant / weight DMA amortize over the
    # batch (per perf review; batch=8 left the MXU nearly idle).
    batch = 128
    x = jax.random.normal(xkey, (batch, BIGNET_DIM), jnp.float32)

    fwd = jax.jit(functools.partial(qlora_bignet_forward, params=params))
    out = fwd(x)
    jax.block_until_ready(out)

    ref = reference_forward(x, params)

    assert out.shape == (batch, BIGNET_DIM), out.shape
    assert out.dtype == x.dtype, out.dtype
    assert bool(jnp.all(jnp.isfinite(out))), "non-finite output"
    max_err = float(jnp.max(jnp.abs(out - ref)))
    assert max_err < 1e-2, f"mismatch vs reference: max abs err {max_err}"
    print("KERNEL_OK")
</pallas_src>

<mosaic_0001>
module attributes {stable_mosaic.version = 11 : i64} {
  func.func @qlora_bignet_kernel(%arg0: i32, %arg1: i32, %arg2: memref<128x128xf32, #tpu.memory_space<vmem>>, %arg3: memref<1x3x64x128xi8, #tpu.memory_space<vmem>>, %arg4: memref<1x3x8x128xbf16, #tpu.memory_space<vmem>>, %arg5: memref<1x3x1x128xf32, #tpu.memory_space<vmem>>, %arg6: memref<1x3x128x32xbf16, #tpu.memory_space<vmem>>, %arg7: memref<1x3x32x128xbf16, #tpu.memory_space<vmem>>, %arg8: memref<1x1x128xf32, #tpu.memory_space<vmem>>, %arg9: memref<1x1x128xf32, #tpu.memory_space<vmem>>, %arg10: memref<128x128xf32, #tpu.memory_space<vmem>>) attributes {dimension_semantics = [#tpu.dimension_semantics<parallel>, #tpu.dimension_semantics<arbitrary>], iteration_bounds = array<i64: 1, 6>, scalar_prefetch = 0 : i64, scratch_operands = 0 : i64, tpu.core_type = #tpu.core_type<tc>, window_params = [{transform_indices = @transform_0, window_bounds = array<i64: 128, 128>}, {transform_indices = @transform_1, window_bounds = array<i64: 1, 3, 64, 128>}, {transform_indices = @transform_2, window_bounds = array<i64: 1, 3, 8, 128>}, {transform_indices = @transform_3, window_bounds = array<i64: 1, 3, 1, 128>}, {transform_indices = @transform_4, window_bounds = array<i64: 1, 3, 128, 32>}, {transform_indices = @transform_5, window_bounds = array<i64: 1, 3, 32, 128>}, {transform_indices = @transform_6, window_bounds = array<i64: 1, 1, 128>}, {transform_indices = @transform_7, window_bounds = array<i64: 1, 1, 128>}, {transform_indices = @transform_8, window_bounds = array<i64: 128, 128>}]} {
    %c0_i32 = arith.constant 0 : i32
    %0 = arith.cmpi eq, %arg1, %c0_i32 : i32
    %1 = arith.extui %0 : i1 to i32
    %c0_i32_0 = arith.constant 0 : i32
    %2 = arith.cmpi ne, %1, %c0_i32_0 : i32
    scf.if %2 {
      %c0_74 = arith.constant 0 : index
      %c0_75 = arith.constant 0 : index
      %167 = vector.load %arg2[%c0_74, %c0_75] : memref<128x128xf32, #tpu.memory_space<vmem>>, vector<128x128xf32>
      %c0_76 = arith.constant 0 : index
      %c0_77 = arith.constant 0 : index
      %168 = vector.load %arg10[%c0_76, %c0_77] : memref<128x128xf32, #tpu.memory_space<vmem>>, vector<128x128xf32>
      tpu.vector_store %arg10[%c0_76, %c0_77], %167 {strides = array<i32>} : memref<128x128xf32, #tpu.memory_space<vmem>>, vector<128x128xf32>,
    } else {
    }
    %c0 = arith.constant 0 : index
    %c0_1 = arith.constant 0 : index
    %3 = vector.load %arg10[%c0, %c0_1] : memref<128x128xf32, #tpu.memory_space<vmem>>, vector<128x128xf32>
    %c0_i32_2 = arith.constant 0 : i32
    %c0_3 = arith.constant 0 : index
    %4 = arith.index_cast %c0_i32_2 : i32 to index
    %c0_4 = arith.constant 0 : index
    %c0_5 = arith.constant 0 : index
    %5 = vector.load %arg3[%c0_3, %4, %c0_4, %c0_5] : memref<1x3x64x128xi8, #tpu.memory_space<vmem>>, vector<1x1x64x128xi8>
    %6 = vector.shape_cast %5 : vector<1x1x64x128xi8> to vector<64x128xi8>
    %7 = arith.extsi %6 : vector<64x128xi8> to vector<64x128xi32>
    %c4_i32 = arith.constant 4 : i32
    %8 = vector.broadcast %c4_i32 : i32 to vector<64x128xi32>
    %9 = arith.shrsi %7, %8 : vector<64x128xi32>
    %10 = arith.sitofp %9 : vector<64x128xi32> to vector<64x128xbf16>
    %c15_i32 = arith.constant 15 : i32
    %11 = vector.broadcast %c15_i32 : i32 to vector<64x128xi32>
    %12 = arith.andi %7, %11 : vector<64x128xi32>
    %c8_i32 = arith.constant 8 : i32
    %13 = vector.broadcast %c8_i32 : i32 to vector<64x128xi32>
    %14 = arith.subi %12, %13 : vector<64x128xi32>
    %15 = arith.sitofp %14 : vector<64x128xi32> to vector<64x128xbf16>
    %c0_6 = arith.constant 0 : index
    %16 = arith.index_cast %c0_i32_2 : i32 to index
    %c0_7 = arith.constant 0 : index
    %c0_8 = arith.constant 0 : index
    %17 = vector.load %arg4[%c0_6, %16, %c0_7, %c0_8] : memref<1x3x8x128xbf16, #tpu.memory_space<vmem>>, vector<1x1x8x128xbf16>
    %18 = vector.shape_cast %17 : vector<1x1x8x128xbf16> to vector<8x128xbf16>
    %19 = vector.extract_strided_slice %18 {offsets = [0, 0], sizes = [4, 128], strides = [1, 1]} : vector<8x128xbf16> to vector<4x128xbf16>
    %20 = vector.shape_cast %19 : vector<4x128xbf16> to vector<4x1x128xbf16>
    %21 = vector.shape_cast %20 : vector<4x1x128xbf16> to vector<4x1x128xbf16>
    %22 = vector.broadcast %21 : vector<4x1x128xbf16> to vector<4x16x128xbf16>
    %23 = vector.shape_cast %22 : vector<4x16x128xbf16> to vector<64x128xbf16>
    %24 = vector.extract_strided_slice %18 {offsets = [4, 0], sizes = [4, 128], strides = [1, 1]} : vector<8x128xbf16> to vector<4x128xbf16>
    %25 = vector.shape_cast %24 : vector<4x128xbf16> to vector<4x1x128xbf16>
    %26 = vector.shape_cast %25 : vector<4x1x128xbf16> to vector<4x1x128xbf16>
    %27 = vector.broadcast %26 : vector<4x1x128xbf16> to vector<4x16x128xbf16>
    %28 = vector.shape_cast %27 : vector<4x16x128xbf16> to vector<64x128xbf16>
    %29 = arith.mulf %15, %23 : vector<64x128xbf16>
    %30 = arith.mulf %10, %28 : vector<64x128xbf16>
    %31 = arith.truncf %3 : vector<128x128xf32> to vector<128x128xbf16>
    %32 = vector.extract_strided_slice %31 {offsets = [0, 0], sizes = [128, 64], strides = [1, 1]} : vector<128x128xbf16> to vector<128x64xbf16>
    %cst = arith.constant dense<0.000000e+00> : vector<128x128xf32>
    %33 = tpu.matmul %32, %29, %cst {dimension_numbers = #tpu.dot_dimension_numbers<[1], [0], [0], [1], [0, 0, 1, 1], [], []>} : vector<128x64xbf16>, vector<64x128xbf16>, vector<128x128xf32> -> vector<128x128xf32>
    %34 = vector.extract_strided_slice %31 {offsets = [0, 64], sizes = [128, 64], strides = [1, 1]} : vector<128x128xbf16> to vector<128x64xbf16>
    %cst_9 = arith.constant dense<0.000000e+00> : vector<128x128xf32>
    %35 = tpu.matmul %34, %30, %cst_9 {dimension_numbers = #tpu.dot_dimension_numbers<[1], [0], [0], [1], [0, 0, 1, 1], [], []>} : vector<128x64xbf16>, vector<64x128xbf16>, vector<128x128xf32> -> vector<128x128xf32>
    %36 = arith.addf %33, %35 : vector<128x128xf32>
    %c0_10 = arith.constant 0 : index
    %37 = arith.index_cast %c0_i32_2 : i32 to index
    %c0_11 = arith.constant 0 : index
    %c0_12 = arith.constant 0 : index
    %38 = vector.load %arg5[%c0_10, %37, %c0_11, %c0_12] : memref<1x3x1x128xf32, #tpu.memory_space<vmem>>, vector<1x1x1x128xf32>
    %39 = vector.shape_cast %38 : vector<1x1x1x128xf32> to vector<1x128xf32>
    %40 = vector.broadcast %39 : vector<1x128xf32> to vector<128x128xf32>
    %41 = arith.addf %36, %40 : vector<128x128xf32>
    %c0_13 = arith.constant 0 : index
    %42 = arith.index_cast %c0_i32_2 : i32 to index
    %c0_14 = arith.constant 0 : index
    %c0_15 = arith.constant 0 : index
    %43 = vector.load %arg6[%c0_13, %42, %c0_14, %c0_15] : memref<1x3x128x32xbf16, #tpu.memory_space<vmem>>, vector<1x1x128x32xbf16>
    %44 = vector.shape_cast %43 : vector<1x1x128x32xbf16> to vector<128x32xbf16>
    %cst_16 = arith.constant dense<0.000000e+00> : vector<128x32xf32>
    %45 = tpu.matmul %31, %44, %cst_16 {dimension_numbers = #tpu.dot_dimension_numbers<[1], [0], [0], [1], [0, 0, 1, 1], [], []>} : vector<128x128xbf16>, vector<128x32xbf16>, vector<128x32xf32> -> vector<128x32xf32>
    %46 = arith.truncf %45 : vector<128x32xf32> to vector<128x32xbf16>
    %c0_17 = arith.constant 0 : index
    %47 = arith.index_cast %c0_i32_2 : i32 to index
    %c0_18 = arith.constant 0 : index
    %c0_19 = arith.constant 0 : index
    %48 = vector.load %arg7[%c0_17, %47, %c0_18, %c0_19] : memref<1x3x32x128xbf16, #tpu.memory_space<vmem>>, vector<1x1x32x128xbf16>
    %49 = vector.shape_cast %48 : vector<1x1x32x128xbf16> to vector<32x128xbf16>
    %cst_20 = arith.constant dense<0.000000e+00> : vector<128x128xf32>
    %50 = tpu.matmul %46, %49, %cst_20 {dimension_numbers = #tpu.dot_dimension_numbers<[1], [0], [0], [1], [0, 0, 1, 1], [], []>} : vector<128x32xbf16>, vector<32x128xbf16>, vector<128x128xf32> -> vector<128x128xf32>
    %51 = arith.addf %41, %50 : vector<128x128xf32>
    %c2_i32 = arith.constant 2 : i32
    %52 = arith.cmpi slt, %c0_i32_2, %c2_i32 : i32
    %cst_21 = arith.constant 0.000000e+00 : f32
    %53 = vector.broadcast %cst_21 : f32 to vector<128x128xf32>
    %54 = arith.maximumf %51, %53 : vector<128x128xf32>
    %55 = arith.select %52, %54, %51 : vector<128x128xf32>
    %c1_i32 = arith.constant 1 : i32
    %c0_22 = arith.constant 0 : index
    %56 = arith.index_cast %c1_i32 : i32 to index
    %c0_23 = arith.constant 0 : index
    %c0_24 = arith.constant 0 : index
    %57 = vector.load %arg3[%c0_22, %56, %c0_23, %c0_24] : memref<1x3x64x128xi8, #tpu.memory_space<vmem>>, vector<1x1x64x128xi8>
    %58 = vector.shape_cast %57 : vector<1x1x64x128xi8> to vector<64x128xi8>
    %59 = arith.extsi %58 : vector<64x128xi8> to vector<64x128xi32>
    %c4_i32_25 = arith.constant 4 : i32
    %60 = vector.broadcast %c4_i32_25 : i32 to vector<64x128xi32>
    %61 = arith.shrsi %59, %60 : vector<64x128xi32>
    %62 = arith.sitofp %61 : vector<64x128xi32> to vector<64x128xbf16>
    %c15_i32_26 = arith.constant 15 : i32
    %63 = vector.broadcast %c15_i32_26 : i32 to vector<64x128xi32>
    %64 = arith.andi %59, %63 : vector<64x128xi32>
    %c8_i32_27 = arith.constant 8 : i32
    %65 = vector.broadcast %c8_i32_27 : i32 to vector<64x128xi32>
    %66 = arith.subi %64, %65 : vector<64x128xi32>
    %67 = arith.sitofp %66 : vector<64x128xi32> to vector<64x128xbf16>
    %c0_28 = arith.constant 0 : index
    %68 = arith.index_cast %c1_i32 : i32 to index
    %c0_29 = arith.constant 0 : index
    %c0_30 = arith.constant 0 : index
    %69 = vector.load %arg4[%c0_28, %68, %c0_29, %c0_30] : memref<1x3x8x128xbf16, #tpu.memory_space<vmem>>, vector<1x1x8x128xbf16>
    %70 = vector.shape_cast %69 : vector<1x1x8x128xbf16> to vector<8x128xbf16>
    %71 = vector.extract_strided_slice %70 {offsets = [0, 0], sizes = [4, 128], strides = [1, 1]} : vector<8x128xbf16> to vector<4x128xbf16>
    %72 = vector.shape_cast %71 : vector<4x128xbf16> to vector<4x1x128xbf16>
    %73 = vector.shape_cast %72 : vector<4x1x128xbf16> to vector<4x1x128xbf16>
    %74 = vector.broadcast %73 : vector<4x1x128xbf16> to vector<4x16x128xbf16>
    %75 = vector.shape_cast %74 : vector<4x16x128xbf16> to vector<64x128xbf16>
    %76 = vector.extract_strided_slice %70 {offsets = [4, 0], sizes = [4, 128], strides = [1, 1]} : vector<8x128xbf16> to vector<4x128xbf16>
    %77 = vector.shape_cast %76 : vector<4x128xbf16> to vector<4x1x128xbf16>
    %78 = vector.shape_cast %77 : vector<4x1x128xbf16> to vector<4x1x128xbf16>
    %79 = vector.broadcast %78 : vector<4x1x128xbf16> to vector<4x16x128xbf16>
    %80 = vector.shape_cast %79 : vector<4x16x128xbf16> to vector<64x128xbf16>
    %81 = arith.mulf %67, %75 : vector<64x128xbf16>
    %82 = arith.mulf %62, %80 : vector<64x128xbf16>
    %83 = arith.truncf %55 : vector<128x128xf32> to vector<128x128xbf16>
    %84 = vector.extract_strided_slice %83 {offsets = [0, 0], sizes = [128, 64], strides = [1, 1]} : vector<128x128xbf16> to vector<128x64xbf16>
    %cst_31 = arith.constant dense<0.000000e+00> : vector<128x128xf32>
    %85 = tpu.matmul %84, %81, %cst_31 {dimension_numbers = #tpu.dot_dimension_numbers<[1], [0], [0], [1], [0, 0, 1, 1], [], []>} : vector<128x64xbf16>, vector<64x128xbf16>, vector<128x128xf32> -> vector<128x128xf32>
    %86 = vector.extract_strided_slice %83 {offsets = [0, 64], sizes = [128, 64], strides = [1, 1]} : vector<128x128xbf16> to vector<128x64xbf16>
    %cst_32 = arith.constant dense<0.000000e+00> : vector<128x128xf32>
    %87 = tpu.matmul %86, %82, %cst_32 {dimension_numbers = #tpu.dot_dimension_numbers<[1], [0], [0], [1], [0, 0, 1, 1], [], []>} : vector<128x64xbf16>, vector<64x128xbf16>, vector<128x128xf32> -> vector<128x128xf32>
    %88 = arith.addf %85, %87 : vector<128x128xf32>
    %c0_33 = arith.constant 0 : index
    %89 = arith.index_cast %c1_i32 : i32 to index
    %c0_34 = arith.constant 0 : index
    %c0_35 = arith.constant 0 : index
    %90 = vector.load %arg5[%c0_33, %89, %c0_34, %c0_35] : memref<1x3x1x128xf32, #tpu.memory_space<vmem>>, vector<1x1x1x128xf32>
    %91 = vector.shape_cast %90 : vector<1x1x1x128xf32> to vector<1x128xf32>
    %92 = vector.broadcast %91 : vector<1x128xf32> to vector<128x128xf32>
    %93 = arith.addf %88, %92 : vector<128x128xf32>
    %c0_36 = arith.constant 0 : index
    %94 = arith.index_cast %c1_i32 : i32 to index
    %c0_37 = arith.constant 0 : index
    %c0_38 = arith.constant 0 : index
    %95 = vector.load %arg6[%c0_36, %94, %c0_37, %c0_38] : memref<1x3x128x32xbf16, #tpu.memory_space<vmem>>, vector<1x1x128x32xbf16>
    %96 = vector.shape_cast %95 : vector<1x1x128x32xbf16> to vector<128x32xbf16>
    %cst_39 = arith.constant dense<0.000000e+00> : vector<128x32xf32>
    %97 = tpu.matmul %83, %96, %cst_39 {dimension_numbers = #tpu.dot_dimension_numbers<[1], [0], [0], [1], [0, 0, 1, 1], [], []>} : vector<128x128xbf16>, vector<128x32xbf16>, vector<128x32xf32> -> vector<128x32xf32>
    %98 = arith.truncf %97 : vector<128x32xf32> to vector<128x32xbf16>
    %c0_40 = arith.constant 0 : index
    %99 = arith.index_cast %c1_i32 : i32 to index
    %c0_41 = arith.constant 0 : index
    %c0_42 = arith.constant 0 : index
    %100 = vector.load %arg7[%c0_40, %99, %c0_41, %c0_42] : memref<1x3x32x128xbf16, #tpu.memory_space<vmem>>, vector<1x1x32x128xbf16>
    %101 = vector.shape_cast %100 : vector<1x1x32x128xbf16> to vector<32x128xbf16>
    %cst_43 = arith.constant dense<0.000000e+00> : vector<128x128xf32>
    %102 = tpu.matmul %98, %101, %cst_43 {dimension_numbers = #tpu.dot_dimension_numbers<[1], [0], [0], [1], [0, 0, 1, 1], [], []>} : vector<128x32xbf16>, vector<32x128xbf16>, vector<128x128xf32> -> vector<128x128xf32>
    %103 = arith.addf %93, %102 : vector<128x128xf32>
    %c2_i32_44 = arith.constant 2 : i32
    %104 = arith.cmpi slt, %c1_i32, %c2_i32_44 : i32
    %cst_45 = arith.constant 0.000000e+00 : f32
    %105 = vector.broadcast %cst_45 : f32 to vector<128x128xf32>
    %106 = arith.maximumf %103, %105 : vector<128x128xf32>
    %107 = arith.select %104, %106, %103 : vector<128x128xf32>
    %c2_i32_46 = arith.constant 2 : i32
    %c0_47 = arith.constant 0 : index
    %108 = arith.index_cast %c2_i32_46 : i32 to index
    %c0_48 = arith.constant 0 : index
    %c0_49 = arith.constant 0 : index
    %109 = vector.load %arg3[%c0_47, %108, %c0_48, %c0_49] : memref<1x3x64x128xi8, #tpu.memory_space<vmem>>, vector<1x1x64x128xi8>
    %110 = vector.shape_cast %109 : vector<1x1x64x128xi8> to vector<64x128xi8>
    %111 = arith.extsi %110 : vector<64x128xi8> to vector<64x128xi32>
    %c4_i32_50 = arith.constant 4 : i32
    %112 = vector.broadcast %c4_i32_50 : i32 to vector<64x128xi32>
    %113 = arith.shrsi %111, %112 : vector<64x128xi32>
    %114 = arith.sitofp %113 : vector<64x128xi32> to vector<64x128xbf16>
    %c15_i32_51 = arith.constant 15 : i32
    %115 = vector.broadcast %c15_i32_51 : i32 to vector<64x128xi32>
    %116 = arith.andi %111, %115 : vector<64x128xi32>
    %c8_i32_52 = arith.constant 8 : i32
    %117 = vector.broadcast %c8_i32_52 : i32 to vector<64x128xi32>
    %118 = arith.subi %116, %117 : vector<64x128xi32>
    %119 = arith.sitofp %118 : vector<64x128xi32> to vector<64x128xbf16>
    %c0_53 = arith.constant 0 : index
    %120 = arith.index_cast %c2_i32_46 : i32 to index
    %c0_54 = arith.constant 0 : index
    %c0_55 = arith.constant 0 : index
    %121 = vector.load %arg4[%c0_53, %120, %c0_54, %c0_55] : memref<1x3x8x128xbf16, #tpu.memory_space<vmem>>, vector<1x1x8x128xbf16>
    %122 = vector.shape_cast %121 : vector<1x1x8x128xbf16> to vector<8x128xbf16>
    %123 = vector.extract_strided_slice %122 {offsets = [0, 0], sizes = [4, 128], strides = [1, 1]} : vector<8x128xbf16> to vector<4x128xbf16>
    %124 = vector.shape_cast %123 : vector<4x128xbf16> to vector<4x1x128xbf16>
    %125 = vector.shape_cast %124 : vector<4x1x128xbf16> to vector<4x1x128xbf16>
    %126 = vector.broadcast %125 : vector<4x1x128xbf16> to vector<4x16x128xbf16>
    %127 = vector.shape_cast %126 : vector<4x16x128xbf16> to vector<64x128xbf16>
    %128 = vector.extract_strided_slice %122 {offsets = [4, 0], sizes = [4, 128], strides = [1, 1]} : vector<8x128xbf16> to vector<4x128xbf16>
    %129 = vector.shape_cast %128 : vector<4x128xbf16> to vector<4x1x128xbf16>
    %130 = vector.shape_cast %129 : vector<4x1x128xbf16> to vector<4x1x128xbf16>
    %131 = vector.broadcast %130 : vector<4x1x128xbf16> to vector<4x16x128xbf16>
    %132 = vector.shape_cast %131 : vector<4x16x128xbf16> to vector<64x128xbf16>
    %133 = arith.mulf %119, %127 : vector<64x128xbf16>
    %134 = arith.mulf %114, %132 : vector<64x128xbf16>
    %135 = arith.truncf %107 : vector<128x128xf32> to vector<128x128xbf16>
    %136 = vector.extract_strided_slice %135 {offsets = [0, 0], sizes = [128, 64], strides = [1, 1]} : vector<128x128xbf16> to vector<128x64xbf16>
    %cst_56 = arith.constant dense<0.000000e+00> : vector<128x128xf32>
    %137 = tpu.matmul %136, %133, %cst_56 {dimension_numbers = #tpu.dot_dimension_numbers<[1], [0], [0], [1], [0, 0, 1, 1], [], []>} : vector<128x64xbf16>, vector<64x128xbf16>, vector<128x128xf32> -> vector<128x128xf32>
    %138 = vector.extract_strided_slice %135 {offsets = [0, 64], sizes = [128, 64], strides = [1, 1]} : vector<128x128xbf16> to vector<128x64xbf16>
    %cst_57 = arith.constant dense<0.000000e+00> : vector<128x128xf32>
    %139 = tpu.matmul %138, %134, %cst_57 {dimension_numbers = #tpu.dot_dimension_numbers<[1], [0], [0], [1], [0, 0, 1, 1], [], []>} : vector<128x64xbf16>, vector<64x128xbf16>, vector<128x128xf32> -> vector<128x128xf32>
    %140 = arith.addf %137, %139 : vector<128x128xf32>
    %c0_58 = arith.constant 0 : index
    %141 = arith.index_cast %c2_i32_46 : i32 to index
    %c0_59 = arith.constant 0 : index
    %c0_60 = arith.constant 0 : index
    %142 = vector.load %arg5[%c0_58, %141, %c0_59, %c0_60] : memref<1x3x1x128xf32, #tpu.memory_space<vmem>>, vector<1x1x1x128xf32>
    %143 = vector.shape_cast %142 : vector<1x1x1x128xf32> to vector<1x128xf32>
    %144 = vector.broadcast %143 : vector<1x128xf32> to vector<128x128xf32>
    %145 = arith.addf %140, %144 : vector<128x128xf32>
    %c0_61 = arith.constant 0 : index
    %146 = arith.index_cast %c2_i32_46 : i32 to index
    %c0_62 = arith.constant 0 : index
    %c0_63 = arith.constant 0 : index
    %147 = vector.load %arg6[%c0_61, %146, %c0_62, %c0_63] : memref<1x3x128x32xbf16, #tpu.memory_space<vmem>>, vector<1x1x128x32xbf16>
    %148 = vector.shape_cast %147 : vector<1x1x128x32xbf16> to vector<128x32xbf16>
    %cst_64 = arith.constant dense<0.000000e+00> : vector<128x32xf32>
    %149 = tpu.matmul %135, %148, %cst_64 {dimension_numbers = #tpu.dot_dimension_numbers<[1], [0], [0], [1], [0, 0, 1, 1], [], []>} : vector<128x128xbf16>, vector<128x32xbf16>, vector<128x32xf32> -> vector<128x32xf32>
    %150 = arith.truncf %149 : vector<128x32xf32> to vector<128x32xbf16>
    %c0_65 = arith.constant 0 : index
    %151 = arith.index_cast %c2_i32_46 : i32 to index
    %c0_66 = arith.constant 0 : index
    %c0_67 = arith.constant 0 : index
    %152 = vector.load %arg7[%c0_65, %151, %c0_66, %c0_67] : memref<1x3x32x128xbf16, #tpu.memory_space<vmem>>, vector<1x1x32x128xbf16>
    %153 = vector.shape_cast %152 : vector<1x1x32x128xbf16> to vector<32x128xbf16>
    %cst_68 = arith.constant dense<0.000000e+00> : vector<128x128xf32>
    %154 = tpu.matmul %150, %153, %cst_68 {dimension_numbers = #tpu.dot_dimension_numbers<[1], [0], [0], [1], [0, 0, 1, 1], [], []>} : vector<128x32xbf16>, vector<32x128xbf16>, vector<128x128xf32> -> vector<128x128xf32>
    %155 = arith.addf %145, %154 : vector<128x128xf32>
    %c2_i32_69 = arith.constant 2 : i32
    %156 = arith.cmpi slt, %c2_i32_46, %c2_i32_69 : i32
    %cst_70 = arith.constant 0.000000e+00 : f32
    %157 = vector.broadcast %cst_70 : f32 to vector<128x128xf32>
    %158 = arith.maximumf %155, %157 : vector<128x128xf32>
    %159 = arith.select %156, %158, %155 : vector<128x128xf32>
    %c3_i32 = arith.constant 3 : i32
    %160 = arith.addf %159, %3 : vector<128x128xf32>
    %c5_i32 = arith.constant 5 : i32
    %161 = arith.cmpi slt, %arg1, %c5_i32 : i32
    %162 = arith.extui %161 : i1 to i32
    %c0_i32_71 = arith.constant 0 : i32
    %163 = arith.cmpi ne, %162, %c0_i32_71 : i32
    scf.if %163 {
      %cst_74 = arith.constant dense<0.000000e+00> : vector<128xf32>
      %167 = vector.multi_reduction <add>, %160, %cst_74 [1] : vector<128x128xf32> to vector<128xf32>
      %168 = vector.shape_cast %167 : vector<128xf32> to vector<128x1xf32>
      %cst_75 = arith.constant 1.280000e+02 : f32
      %169 = vector.broadcast %cst_75 : f32 to vector<128x1xf32>
      %170 = arith.divf %168, %169 : vector<128x1xf32>
      %171 = vector.broadcast %170 : vector<128x1xf32> to vector<128x128xf32>
      %172 = arith.subf %160, %171 : vector<128x128xf32>
      %173 = arith.mulf %172, %172 : vector<128x128xf32>
      %cst_76 = arith.constant dense<0.000000e+00> : vector<128xf32>
      %174 = vector.multi_reduction <add>, %173, %cst_76 [1] : vector<128x128xf32> to vector<128xf32>
      %175 = vector.shape_cast %174 : vector<128xf32> to vector<128x1xf32>
      %cst_77 = arith.constant 1.280000e+02 : f32
      %176 = vector.broadcast %cst_77 : f32 to vector<128x1xf32>
      %177 = arith.divf %175, %176 : vector<128x1xf32>
      %cst_78 = arith.constant 9.99999974E-6 : f32
      %178 = vector.broadcast %cst_78 : f32 to vector<128x1xf32>
      %179 = arith.addf %177, %178 : vector<128x1xf32>
      %180 = math.rsqrt %179 : vector<128x1xf32>
      %181 = vector.broadcast %180 : vector<128x1xf32> to vector<128x128xf32>
      %182 = arith.mulf %172, %181 : vector<128x128xf32>
      %c0_79 = arith.constant 0 : index
      %c0_80 = arith.constant 0 : index
      %c0_81 = arith.constant 0 : index
      %183 = vector.load %arg8[%c0_79, %c0_80, %c0_81] : memref<1x1x128xf32, #tpu.memory_space<vmem>>, vector<1x1x128xf32>
      %184 = vector.shape_cast %183 : vector<1x1x128xf32> to vector<1x128xf32>
      %185 = vector.broadcast %184 : vector<1x128xf32> to vector<128x128xf32>
      %186 = arith.mulf %182, %185 : vector<128x128xf32>
      %c0_82 = arith.constant 0 : index
      %c0_83 = arith.constant 0 : index
      %c0_84 = arith.constant 0 : index
      %187 = vector.load %arg9[%c0_82, %c0_83, %c0_84] : memref<1x1x128xf32, #tpu.memory_space<vmem>>, vector<1x1x128xf32>
      %188 = vector.shape_cast %187 : vector<1x1x128xf32> to vector<1x128xf32>
      %189 = vector.broadcast %188 : vector<1x128xf32> to vector<128x128xf32>
      %190 = arith.addf %186, %189 : vector<128x128xf32>
      %c0_85 = arith.constant 0 : index
      %c0_86 = arith.constant 0 : index
      %191 = vector.load %arg10[%c0_85, %c0_86] : memref<128x128xf32, #tpu.memory_space<vmem>>, vector<128x128xf32>
      tpu.vector_store %arg10[%c0_85, %c0_86], %190 {strides = array<i32>} : memref<128x128xf32, #tpu.memory_space<vmem>>, vector<128x128xf32>,
    } else {
    }
    %c5_i32_72 = arith.constant 5 : i32
    %164 = arith.cmpi eq, %arg1, %c5_i32_72 : i32
    %165 = arith.extui %164 : i1 to i32
    %c0_i32_73 = arith.constant 0 : i32
    %166 = arith.cmpi ne, %165, %c0_i32_73 : i32
    scf.if %166 {
      %c0_74 = arith.constant 0 : index
      %c0_75 = arith.constant 0 : index
      %167 = vector.load %arg10[%c0_74, %c0_75] : memref<128x128xf32, #tpu.memory_space<vmem>>, vector<128x128xf32>
      tpu.vector_store %arg10[%c0_74, %c0_75], %160 {strides = array<i32>} : memref<128x128xf32, #tpu.memory_space<vmem>>, vector<128x128xf32>,
    } else {
    }
    return
  }
  func.func @transform_0(%arg0: i32, %arg1: i32) -> (i32, i32) {
    %c0_i32 = arith.constant 0 : i32
    %c0_i32_0 = arith.constant 0 : i32
    return %arg0, %c0_i32 : i32, i32
  }
  func.func @transform_1(%arg0: i32, %arg1: i32) -> (i32, i32, i32, i32) {
    %c0_i32 = arith.constant 0 : i32
    %c0_i32_0 = arith.constant 0 : i32
    %c0_i32_1 = arith.constant 0 : i32
    %c0_i32_2 = arith.constant 0 : i32
    return %arg1, %c0_i32, %c0_i32_0, %c0_i32_1 : i32, i32, i32, i32
  }
  func.func @transform_2(%arg0: i32, %arg1: i32) -> (i32, i32, i32, i32) {
    %c0_i32 = arith.constant 0 : i32
    %c0_i32_0 = arith.constant 0 : i32
    %c0_i32_1 = arith.constant 0 : i32
    %c0_i32_2 = arith.constant 0 : i32
    return %arg1, %c0_i32, %c0_i32_0, %c0_i32_1 : i32, i32, i32, i32
  }
  func.func @transform_3(%arg0: i32, %arg1: i32) -> (i32, i32, i32, i32) {
    %c0_i32 = arith.constant 0 : i32
    %c0_i32_0 = arith.constant 0 : i32
    %c0_i32_1 = arith.constant 0 : i32
    %c0_i32_2 = arith.constant 0 : i32
    return %arg1, %c0_i32, %c0_i32_0, %c0_i32_1 : i32, i32, i32, i32
  }
  func.func @transform_4(%arg0: i32, %arg1: i32) -> (i32, i32, i32, i32) {
    %c0_i32 = arith.constant 0 : i32
    %c0_i32_0 = arith.constant 0 : i32
    %c0_i32_1 = arith.constant 0 : i32
    %c0_i32_2 = arith.constant 0 : i32
    return %arg1, %c0_i32, %c0_i32_0, %c0_i32_1 : i32, i32, i32, i32
  }
  func.func @transform_5(%arg0: i32, %arg1: i32) -> (i32, i32, i32, i32) {
    %c0_i32 = arith.constant 0 : i32
    %c0_i32_0 = arith.constant 0 : i32
    %c0_i32_1 = arith.constant 0 : i32
    %c0_i32_2 = arith.constant 0 : i32
    return %arg1, %c0_i32, %c0_i32_0, %c0_i32_1 : i32, i32, i32, i32
  }
  func.func @transform_6(%arg0: i32, %arg1: i32) -> (i32, i32, i32) {
    %c0_i32 = arith.constant 0 : i32
    %c0_i32_0 = arith.constant 0 : i32
    %c0_i32_1 = arith.constant 0 : i32
    return %arg1, %c0_i32, %c0_i32_0 : i32, i32, i32
  }
  func.func @transform_7(%arg0: i32, %arg1: i32) -> (i32, i32, i32) {
    %c0_i32 = arith.constant 0 : i32
    %c0_i32_0 = arith.constant 0 : i32
    %c0_i32_1 = arith.constant 0 : i32
    return %arg1, %c0_i32, %c0_i32_0 : i32, i32, i32
  }
  func.func @transform_8(%arg0: i32, %arg1: i32) -> (i32, i32) {
    %c0_i32 = arith.constant 0 : i32
    %c0_i32_0 = arith.constant 0 : i32
    return %arg0, %c0_i32 : i32, i32
  }
}

</mosaic_0001>

<llo_original>
// kernel: qlora_bignet_forward.1
$region0: #{qlora_bignet_forward.1}
  #allocation0 [shape = 'u32[]', space=smem, size = 0x4, offset = 0x4, fixed_abs, tag = 'smem constant byte address 0x4 - core index']
  #allocation1 [shape = 'u32[144,128]{1,0:T(1,128)}', space=vmem, size = 0x12000, scoped, tag = 'internal scratch']
  %s0 = inlined_call_operand.hbm [shape: f32[128,128], index: 0, kind: input, shape index: {}]
  %s1 = inlined_call_operand.vmem [shape: s8[6,3,64,128], index: 1, kind: input, shape index: {}]
  %s2 = inlined_call_operand.hbm [shape: bf16[6,3,8,128], index: 2, kind: input, shape index: {}]
  %s3 = inlined_call_operand.vmem [shape: f32[6,3,1,128], index: 3, kind: input, shape index: {}]
  %s4 = inlined_call_operand.hbm [shape: bf16[6,3,128,32], index: 4, kind: input, shape index: {}]
  %s5 = inlined_call_operand.vmem [shape: bf16[6,3,32,128], index: 5, kind: input, shape index: {}]
  %s6 = inlined_call_operand.vmem [shape: f32[6,1,128], index: 6, kind: input, shape index: {}]
  %s7 = inlined_call_operand.vmem [shape: f32[6,1,128], index: 7, kind: input, shape index: {}]
  %s8 = inlined_call_operand.hbm [shape: f32[128,128], index: 8, kind: output, shape index: {}]
  %s9 = sld [smem:[#allocation0]]
  $region89: #{qlora_bignet_forward.1} parent=0
    _
  %s11 = ssub.s32 1, %s9
  %s12 = scalar_select 0, %s11, %s9
  $region1: #{qlora_bignet_forward.1} parent=0
    #allocation2 [shape = 'u8[65536]{0}', space=vmem, size = 0x10000, scoped, tag = 'input window, operand 0, single buffered']
    #allocation3 [shape = 's32[2]{0}', space=sflag, size = 0x8, scoped, tag = 'scoped memory for qlora_bignet_forward.1']
    #allocation4 [shape = 's32[2]{0}', space=sflag, size = 0x8, scoped, tag = 'scoped memory for qlora_bignet_forward.1']
    #allocation5 [shape = 'u8[12288]{0}', space=vmem, size = 0x3000, scoped, tag = 'input window, operand 2']
    #allocation6 [shape = 's32[2]{0}', space=sflag, size = 0x8, scoped, tag = 'scoped memory for qlora_bignet_forward.1']
    #allocation7 [shape = 'u8[196608]{0}', space=vmem, size = 0x30000, scoped, tag = 'input window, operand 4']
    #allocation8 [shape = 'u8[65536]{0}', space=vmem, size = 0x10000, scoped, tag = 'output window, operand 0, single buffered']
    %13 = vsyncpa [#allocation3], 0
    %14 = vsyncpa [#allocation6], 0
    %s15 = scalar_lea.sflag [#allocation6], 1
    %16 = vsyncpa %s15, 0
    %17 = vsyncpa [#allocation4], 0
    loop: start=0, step=1, limit=8
    $region2: #{qlora_bignet_forward.1} parent=1 // loop_pre_header
      _
    $region3: #{qlora_bignet_forward.1} parent=1 // loop_header
      %s19 = sphi 0, %s23
      %p20 = scmp.ge.s32.totalorder %s19, 8
      %s26 = sphi 0, %s38
      %s27 = sphi 0, %s34
      %s28 = sphi 0, %s26
      %s29 = sphi 0, %s27
      %s30 = sphi 0, %s28
      %s31 = sphi 0, %s29
      %s41 = sphi 0, %s43
      %s44 = sphi 0, %s41
      %s45 = sphi 0, %s44
      %s61 = sphi 0, %s45
      %s67 = sphi 0, %s69
      %s70 = sphi 0, %s67
      %s71 = sphi 0, %s70
      %s87 = sphi 0, %s71
      %s93 = sphi 0, %s95
      %s96 = sphi 0, %s93
      %s97 = sphi 0, %s96
      %s113 = sphi 0, %s97
      %s119 = sphi 0, %s121
      %s122 = sphi 0, %s119
      %s123 = sphi 0, %s122
      %s139 = sphi 0, %s123
      %s145 = sphi 0, %s147
      %s148 = sphi 0, %s145
      %s149 = sphi 0, %s148
      %s165 = sphi 0, %s149
      %s171 = sphi 0, %s173
      %s174 = sphi 0, %s171
      %s175 = sphi 0, %s174
      %s191 = sphi 0, %s175
      %s197 = sphi 0, %s199
      %s200 = sphi 0, %s197
      %s201 = sphi 0, %s200
      %s217 = sphi 0, %s201
      %s223 = sphi 0, %s225
      %s226 = sphi 0, %s223
      %s227 = sphi 0, %s226
      %s243 = sphi 0, %s227
      %s249 = sphi 0, %s251
      %s252 = sphi 0, %s249
      %s253 = sphi 0, %s252
      %s269 = sphi 0, %s253
    $region4: #{qlora_bignet_forward.1} parent=1 // loop_header_branch
      %22 = sbr.rel (%p20) target = $region8
    $region5: #{qlora_bignet_forward.1} parent=1 // loop_body
      %s24 = ssub.s32 %s19, 1
      %s25 = ssub.s32 %s19, 2
      %s32 = sadd.s32 1, %s27
      %p33 = scmp.ge.s32.totalorder %s32, 6
      %s34 = scalar_select %p33, 0, %s32
      %s35 = sadd.s32 1, %s26
      %s36 = scalar_select %p33, %s35, %s26
      %p37 = scmp.ge.s32.totalorder %s36, 1
      %s38 = scalar_select %p37, 0, %s36
      %s39 = ssub.s32 %s26, %s38
      %p40 = scmp.eq.s32.totalorder %s39, 0
      %s42 = sadd.s32 %s41, 1
      %s43 = scalar_select %p40, %s41, %s42
      %p46 = pneg %p40
      %p47 = scmp.eq.s32.totalorder %s19, 5
      %p48 = por %p46, %p47
      %p49 = scmp.ne.s32.totalorder %s41, %s44
      %p50 = scmp.eq.s32.totalorder %s19, 0
      %p51 = por %p49, %p50
      %p52 = scmp.ne.s32.totalorder %s41, %s44
      %p53 = scmp.eq.s32.totalorder %s24, 5
      %p54 = por %p52, %p53
      %p55 = scmp.ne.s32.totalorder %s44, %s45
      %p56 = scmp.eq.s32.totalorder %s24, 0
      %p57 = por %p55, %p56
      %p58 = scmp.ne.s32.totalorder %s44, %s45
      %p59 = scmp.eq.s32.totalorder %s25, 5
      %p60 = por %p58, %p59
      %p62 = scmp.ne.s32.totalorder %s45, %s61
      %p63 = scmp.eq.s32.totalorder %s25, 0
      %p64 = por %p62, %p63
      %s65 = ssub.s32 %s27, %s34
      %p66 = scmp.eq.s32.totalorder %s65, 0
      %s68 = sadd.s32 %s67, 1
      %s69 = scalar_select %p66, %s67, %s68
      %p72 = pneg %p66
      %p73 = scmp.eq.s32.totalorder %s19, 5
      %p74 = por %p72, %p73
      %p75 = scmp.ne.s32.totalorder %s67, %s70
      %p76 = scmp.eq.s32.totalorder %s19, 0
      %p77 = por %p75, %p76
      %p78 = scmp.ne.s32.totalorder %s67, %s70
      %p79 = scmp.eq.s32.totalorder %s24, 5
      %p80 = por %p78, %p79
      %p81 = scmp.ne.s32.totalorder %s70, %s71
      %p82 = scmp.eq.s32.totalorder %s24, 0
      %p83 = por %p81, %p82
      %p84 = scmp.ne.s32.totalorder %s70, %s71
      %p85 = scmp.eq.s32.totalorder %s25, 5
      %p86 = por %p84, %p85
      %p88 = scmp.ne.s32.totalorder %s71, %s87
      %p89 = scmp.eq.s32.totalorder %s25, 0
      %p90 = por %p88, %p89
      %s91 = ssub.s32 %s27, %s34
      %p92 = scmp.eq.s32.totalorder %s91, 0
      %s94 = sadd.s32 %s93, 1
      %s95 = scalar_select %p92, %s93, %s94
      %p98 = pneg %p92
      %p99 = scmp.eq.s32.totalorder %s19, 5
      %p100 = por %p98, %p99
      %p101 = scmp.ne.s32.totalorder %s93, %s96
      %p102 = scmp.eq.s32.totalorder %s19, 0
      %p103 = por %p101, %p102
      %p104 = scmp.ne.s32.totalorder %s93, %s96
      %p105 = scmp.eq.s32.totalorder %s24, 5
      %p106 = por %p104, %p105
      %p107 = scmp.ne.s32.totalorder %s96, %s97
      %p108 = scmp.eq.s32.totalorder %s24, 0
      %p109 = por %p107, %p108
      %p110 = scmp.ne.s32.totalorder %s96, %s97
      %p111 = scmp.eq.s32.totalorder %s25, 5
      %p112 = por %p110, %p111
      %p114 = scmp.ne.s32.totalorder %s97, %s113
      %p115 = scmp.eq.s32.totalorder %s25, 0
      %p116 = por %p114, %p115
      %s117 = ssub.s32 %s27, %s34
      %p118 = scmp.eq.s32.totalorder %s117, 0
      %s120 = sadd.s32 %s119, 1
      %s121 = scalar_select %p118, %s119, %s120
      %p124 = pneg %p118
      %p125 = scmp.eq.s32.totalorder %s19, 5
      %p126 = por %p124, %p125
      %p127 = scmp.ne.s32.totalorder %s119, %s122
      %p128 = scmp.eq.s32.totalorder %s19, 0
      %p129 = por %p127, %p128
      %p130 = scmp.ne.s32.totalorder %s119, %s122
      %p131 = scmp.eq.s32.totalorder %s24, 5
      %p132 = por %p130, %p131
      %p133 = scmp.ne.s32.totalorder %s122, %s123
      %p134 = scmp.eq.s32.totalorder %s24, 0
      %p135 = por %p133, %p134
      %p136 = scmp.ne.s32.totalorder %s122, %s123
      %p137 = scmp.eq.s32.totalorder %s25, 5
      %p138 = por %p136, %p137
      %p140 = scmp.ne.s32.totalorder %s123, %s139
      %p141 = scmp.eq.s32.totalorder %s25, 0
      %p142 = por %p140, %p141
      %s143 = ssub.s32 %s27, %s34
      %p144 = scmp.eq.s32.totalorder %s143, 0
      %s146 = sadd.s32 %s145, 1
      %s147 = scalar_select %p144, %s145, %s146
      %p150 = pneg %p144
      %p151 = scmp.eq.s32.totalorder %s19, 5
      %p152 = por %p150, %p151
      %p153 = scmp.ne.s32.totalorder %s145, %s148
      %p154 = scmp.eq.s32.totalorder %s19, 0
      %p155 = por %p153, %p154
      %p156 = scmp.ne.s32.totalorder %s145, %s148
      %p157 = scmp.eq.s32.totalorder %s24, 5
      %p158 = por %p156, %p157
      %p159 = scmp.ne.s32.totalorder %s148, %s149
      %p160 = scmp.eq.s32.totalorder %s24, 0
      %p161 = por %p159, %p160
      %p162 = scmp.ne.s32.totalorder %s148, %s149
      %p163 = scmp.eq.s32.totalorder %s25, 5
      %p164 = por %p162, %p163
      %p166 = scmp.ne.s32.totalorder %s149, %s165
      %p167 = scmp.eq.s32.totalorder %s25, 0
      %p168 = por %p166, %p167
      %s169 = ssub.s32 %s27, %s34
      %p170 = scmp.eq.s32.totalorder %s169, 0
      %s172 = sadd.s32 %s171, 1
      %s173 = scalar_select %p170, %s171, %s172
      %p176 = pneg %p170
      %p177 = scmp.eq.s32.totalorder %s19, 5
      %p178 = por %p176, %p177
      %p179 = scmp.ne.s32.totalorder %s171, %s174
      %p180 = scmp.eq.s32.totalorder %s19, 0
      %p181 = por %p179, %p180
      %p182 = scmp.ne.s32.totalorder %s171, %s174
      %p183 = scmp.eq.s32.totalorder %s24, 5
      %p184 = por %p182, %p183
      %p185 = scmp.ne.s32.totalorder %s174, %s175
      %p186 = scmp.eq.s32.totalorder %s24, 0
      %p187 = por %p185, %p186
      %p188 = scmp.ne.s32.totalorder %s174, %s175
      %p189 = scmp.eq.s32.totalorder %s25, 5
      %p190 = por %p188, %p189
      %p192 = scmp.ne.s32.totalorder %s175, %s191
      %p193 = scmp.eq.s32.totalorder %s25, 0
      %p194 = por %p192, %p193
      %s195 = ssub.s32 %s27, %s34
      %p196 = scmp.eq.s32.totalorder %s195, 0
      %s198 = sadd.s32 %s197, 1
      %s199 = scalar_select %p196, %s197, %s198
      %p202 = pneg %p196
      %p203 = scmp.eq.s32.totalorder %s19, 5
      %p204 = por %p202, %p203
      %p205 = scmp.ne.s32.totalorder %s197, %s200
      %p206 = scmp.eq.s32.totalorder %s19, 0
      %p207 = por %p205, %p206
      %p208 = scmp.ne.s32.totalorder %s197, %s200
      %p209 = scmp.eq.s32.totalorder %s24, 5
      %p210 = por %p208, %p209
      %p211 = scmp.ne.s32.totalorder %s200, %s201
      %p212 = scmp.eq.s32.totalorder %s24, 0
      %p213 = por %p211, %p212
      %p214 = scmp.ne.s32.totalorder %s200, %s201
      %p215 = scmp.eq.s32.totalorder %s25, 5
      %p216 = por %p214, %p215
      %p218 = scmp.ne.s32.totalorder %s201, %s217
      %p219 = scmp.eq.s32.totalorder %s25, 0
      %p220 = por %p218, %p219
      %s221 = ssub.s32 %s27, %s34
      %p222 = scmp.eq.s32.totalorder %s221, 0
      %s224 = sadd.s32 %s223, 1
      %s225 = scalar_select %p222, %s223, %s224
      %p228 = pneg %p222
      %p229 = scmp.eq.s32.totalorder %s19, 5
      %p230 = por %p228, %p229
      %p231 = scmp.ne.s32.totalorder %s223, %s226
      %p232 = scmp.eq.s32.totalorder %s19, 0
      %p233 = por %p231, %p232
      %p234 = scmp.ne.s32.totalorder %s223, %s226
      %p235 = scmp.eq.s32.totalorder %s24, 5
      %p236 = por %p234, %p235
      %p237 = scmp.ne.s32.totalorder %s226, %s227
      %p238 = scmp.eq.s32.totalorder %s24, 0
      %p239 = por %p237, %p238
      %p240 = scmp.ne.s32.totalorder %s226, %s227
      %p241 = scmp.eq.s32.totalorder %s25, 5
      %p242 = por %p240, %p241
      %p244 = scmp.ne.s32.totalorder %s227, %s243
      %p245 = scmp.eq.s32.totalorder %s25, 0
      %p246 = por %p244, %p245
      %s247 = ssub.s32 %s26, %s38
      %p248 = scmp.eq.s32.totalorder %s247, 0
      %s250 = sadd.s32 %s249, 1
      %s251 = scalar_select %p248, %s249, %s250
      %p254 = pneg %p248
      %p255 = scmp.eq.s32.totalorder %s19, 5
      %p256 = por %p254, %p255
      %p257 = scmp.ne.s32.totalorder %s249, %s252
      %p258 = scmp.eq.s32.totalorder %s19, 0
      %p259 = por %p257, %p258
      %p260 = scmp.ne.s32.totalorder %s249, %s252
      %p261 = scmp.eq.s32.totalorder %s24, 5
      %p262 = por %p260, %p261
      %p263 = scmp.ne.s32.totalorder %s252, %s253
      %p264 = scmp.eq.s32.totalorder %s24, 0
      %p265 = por %p263, %p264
      %p266 = scmp.ne.s32.totalorder %s252, %s253
      %p267 = scmp.eq.s32.totalorder %s25, 5
      %p268 = por %p266, %p267
      %p270 = scmp.ne.s32.totalorder %s253, %s269
      %p271 = scmp.eq.s32.totalorder %s25, 0
      %p272 = por %p270, %p271
      %p273 = scmp.le.s32.totalorder 1, %s19
      %p274 = scmp.lt.s32.totalorder %s19, 7
      %p275 = pnand %p273, %p274
      %p276 = pneg %p275
      // Predicated region
      $region9: #{qlora_bignet_forward.1} parent=5 // pred_check
        _
      $region10: #{qlora_bignet_forward.1} parent=5 // pred_check_branch
        %278 = sbr.rel (%p275) target = $region12
      $region11: #{qlora_bignet_forward.1} parent=5 // pred_region
        %s279 = ssub.s32 %s19, 1
        // Predicated region
        $region13: #{qlora_bignet_forward.1} parent=11 // pred_check
          %p280 = pneg %p57
        $region14: #{qlora_bignet_forward.1} parent=11 // pred_check_branch
          %282 = sbr.rel (%p280) target = $region16
        $region15: #{qlora_bignet_forward.1} parent=11 // pred_region
          %s283 = smul.u32 16, %s28
          %s285 = ssub.s32 2048, 2048
          %286 = vsyncadd [#allocation3], %s285
          %s287 = smul.addr %s283, 128
          %s288 = scalar_lea.hbm %s0, %s287
          %s289 = sshll.u32 [#allocation2], 4
          %s290 = int_to_ptr.vmem [resolvable:$true] %s289
          %295 = dma.hbm_to_vmem [thread:$0]  %s288, 2048, %s290, [#allocation3], 128, 128, 8
        $region16: #{qlora_bignet_forward.1} parent=11 // pred_fallthru
          _
      $region12: #{qlora_bignet_forward.1} parent=5 // pred_fallthru
        _
      %p296 = scmp.lt.s32.totalorder %s19, 6
      // Predicated region
      $region17: #{qlora_bignet_forward.1} parent=5 // pred_check
        %p297 = pneg %p296
      $region18: #{qlora_bignet_forward.1} parent=5 // pred_check_branch
        %299 = sbr.rel (%p297) target = $region20
      $region19: #{qlora_bignet_forward.1} parent=5 // pred_region
        // Predicated region
        $region21: #{qlora_bignet_forward.1} parent=19 // pred_check
          %p300 = pneg %p77
        $region22: #{qlora_bignet_forward.1} parent=19 // pred_check_branch
          %302 = sbr.rel (%p300) target = $region24
        $region23: #{qlora_bignet_forward.1} parent=19 // pred_region
          %p303 = scmp.lt.s32.totalorder %s27, 5
          %s304 = scalar_select %p303, %s27, 5
          %s305 = smul.addr %s304, 6
          %s306 = smul.addr %s305, 8
          %s307 = scalar_lea.vmem %s1, %s306
        $region24: #{qlora_bignet_forward.1} parent=19 // pred_fallthru
          _
        // Predicated region
        $region25: #{qlora_bignet_forward.1} parent=19 // pred_check
          %p308 = pneg %p103
        $region26: #{qlora_bignet_forward.1} parent=19 // pred_check_branch
          %310 = sbr.rel (%p308) target = $region28
        $region27: #{qlora_bignet_forward.1} parent=19 // pred_region
          %s311 = sand.u32 %s19, 1
          %s312 = scalar_lea.sflag [#allocation6], %s311
          %s313 = sand.u32 %s93, 1
          %s314 = smul.addr %s313, 12
          %s315 = scalar_lea.vmem [#allocation5], %s314
          %s317 = ssub.s32 192, 192
          %318 = vsyncadd %s312, %s317
          %s319 = smul.addr %s27, 3
          %s320 = smul.addr %s319, 64
          %s321 = scalar_lea.hbm %s2, %s320
          %s322 = sshll.u32 %s315, 4
          %s323 = int_to_ptr.vmem [resolvable:$true] %s322
          %328 = dma.hbm_to_vmem [thread:$0]  %s321, 192, %s323, %s312, 64, 64, 4
        $region28: #{qlora_bignet_forward.1} parent=19 // pred_fallthru
          _
        // Predicated region
        $region29: #{qlora_bignet_forward.1} parent=19 // pred_check
          %p329 = pneg %p129
        $region30: #{qlora_bignet_forward.1} parent=19 // pred_check_branch
          %331 = sbr.rel (%p329) target = $region32
        $region31: #{qlora_bignet_forward.1} parent=19 // pred_region
          %p332 = scmp.lt.s32.totalorder %s27, 5
          %s333 = scalar_select %p332, %s27, 5
          %s334 = smul.addr %s333, 3
          %s335 = scalar_lea.vmem %s3, %s334
        $region32: #{qlora_bignet_forward.1} parent=19 // pred_fallthru
          _
        // Predicated region
        $region33: #{qlora_bignet_forward.1} parent=19 // pred_check
          %p336 = pneg %p155
        $region34: #{qlora_bignet_forward.1} parent=19 // pred_check_branch
          %338 = sbr.rel (%p336) target = $region36
        $region35: #{qlora_bignet_forward.1} parent=19 // pred_region
          %s339 = sand.u32 %s19, 1
          %s340 = scalar_lea.sflag [#allocation6], %s339
          %s341 = sand.u32 %s145, 1
          %s342 = smul.addr %s341, 192
          %s343 = scalar_lea.vmem [#allocation7], %s342
          %s345 = ssub.s32 3072, 3072
          %346 = vsyncadd %s340, %s345
          %s347 = smul.addr %s27, 48
          %s348 = smul.addr %s347, 64
          %s349 = scalar_lea.hbm %s4, %s348
          %s350 = sshll.u32 %s343, 4
          %s351 = int_to_ptr.vmem [resolvable:$true] %s350
          %356 = dma.hbm_to_vmem [thread:$0]  %s349, 3072, %s351, %s340, 64, 64, 4
        $region36: #{qlora_bignet_forward.1} parent=19 // pred_fallthru
          _
        // Predicated region
        $region37: #{qlora_bignet_forward.1} parent=19 // pred_check
          %p357 = pneg %p181
        $region38: #{qlora_bignet_forward.1} parent=19 // pred_check_branch
          %359 = sbr.rel (%p357) target = $region40
        $region39: #{qlora_bignet_forward.1} parent=19 // pred_region
          %p360 = scmp.lt.s32.totalorder %s27, 5
          %s361 = scalar_select %p360, %s27, 5
          %s362 = smul.addr %s361, 12
          %s363 = smul.addr %s362, 4
          %s364 = scalar_lea.vmem %s5, %s363
        $region40: #{qlora_bignet_forward.1} parent=19 // pred_fallthru
          _
        // Predicated region
        $region41: #{qlora_bignet_forward.1} parent=19 // pred_check
          %p365 = pneg %p207
        $region42: #{qlora_bignet_forward.1} parent=19 // pred_check_branch
          %367 = sbr.rel (%p365) target = $region44
        $region43: #{qlora_bignet_forward.1} parent=19 // pred_region
          %p368 = scmp.lt.s32.totalorder %s27, 5
          %s369 = scalar_select %p368, %s27, 5
          %s370 = scalar_lea.vmem %s6, %s369
        $region44: #{qlora_bignet_forward.1} parent=19 // pred_fallthru
          _
        // Predicated region
        $region45: #{qlora_bignet_forward.1} parent=19 // pred_check
          %p371 = pneg %p233
        $region46: #{qlora_bignet_forward.1} parent=19 // pred_check_branch
          %373 = sbr.rel (%p371) target = $region48
        $region47: #{qlora_bignet_forward.1} parent=19 // pred_region
          %p374 = scmp.lt.s32.totalorder %s27, 5
          %s375 = scalar_select %p374, %s27, 5
          %s376 = scalar_lea.vmem %s7, %s375
        $region48: #{qlora_bignet_forward.1} parent=19 // pred_fallthru
          _
      $region20: #{qlora_bignet_forward.1} parent=5 // pred_fallthru
        _
      %p377 = scmp.le.s32.totalorder 1, %s19
      %p378 = scmp.lt.s32.totalorder %s19, 7
      %p379 = pnand %p377, %p378
      %p380 = pneg %p379
      // Predicated region
      $region49: #{qlora_bignet_forward.1} parent=5 // pred_check
        _
      $region50: #{qlora_bignet_forward.1} parent=5 // pred_check_branch
        %382 = sbr.rel (%p379) target = $region52
      $region51: #{qlora_bignet_forward.1} parent=5 // pred_region
        %s383 = ssub.s32 %s19, 1
        // Predicated region
        $region53: #{qlora_bignet_forward.1} parent=51 // pred_check
          %p384 = pneg %p57
        $region54: #{qlora_bignet_forward.1} parent=51 // pred_check_branch
          %386 = sbr.rel (%p384) target = $region56
        $region55: #{qlora_bignet_forward.1} parent=51 // pred_region
          %387 = dma.done [#allocation3], 2048
        $region56: #{qlora_bignet_forward.1} parent=51 // pred_fallthru
          _
        %s388 = sand.u32 %s24, 1
        %s389 = scalar_lea.sflag [#allocation6], %s388
        %s390 = sand.u32 %s96, 1
        %s391 = smul.addr %s390, 12
        %s392 = scalar_lea.vmem [#allocation5], %s391
        // Predicated region
        $region57: #{qlora_bignet_forward.1} parent=51 // pred_check
          %p393 = pneg %p109
        $region58: #{qlora_bignet_forward.1} parent=51 // pred_check_branch
          %395 = sbr.rel (%p393) target = $region60
        $region59: #{qlora_bignet_forward.1} parent=51 // pred_region
          %396 = dma.done %s389, 192
        $region60: #{qlora_bignet_forward.1} parent=51 // pred_fallthru
          _
        %s397 = sand.u32 %s24, 1
        %s398 = scalar_lea.sflag [#allocation6], %s397
        %s399 = sand.u32 %s148, 1
        %s400 = smul.addr %s399, 192
        %s401 = scalar_lea.vmem [#allocation7], %s400
        // Predicated region
        $region61: #{qlora_bignet_forward.1} parent=51 // pred_check
          %p402 = pneg %p161
        $region62: #{qlora_bignet_forward.1} parent=51 // pred_check_branch
          %404 = sbr.rel (%p402) target = $region64
        $region63: #{qlora_bignet_forward.1} parent=51 // pred_region
          %405 = dma.done %s398, 3072
        $region64: #{qlora_bignet_forward.1} parent=51 // pred_fallthru
          _
        %p406 = pneg %p57
        %p407 = pneg %p54
        %p408 = scmp.lt.s32.totalorder %s29, 5
        %s409 = scalar_select %p408, %s29, 5
        %s410 = smul.addr %s409, 6
        %s411 = smul.addr %s410, 8
        %s412 = scalar_lea.vmem %s1, %s411
        %p413 = pneg %p83
        %p414 = pneg %p80
        %s415 = sand.u32 %s24, 1
        %s416 = scalar_lea.sflag [#allocation6], %s415
        %s417 = sand.u32 %s96, 1
        %s418 = smul.addr %s417, 12
        %s419 = scalar_lea.vmem [#allocation5], %s418
        %p420 = pneg %p109
        %p421 = pneg %p106
        %p422 = scmp.lt.s32.totalorder %s29, 5
        %s423 = scalar_select %p422, %s29, 5
        %s424 = smul.addr %s423, 3
        %s425 = scalar_lea.vmem %s3, %s424
        %p426 = pneg %p135
        %p427 = pneg %p132
        %s428 = sand.u32 %s24, 1
        %s429 = scalar_lea.sflag [#allocation6], %s428
        %s430 = sand.u32 %s148, 1
        %s431 = smul.addr %s430, 192
        %s432 = scalar_lea.vmem [#allocation7], %s431
        %p433 = pneg %p161
        %p434 = pneg %p158
        %p435 = scmp.lt.s32.totalorder %s29, 5
        %s436 = scalar_select %p435, %s29, 5
        %s437 = smul.addr %s436, 12
        %s438 = smul.addr %s437, 4
        %s439 = scalar_lea.vmem %s5, %s438
        %p440 = pneg %p187
        %p441 = pneg %p184
        %p442 = scmp.lt.s32.totalorder %s29, 5
        %s443 = scalar_select %p442, %s29, 5
        %s444 = scalar_lea.vmem %s6, %s443
        %p445 = pneg %p213
        %p446 = pneg %p210
        %p447 = scmp.lt.s32.totalorder %s29, 5
        %s448 = scalar_select %p447, %s29, 5
        %s449 = scalar_lea.vmem %s7, %s448
        %p450 = pneg %p239
        %p451 = pneg %p236
        %p452 = pneg %p265
        %p453 = pneg %p262
        %s454 = smul.u32 16, %s28
        %p455 = scmp.lt.s32.totalorder %s29, 5
        %s456 = scalar_select %p455, %s29, 5
        %s457 = smul.addr %s456, 6
        %s458 = smul.addr %s457, 8
        %s459 = scalar_lea.vmem %s1, %s458
        %p460 = scmp.lt.s32.totalorder %s29, 5
        %s461 = scalar_select %p460, %s29, 5
        %s462 = smul.addr %s461, 3
        %s463 = scalar_lea.vmem %s3, %s462
        %p464 = scmp.lt.s32.totalorder %s29, 5
        %s465 = scalar_select %p464, %s29, 5
        %s466 = smul.addr %s465, 12
        %s467 = smul.addr %s466, 4
        %s468 = scalar_lea.vmem %s5, %s467
        %p469 = scmp.lt.s32.totalorder %s29, 5
        %s470 = scalar_select %p469, %s29, 5
        %s471 = scalar_lea.vmem %s6, %s470
        %p472 = scmp.lt.s32.totalorder %s29, 5
        %s473 = scalar_select %p472, %s29, 5
        %s474 = scalar_lea.vmem %s7, %s473
        %s475 = smul.u32 16, %s28
        %p477 = scmp.eq.s32.totalorder %s29, 0
        // Predicated region
        $region65: #{qlora_bignet_forward.1} parent=51 // pred_check
          %p478 = pneg %p477
        $region66: #{qlora_bignet_forward.1} parent=51 // pred_check_branch
          %480 = sbr.rel (%p478) target = $region68
        $region67: #{qlora_bignet_forward.1} parent=51 // pred_region
          %v481 = vld [vmem:[#allocation2] sm:$0xff]
          %v482 = vld [vmem:[#allocation2 + $0x8] sm:$0xff]
          %v483 = vld [vmem:[#allocation2 + $0x10] sm:$0xff]
          %v484 = vld [vmem:[#allocation2 + $0x18] sm:$0xff]
          %v485 = vld [vmem:[#allocation2 + $0x20] sm:$0xff]
          %v486 = vld [vmem:[#allocation2 + $0x28] sm:$0xff]
          %v487 = vld [vmem:[#allocation2 + $0x30] sm:$0xff]
          %v488 = vld [vmem:[#allocation2 + $0x38] sm:$0xff]
          %v489 = vld [vmem:[#allocation2 + $0x40] sm:$0xff]
          %v490 = vld [vmem:[#allocation2 + $0x48] sm:$0xff]
          %v491 = vld [vmem:[#allocation2 + $0x50] sm:$0xff]
          %v492 = vld [vmem:[#allocation2 + $0x58] sm:$0xff]
          %v493 = vld [vmem:[#allocation2 + $0x60] sm:$0xff]
          %v494 = vld [vmem:[#allocation2 + $0x68] sm:$0xff]
          %v495 = vld [vmem:[#allocation2 + $0x70] sm:$0xff]
          %v496 = vld [vmem:[#allocation2 + $0x78] sm:$0xff]
          %497 = vst [vmem:[#allocation8] sm:$0xff] %v481
          %498 = vst [vmem:[#allocation8 + $0x8] sm:$0xff] %v482
          %499 = vst [vmem:[#allocation8 + $0x10] sm:$0xff] %v483
          %500 = vst [vmem:[#allocation8 + $0x18] sm:$0xff] %v484
          %501 = vst [vmem:[#allocation8 + $0x20] sm:$0xff] %v485
          %502 = vst [vmem:[#allocation8 + $0x28] sm:$0xff] %v486
          %503 = vst [vmem:[#allocation8 + $0x30] sm:$0xff] %v487
          %504 = vst [vmem:[#allocation8 + $0x38] sm:$0xff] %v488
          %505 = vst [vmem:[#allocation8 + $0x40] sm:$0xff] %v489
          %506 = vst [vmem:[#allocation8 + $0x48] sm:$0xff] %v490
          %507 = vst [vmem:[#allocation8 + $0x50] sm:$0xff] %v491
          %508 = vst [vmem:[#allocation8 + $0x58] sm:$0xff] %v492
          %509 = vst [vmem:[#allocation8 + $0x60] sm:$0xff] %v493
          %510 = vst [vmem:[#allocation8 + $0x68] sm:$0xff] %v494
          %511 = vst [vmem:[#allocation8 + $0x70] sm:$0xff] %v495
          %512 = vst [vmem:[#allocation8 + $0x78] sm:$0xff] %v496
        $region68: #{qlora_bignet_forward.1} parent=51 // pred_fallthru
          _
        %v513 = vld [vmem:[#allocation8] sm:$0xff]
        %v514 = vld [vmem:[#allocation8 + $0x8] sm:$0xff]
        %v515 = vld [vmem:[#allocation8 + $0x10] sm:$0xff]
        %v516 = vld [vmem:[#allocation8 + $0x18] sm:$0xff]
        %v517 = vld [vmem:[#allocation8 + $0x20] sm:$0xff]
        %v518 = vld [vmem:[#allocation8 + $0x28] sm:$0xff]
        %v519 = vld [vmem:[#allocation8 + $0x30] sm:$0xff]
        %v520 = vld [vmem:[#allocation8 + $0x38] sm:$0xff]
        %v521 = vld [vmem:[#allocation8 + $0x40] sm:$0xff]
        %v522 = vld [vmem:[#allocation8 + $0x48] sm:$0xff]
        %v523 = vld [vmem:[#allocation8 + $0x50] sm:$0xff]
        %v524 = vld [vmem:[#allocation8 + $0x58] sm:$0xff]
        %v525 = vld [vmem:[#allocation8 + $0x60] sm:$0xff]
        %v526 = vld [vmem:[#allocation8 + $0x68] sm:$0xff]
        %v527 = vld [vmem:[#allocation8 + $0x70] sm:$0xff]
        %v528 = vld [vmem:[#allocation8 + $0x78] sm:$0xff]
        %v529 = vld [vmem:[%s459] sm:$0xff]
        %v530 = vld [vmem:[%s459 + $0x8] sm:$0xff]
        %v531 = vunpack.c.0.s8 %v529
        %v532 = vunpack.c.1.s8 %v529
        %v533 = vunpack.c.2.s8 %v529
        %v534 = vunpack.c.3.s8 %v529
        %v535 = vunpack.c.0.s8 %v530
        %v536 = vunpack.c.1.s8 %v530
        %v537 = vunpack.c.2.s8 %v530
        %v538 = vunpack.c.3.s8 %v530
        %v539 = vshra.s32 %v531, 4
        %v540 = vshra.s32 %v532, 4
        %v541 = vshra.s32 %v533, 4
        %v542 = vshra.s32 %v534, 4
        %v543 = vshra.s32 %v535, 4
        %v544 = vshra.s32 %v536, 4
        %v545 = vshra.s32 %v537, 4
        %v546 = vshra.s32 %v538, 4
        %v547 = vcvt.s32.f32 %v539
        %v548 = vcvt.s32.f32 %v540
        %v549 = vcvt.s32.f32 %v541
        %v550 = vcvt.s32.f32 %v542
        %v551 = vcvt.s32.f32 %v543
        %v552 = vcvt.s32.f32 %v544
        %v553 = vcvt.s32.f32 %v545
        %v554 = vcvt.s32.f32 %v546
        %v555 = vpack.c.bf16 %v548, %v547
        %v556 = vpack.c.bf16 %v550, %v549
        %v557 = vpack.c.bf16 %v552, %v551
        %v558 = vpack.c.bf16 %v554, %v553
        %v559 = vand.u32 %v531, 15
        %v560 = vand.u32 %v532, 15
        %v561 = vand.u32 %v533, 15
        %v562 = vand.u32 %v534, 15
        %v563 = vand.u32 %v535, 15
        %v564 = vand.u32 %v536, 15
        %v565 = vand.u32 %v537, 15
        %v566 = vand.u32 %v538, 15
        %v567 = vsub.s32 %v559, 8
        %v568 = vsub.s32 %v560, 8
        %v569 = vsub.s32 %v561, 8
        %v570 = vsub.s32 %v562, 8
        %v571 = vsub.s32 %v563, 8
        %v572 = vsub.s32 %v564, 8
        %v573 = vsub.s32 %v565, 8
        %v574 = vsub.s32 %v566, 8
        %v575 = vcvt.s32.f32 %v567
        %v576 = vcvt.s32.f32 %v568
        %v577 = vcvt.s32.f32 %v569
        %v578 = vcvt.s32.f32 %v570
        %v579 = vcvt.s32.f32 %v571
        %v580 = vcvt.s32.f32 %v572
        %v581 = vcvt.s32.f32 %v573
        %v582 = vcvt.s32.f32 %v574
        %v583 = vpack.c.bf16 %v576, %v575
        %v584 = vpack.c.bf16 %v578, %v577
        %v585 = vpack.c.bf16 %v580, %v579
        %v586 = vpack.c.bf16 %v582, %v581
        %v587 = vld [vmem:[%s392] sm:$0xf]
        %v590 = vunpack.c.l.s4 1966171168
        %v591 = vunpack.c.0.s8 %v590
        %v592 = vlaneseq
        %v593 = vshrl.u32 %v592, 7
        %v594 = vsub.s32 %v591, %v593
        %v595 = vrot.slane %v587, %v594
        %v596 = vcombine.high %v595, %v595
        %v598 = vunpack.c.l.s4 1966171168
        %v599 = vunpack.c.0.s8 %v598
        %v600 = vlaneseq
        %v601 = vshrl.u32 %v600, 7
        %v602 = vsub.s32 %v599, %v601
        %v603 = vrot.slane %v595, %v602
        %v605 = vunpack.c.l.s4 1966171168
        %v606 = vunpack.c.0.s8 %v605
        %v607 = vlaneseq
        %v608 = vshrl.u32 %v607, 7
        %v609 = vsub.s32 %v606, %v608
        %v610 = vrot.slane %v596, %v609
        %v611 = vunpack.i.l.s16 %v603
        %v612 = vunpack.i.h.s16 %v603
        %v613 = vunpack.i.l.s16 %v610
        %v614 = vunpack.i.h.s16 %v610
        %v615 = vpack.i.b16 %v611, %v611
        %v616 = vpack.i.b16 %v612, %v612
        %v617 = vpack.i.b16 %v613, %v613
        %v618 = vpack.i.b16 %v614, %v614
        %v619 = vlaneseq
        %v620 = vshrl.u32 %v619, 7
        %v621 = vsub.s32 0, %v620
        %v622 = vrot.slane %v615, %v621
        %v623 = vlaneseq
        %v624 = vshrl.u32 %v623, 7
        %v625 = vsub.s32 0, %v624
        %v626 = vrot.slane %v616, %v625
        %v627 = vlaneseq
        %v628 = vshrl.u32 %v627, 7
        %v629 = vsub.s32 0, %v628
        %v630 = vrot.slane %v617, %v629
        %v631 = vlaneseq
        %v632 = vshrl.u32 %v631, 7
        %v633 = vsub.s32 0, %v632
        %v634 = vrot.slane %v618, %v633
        %v636 = vpack.i.b16 %v622, %v622
        %v638 = vlaneseq
        %v639 = vshrl.u32 %v638, 7
        %v640 = vsub.s32 0, %v639
        %v641 = vrot.slane %v636, %v640
        %v643 = vpack.i.b16 %v626, %v626
        %v645 = vlaneseq
        %v646 = vshrl.u32 %v645, 7
        %v647 = vsub.s32 0, %v646
        %v648 = vrot.slane %v643, %v647
        %v650 = vpack.i.b16 %v630, %v630
        %v652 = vlaneseq
        %v653 = vshrl.u32 %v652, 7
        %v654 = vsub.s32 0, %v653
        %v655 = vrot.slane %v650, %v654
        %v657 = vpack.i.b16 %v634, %v634
        %v659 = vlaneseq
        %v660 = vshrl.u32 %v659, 7
        %v661 = vsub.s32 0, %v660
        %v662 = vrot.slane %v657, %v661
        %v663 = vcombine.high %v603, %v603
        %v664 = vcombine.high %v610, %v610
        %v665 = vunpack.i.l.s16 %v663
        %v666 = vunpack.i.h.s16 %v663
        %v667 = vunpack.i.l.s16 %v664
        %v668 = vunpack.i.h.s16 %v664
        %v669 = vpack.i.b16 %v665, %v665
        %v670 = vpack.i.b16 %v666, %v666
        %v671 = vpack.i.b16 %v667, %v667
        %v672 = vpack.i.b16 %v668, %v668
        %v673 = vlaneseq
        %v674 = vshrl.u32 %v673, 7
        %v675 = vsub.s32 0, %v674
        %v676 = vrot.slane %v669, %v675
        %v677 = vlaneseq
        %v678 = vshrl.u32 %v677, 7
        %v679 = vsub.s32 0, %v678
        %v680 = vrot.slane %v670, %v679
        %v681 = vlaneseq
        %v682 = vshrl.u32 %v681, 7
        %v683 = vsub.s32 0, %v682
        %v684 = vrot.slane %v671, %v683
        %v685 = vlaneseq
        %v686 = vshrl.u32 %v685, 7
        %v687 = vsub.s32 0, %v686
        %v688 = vrot.slane %v672, %v687
        %v690 = vpack.i.b16 %v676, %v676
        %v692 = vlaneseq
        %v693 = vshrl.u32 %v692, 7
        %v694 = vsub.s32 0, %v693
        %v695 = vrot.slane %v690, %v694
        %v697 = vpack.i.b16 %v680, %v680
        %v699 = vlaneseq
        %v700 = vshrl.u32 %v699, 7
        %v701 = vsub.s32 0, %v700
        %v702 = vrot.slane %v697, %v701
        %v704 = vpack.i.b16 %v684, %v684
        %v706 = vlaneseq
        %v707 = vshrl.u32 %v706, 7
        %v708 = vsub.s32 0, %v707
        %v709 = vrot.slane %v704, %v708
        %v711 = vpack.i.b16 %v688, %v688
        %v713 = vlaneseq
        %v714 = vshrl.u32 %v713, 7
        %v715 = vsub.s32 0, %v714
        %v716 = vrot.slane %v711, %v715
        %v717 = vmul.bf16 %v583, %v641
        %v718 = vmul.bf16 %v584, %v648
        %v719 = vmul.bf16 %v585, %v655
        %v720 = vmul.bf16 %v586, %v662
        %v721 = vmul.bf16 %v555, %v695
        %v722 = vmul.bf16 %v556, %v702
        %v723 = vmul.bf16 %v557, %v709
        %v724 = vmul.bf16 %v558, %v716
        %v725 = vpack.c.bf16 %v514, %v513
        %v726 = vpack.c.bf16 %v516, %v515
        %v727 = vpack.c.bf16 %v518, %v517
        %v728 = vpack.c.bf16 %v520, %v519
        %v729 = vpack.c.bf16 %v522, %v521
        %v730 = vpack.c.bf16 %v524, %v523
        %v731 = vpack.c.bf16 %v526, %v525
        %v732 = vpack.c.bf16 %v528, %v527
        %741 = vrot.lane.b32.xlu0 %v725, 64
        %v742 = vpop.permute.xlu0 %741
        %743 = vrot.lane.b32.xlu0 %v726, 64
        %v744 = vpop.permute.xlu0 %743
        %745 = vrot.lane.b32.xlu0 %v727, 64
        %v746 = vpop.permute.xlu0 %745
        %747 = vrot.lane.b32.xlu0 %v728, 64
        %v748 = vpop.permute.xlu0 %747
        %749 = vrot.lane.b32.xlu0 %v729, 64
        %v750 = vpop.permute.xlu0 %749
        %751 = vrot.lane.b32.xlu0 %v730, 64
        %v752 = vpop.permute.xlu0 %751
        %753 = vrot.lane.b32.xlu0 %v731, 64
        %v754 = vpop.permute.xlu0 %753
        %755 = vrot.lane.b32.xlu0 %v732, 64
        %v756 = vpop.permute.xlu0 %755
        %vm757 = vcmask 523264
        %v759 = vsel %vm757, %v742, 0
        %v762 = vsel %vm757, %v744, 0
        %v765 = vsel %vm757, %v746, 0
        %v768 = vsel %vm757, %v748, 0
        %v771 = vsel %vm757, %v750, 0
        %v774 = vsel %vm757, %v752, 0
        %v777 = vsel %vm757, %v754, 0
        %v780 = vsel %vm757, %v756, 0
        %782 = vmatprep.subr.bf16.mxu0 0
        %783 = vmatpush1.bf16.msra.mxu0 %v721
        %784 = vmatprep.subr.bf16.mxu0 0
        %785 = vmatpush1.bf16.msra.mxu0 %v722
        %786 = vmatprep.subr.bf16.mxu0 0
        %787 = vmatpush1.bf16.msra.mxu0 %v723
        %788 = vmatprep.subr.bf16.mxu0 0
        %789 = vmatpush1.bf16.msra.mxu0 %v724
        %790 = vmatprep.subr.bf16.mxu0 0
        %791 = vmatpush1.bf16.msra.mxu0 0
        %792 = vmatprep.subr.bf16.mxu0 0
        %793 = vmatpush1.bf16.msra.mxu0 0
        %794 = vmatprep.subr.bf16.mxu0 0
        %795 = vmatpush1.bf16.msra.mxu0 0
        %796 = vmatprep.subr.bf16.mxu0 0
        %797 = vmatpush1.bf16.msra.mxu0 0
        %798 = vmatprep.subr.bf16.mxu0 0
        %799 = vmatpush1.bf16.msra.mxu0 0
        %800 = vmatprep.subr.bf16.mxu0 0
        %801 = vmatpush1.bf16.msra.mxu0 0
        %802 = vmatprep.subr.bf16.mxu0 0
        %803 = vmatpush1.bf16.msra.mxu0 0
        %804 = vmatprep.subr.bf16.mxu0 0
        %805 = vmatpush1.bf16.msra.mxu0 0
        %806 = vmatprep.subr.bf16.mxu0 0
        %807 = vmatpush1.bf16.msra.mxu0 0
        %808 = vmatprep.subr.bf16.mxu0 0
        %809 = vmatpush1.bf16.msra.mxu0 0
        %810 = vmatprep.subr.bf16.mxu0 0
        %811 = vmatpush1.bf16.msra.mxu0 0
        %812 = vmatprep.subr.bf16.mxu0 0
        %813 = vmatpush1.bf16.msra.mxu0 0
        %814 = vmatprep.mubr.bf16.mxu0 0
        %815 = vmatmul.mubr.bf16.gmra.mrb[0].mxu0 %v759
        %v816 = vpop.f32.mrb[0].mxu0
        %v817 = vadd.f32 0.0, %v816
        %v818 = vpop.f32.mrb[0].mxu0
        %v819 = vpop.f32.mrb[0].mxu0
        %v820 = vadd.f32 0.0, %v819
        %v821 = vpop.f32.mrb[0].mxu0
        %822 = vmatprep.mubr.bf16.mxu0 0
        %823 = vmatmul.mubr.bf16.gmra.mrb[0].mxu0 %v762
        %v824 = vpop.f32.mrb[0].mxu0
        %v825 = vadd.f32 0.0, %v824
        %v826 = vpop.f32.mrb[0].mxu0
        %v827 = vpop.f32.mrb[0].mxu0
        %v828 = vadd.f32 0.0, %v827
        %v829 = vpop.f32.mrb[0].mxu0
        %830 = vmatprep.mubr.bf16.mxu0 0
        %831 = vmatmul.mubr.bf16.gmra.mrb[0].mxu0 %v765
        %v832 = vpop.f32.mrb[0].mxu0
        %v833 = vadd.f32 0.0, %v832
        %v834 = vpop.f32.mrb[0].mxu0
        %v835 = vpop.f32.mrb[0].mxu0
        %v836 = vadd.f32 0.0, %v835
        %v837 = vpop.f32.mrb[0].mxu0
        %838 = vmatprep.mubr.bf16.mxu0 0
        %839 = vmatmul.mubr.bf16.gmra.mrb[0].mxu0 %v768
        %v840 = vpop.f32.mrb[0].mxu0
        %v841 = vadd.f32 0.0, %v840
        %v842 = vpop.f32.mrb[0].mxu0
        %v843 = vpop.f32.mrb[0].mxu0
        %v844 = vadd.f32 0.0, %v843
        %v845 = vpop.f32.mrb[0].mxu0
        %846 = vmatprep.mubr.bf16.mxu0 0
        %847 = vmatmul.mubr.bf16.gmra.mrb[0].mxu0 %v771
        %v848 = vpop.f32.mrb[0].mxu0
        %v849 = vadd.f32 0.0, %v848
        %v850 = vpop.f32.mrb[0].mxu0
        %v851 = vpop.f32.mrb[0].mxu0
        %v852 = vadd.f32 0.0, %v851
        %v853 = vpop.f32.mrb[0].mxu0
        %854 = vmatprep.mubr.bf16.mxu0 0
        %855 = vmatmul.mubr.bf16.gmra.mrb[0].mxu0 %v774
        %v856 = vpop.f32.mrb[0].mxu0
        %v857 = vadd.f32 0.0, %v856
        %v858 = vpop.f32.mrb[0].mxu0
        %v859 = vpop.f32.mrb[0].mxu0
        %v860 = vadd.f32 0.0, %v859
        %v861 = vpop.f32.mrb[0].mxu0
        %862 = vmatprep.mubr.bf16.mxu0 0
        %863 = vmatmul.mubr.bf16.gmra.mrb[0].mxu0 %v777
        %v864 = vpop.f32.mrb[0].mxu0
        %v865 = vadd.f32 0.0, %v864
        %v866 = vpop.f32.mrb[0].mxu0
        %v867 = vpop.f32.mrb[0].mxu0
        %v868 = vadd.f32 0.0, %v867
        %v869 = vpop.f32.mrb[0].mxu0
        %870 = vmatprep.mubr.bf16.mxu0 0
        %871 = vmatmul.mubr.bf16.gmra.mrb[0].mxu0 %v780
        %v872 = vpop.f32.mrb[0].mxu0
        %v873 = vadd.f32 0.0, %v872
        %v874 = vpop.f32.mrb[0].mxu0
        %v875 = vpop.f32.mrb[0].mxu0
        %v876 = vadd.f32 0.0, %v875
        %v877 = vpop.f32.mrb[0].mxu0
        %878 = vdwg.mxu0
        %v880 = vsel %vm757, %v725, 0
        %v883 = vsel %vm757, %v726, 0
        %v886 = vsel %vm757, %v727, 0
        %v889 = vsel %vm757, %v728, 0
        %v892 = vsel %vm757, %v729, 0
        %v895 = vsel %vm757, %v730, 0
        %v898 = vsel %vm757, %v731, 0
        %v901 = vsel %vm757, %v732, 0
        %903 = vmatprep.subr.bf16.mxu0 0
        %904 = vmatpush1.bf16.msra.mxu0 %v717
        %905 = vmatprep.subr.bf16.mxu0 0
        %906 = vmatpush1.bf16.msra.mxu0 %v718
        %907 = vmatprep.subr.bf16.mxu0 0
        %908 = vmatpush1.bf16.msra.mxu0 %v719
        %909 = vmatprep.subr.bf16.mxu0 0
        %910 = vmatpush1.bf16.msra.mxu0 %v720
        %911 = vmatprep.subr.bf16.mxu0 0
        %912 = vmatpush1.bf16.msra.mxu0 0
        %913 = vmatprep.subr.bf16.mxu0 0
        %914 = vmatpush1.bf16.msra.mxu0 0
        %915 = vmatprep.subr.bf16.mxu0 0
        %916 = vmatpush1.bf16.msra.mxu0 0
        %917 = vmatprep.subr.bf16.mxu0 0
        %918 = vmatpush1.bf16.msra.mxu0 0
        %919 = vmatprep.subr.bf16.mxu0 0
        %920 = vmatpush1.bf16.msra.mxu0 0
        %921 = vmatprep.subr.bf16.mxu0 0
        %922 = vmatpush1.bf16.msra.mxu0 0
        %923 = vmatprep.subr.bf16.mxu0 0
        %924 = vmatpush1.bf16.msra.mxu0 0
        %925 = vmatprep.subr.bf16.mxu0 0
        %926 = vmatpush1.bf16.msra.mxu0 0
        %927 = vmatprep.subr.bf16.mxu0 0
        %928 = vmatpush1.bf16.msra.mxu0 0
        %929 = vmatprep.subr.bf16.mxu0 0
        %930 = vmatpush1.bf16.msra.mxu0 0
        %931 = vmatprep.subr.bf16.mxu0 0
        %932 = vmatpush1.bf16.msra.mxu0 0
        %933 = vmatprep.subr.bf16.mxu0 0
        %934 = vmatpush1.bf16.msra.mxu0 0
        %935 = vmatprep.mubr.bf16.mxu0 0
        %936 = vmatmul.mubr.bf16.gmra.mrb[0].mxu0 %v880
        %v937 = vpop.f32.mrb[0].mxu0
        %v938 = vadd.f32 %v817, %v937
        %v939 = vpop.f32.mrb[0].mxu0
        %v940 = vpop.f32.mrb[0].mxu0
        %v941 = vadd.f32 %v820, %v940
        %v942 = vpop.f32.mrb[0].mxu0
        %943 = vmatprep.mubr.bf16.mxu0 0
        %944 = vmatmul.mubr.bf16.gmra.mrb[0].mxu0 %v883
        %v945 = vpop.f32.mrb[0].mxu0
        %v946 = vadd.f32 %v825, %v945
        %v947 = vpop.f32.mrb[0].mxu0
        %v948 = vpop.f32.mrb[0].mxu0
        %v949 = vadd.f32 %v828, %v948
        %v950 = vpop.f32.mrb[0].mxu0
        %951 = vmatprep.mubr.bf16.mxu0 0
        %952 = vmatmul.mubr.bf16.gmra.mrb[0].mxu0 %v886
        %v953 = vpop.f32.mrb[0].mxu0
        %v954 = vadd.f32 %v833, %v953
        %v955 = vpop.f32.mrb[0].mxu0
        %v956 = vpop.f32.mrb[0].mxu0
        %v957 = vadd.f32 %v836, %v956
        %v958 = vpop.f32.mrb[0].mxu0
        %959 = vmatprep.mubr.bf16.mxu0 0
        %960 = vmatmul.mubr.bf16.gmra.mrb[0].mxu0 %v889
        %v961 = vpop.f32.mrb[0].mxu0
        %v962 = vadd.f32 %v841, %v961
        %v963 = vpop.f32.mrb[0].mxu0
        %v964 = vpop.f32.mrb[0].mxu0
        %v965 = vadd.f32 %v844, %v964
        %v966 = vpop.f32.mrb[0].mxu0
        %967 = vmatprep.mubr.bf16.mxu0 0
        %968 = vmatmul.mubr.bf16.gmra.mrb[0].mxu0 %v892
        %v969 = vpop.f32.mrb[0].mxu0
        %v970 = vadd.f32 %v849, %v969
        %v971 = vpop.f32.mrb[0].mxu0
        %v972 = vpop.f32.mrb[0].mxu0
        %v973 = vadd.f32 %v852, %v972
        %v974 = vpop.f32.mrb[0].mxu0
        %975 = vmatprep.mubr.bf16.mxu0 0
        %976 = vmatmul.mubr.bf16.gmra.mrb[0].mxu0 %v895
        %v977 = vpop.f32.mrb[0].mxu0
        %v978 = vadd.f32 %v857, %v977
        %v979 = vpop.f32.mrb[0].mxu0
        %v980 = vpop.f32.mrb[0].mxu0
        %v981 = vadd.f32 %v860, %v980
        %v982 = vpop.f32.mrb[0].mxu0
        %983 = vmatprep.mubr.bf16.mxu0 0
        %984 = vmatmul.mubr.bf16.gmra.mrb[0].mxu0 %v898
        %v985 = vpop.f32.mrb[0].mxu0
        %v986 = vadd.f32 %v865, %v985
        %v987 = vpop.f32.mrb[0].mxu0
        %v988 = vpop.f32.mrb[0].mxu0
        %v989 = vadd.f32 %v868, %v988
        %v990 = vpop.f32.mrb[0].mxu0
        %991 = vmatprep.mubr.bf16.mxu0 0
        %992 = vmatmul.mubr.bf16.gmra.mrb[0].mxu0 %v901
        %v993 = vpop.f32.mrb[0].mxu0
        %v994 = vadd.f32 %v873, %v993
        %v995 = vpop.f32.mrb[0].mxu0
        %v996 = vpop.f32.mrb[0].mxu0
        %v997 = vadd.f32 %v876, %v996
        %v998 = vpop.f32.mrb[0].mxu0
        %999 = vdwg.mxu0
        %v1000 = vld [vmem:[%s463] sm:$0x1]
        %v1002 = vlaneseq
        %v1003 = vshrl.u32 %v1002, 7
        %v1004 = vsub.s32 0, %v1003
        %v1005 = vrot.slane %v1000, %v1004
        %v1007 = vadd.f32 %v938, %v1005
        %v1008 = vadd.f32 %v941, %v1005
        %v1009 = vadd.f32 %v946, %v1005
        %v1010 = vadd.f32 %v949, %v1005
        %v1011 = vadd.f32 %v954, %v1005
        %v1012 = vadd.f32 %v957, %v1005
        %v1013 = vadd.f32 %v962, %v1005
        %v1014 = vadd.f32 %v965, %v1005
        %v1015 = vadd.f32 %v970, %v1005
        %v1016 = vadd.f32 %v973, %v1005
        %v1017 = vadd.f32 %v978, %v1005
        %v1018 = vadd.f32 %v981, %v1005
        %v1019 = vadd.f32 %v986, %v1005
        %v1020 = vadd.f32 %v989, %v1005
        %v1021 = vadd.f32 %v994, %v1005
        %v1022 = vadd.f32 %v997, %v1005
        %v1023 = vld [vmem:[%s401] sm:$0xf]
        %v1024 = vld [vmem:[%s401 + $0x4] sm:$0xf]
        %v1025 = vld [vmem:[%s401 + $0x8] sm:$0xf]
        %v1026 = vld [vmem:[%s401 + $0xc] sm:$0xf]
        %v1027 = vld [vmem:[%s401 + $0x10] sm:$0xf]
        %v1028 = vld [vmem:[%s401 + $0x14] sm:$0xf]
        %v1029 = vld [vmem:[%s401 + $0x18] sm:$0xf]
        %v1030 = vld [vmem:[%s401 + $0x1c] sm:$0xf]
        %v1031 = vld [vmem:[%s401 + $0x20] sm:$0xf]
        %v1032 = vld [vmem:[%s401 + $0x24] sm:$0xf]
        %v1033 = vld [vmem:[%s401 + $0x28] sm:$0xf]
        %v1034 = vld [vmem:[%s401 + $0x2c] sm:$0xf]
        %v1035 = vld [vmem:[%s401 + $0x30] sm:$0xf]
        %v1036 = vld [vmem:[%s401 + $0x34] sm:$0xf]
        %v1037 = vld [vmem:[%s401 + $0x38] sm:$0xf]
        %v1038 = vld [vmem:[%s401 + $0x3c] sm:$0xf]
        %v1055 = vunpack.c.l.b16 %v1023
        %v1056 = vunpack.c.l.b16 %v1024
        %v1057 = vunpack.c.l.b16 %v1025
        %v1058 = vunpack.c.l.b16 %v1026
        %v1059 = vunpack.c.l.b16 %v1027
        %v1060 = vunpack.c.l.b16 %v1028
        %v1061 = vunpack.c.l.b16 %v1029
        %v1062 = vunpack.c.l.b16 %v1030
        %v1063 = vunpack.c.l.b16 %v1031
        %v1064 = vunpack.c.l.b16 %v1032
        %v1065 = vunpack.c.l.b16 %v1033
        %v1066 = vunpack.c.l.b16 %v1034
        %v1067 = vunpack.c.l.b16 %v1035
        %v1068 = vunpack.c.l.b16 %v1036
        %v1069 = vunpack.c.l.b16 %v1037
        %v1070 = vunpack.c.l.b16 %v1038
        %v1071 = vpack.c.b16 %v1056, %v1055
        %v1072 = vpack.c.b16 %v1058, %v1057
        %v1073 = vpack.c.b16 %v1060, %v1059
        %v1074 = vpack.c.b16 %v1062, %v1061
        %v1075 = vpack.c.b16 %v1064, %v1063
        %v1076 = vpack.c.b16 %v1066, %v1065
        %v1077 = vpack.c.b16 %v1068, %v1067
        %v1078 = vpack.c.b16 %v1070, %v1069
        %1087 = vmatprep.subr.bf16.mxu0 0
        %1088 = vmatpush1.bf16.msra.mxu0 %v1071
        %1089 = vmatprep.subr.bf16.mxu0 0
        %1090 = vmatpush1.bf16.msra.mxu0 %v1072
        %1091 = vmatprep.subr.bf16.mxu0 0
        %1092 = vmatpush1.bf16.msra.mxu0 %v1073
        %1093 = vmatprep.subr.bf16.mxu0 0
        %1094 = vmatpush1.bf16.msra.mxu0 %v1074
        %1095 = vmatprep.subr.bf16.mxu0 0
        %1096 = vmatpush1.bf16.msra.mxu0 %v1075
        %1097 = vmatprep.subr.bf16.mxu0 0
        %1098 = vmatpush1.bf16.msra.mxu0 %v1076
        %1099 = vmatprep.subr.bf16.mxu0 0
        %1100 = vmatpush1.bf16.msra.mxu0 %v1077
        %1101 = vmatprep.subr.bf16.mxu0 0
        %1102 = vmatpush1.bf16.msra.mxu0 %v1078
        %1103 = vmatprep.subr.bf16.mxu0 0
        %1104 = vmatpush1.bf16.msra.mxu0 0
        %1105 = vmatprep.subr.bf16.mxu0 0
        %1106 = vmatpush1.bf16.msra.mxu0 0
        %1107 = vmatprep.subr.bf16.mxu0 0
        %1108 = vmatpush1.bf16.msra.mxu0 0
        %1109 = vmatprep.subr.bf16.mxu0 0
        %1110 = vmatpush1.bf16.msra.mxu0 0
        %1111 = vmatprep.subr.bf16.mxu0 0
        %1112 = vmatpush1.bf16.msra.mxu0 0
        %1113 = vmatprep.subr.bf16.mxu0 0
        %1114 = vmatpush1.bf16.msra.mxu0 0
        %1115 = vmatprep.subr.bf16.mxu0 0
        %1116 = vmatpush1.bf16.msra.mxu0 0
        %1117 = vmatprep.subr.bf16.mxu0 0
        %1118 = vmatpush1.bf16.msra.mxu0 0
        %1119 = vmatprep.mubr.bf16.mxu0 0
        %1120 = vmatmul.mubr.bf16.gmra.mrb[0].mxu0 %v725
        %v1121 = vpop.f32.mrb[0].mxu0
        %v1122 = vadd.f32 0.0, %v1121
        %v1123 = vpop.f32.mrb[0].mxu0
        %v1124 = vpop.f32.mrb[0].mxu0
        %v1125 = vadd.f32 0.0, %v1124
        %v1126 = vpop.f32.mrb[0].mxu0
        %1127 = vmatprep.mubr.bf16.mxu0 0
        %1128 = vmatmul.mubr.bf16.gmra.mrb[0].mxu0 %v726
        %v1129 = vpop.f32.mrb[0].mxu0
        %v1130 = vadd.f32 0.0, %v1129
        %v1131 = vpop.f32.mrb[0].mxu0
        %v1132 = vpop.f32.mrb[0].mxu0
        %v1133 = vadd.f32 0.0, %v1132
        %v1134 = vpop.f32.mrb[0].mxu0
        %1135 = vmatprep.mubr.bf16.mxu0 0
        %1136 = vmatmul.mubr.bf16.gmra.mrb[0].mxu0 %v727
        %v1137 = vpop.f32.mrb[0].mxu0
        %v1138 = vadd.f32 0.0, %v1137
        %v1139 = vpop.f32.mrb[0].mxu0
        %v1140 = vpop.f32.mrb[0].mxu0
        %v1141 = vadd.f32 0.0, %v1140
        %v1142 = vpop.f32.mrb[0].mxu0
        %1143 = vmatprep.mubr.bf16.mxu0 0
        %1144 = vmatmul.mubr.bf16.gmra.mrb[0].mxu0 %v728
        %v1145 = vpop.f32.mrb[0].mxu0
        %v1146 = vadd.f32 0.0, %v1145
        %v1147 = vpop.f32.mrb[0].mxu0
        %v1148 = vpop.f32.mrb[0].mxu0
        %v1149 = vadd.f32 0.0, %v1148
        %v1150 = vpop.f32.mrb[0].mxu0
        %1151 = vmatprep.mubr.bf16.mxu0 0
        %1152 = vmatmul.mubr.bf16.gmra.mrb[0].mxu0 %v729
        %v1153 = vpop.f32.mrb[0].mxu0
        %v1154 = vadd.f32 0.0, %v1153
        %v1155 = vpop.f32.mrb[0].mxu0
        %v1156 = vpop.f32.mrb[0].mxu0
        %v1157 = vadd.f32 0.0, %v1156
        %v1158 = vpop.f32.mrb[0].mxu0
        %1159 = vmatprep.mubr.bf16.mxu0 0
        %1160 = vmatmul.mubr.bf16.gmra.mrb[0].mxu0 %v730
        %v1161 = vpop.f32.mrb[0].mxu0
        %v1162 = vadd.f32 0.0, %v1161
        %v1163 = vpop.f32.mrb[0].mxu0
        %v1164 = vpop.f32.mrb[0].mxu0
        %v1165 = vadd.f32 0.0, %v1164
        %v1166 = vpop.f32.mrb[0].mxu0
        %1167 = vmatprep.mubr.bf16.mxu0 0
        %1168 = vmatmul.mubr.bf16.gmra.mrb[0].mxu0 %v731
        %v1169 = vpop.f32.mrb[0].mxu0
        %v1170 = vadd.f32 0.0, %v1169
        %v1171 = vpop.f32.mrb[0].mxu0
        %v1172 = vpop.f32.mrb[0].mxu0
        %v1173 = vadd.f32 0.0, %v1172
        %v1174 = vpop.f32.mrb[0].mxu0
        %1175 = vmatprep.mubr.bf16.mxu0 0
        %1176 = vmatmul.mubr.bf16.gmra.mrb[0].mxu0 %v732
        %v1177 = vpop.f32.mrb[0].mxu0
        %v1178 = vadd.f32 0.0, %v1177
        %v1179 = vpop.f32.mrb[0].mxu0
        %v1180 = vpop.f32.mrb[0].mxu0
        %v1181 = vadd.f32 0.0, %v1180
        %v1182 = vpop.f32.mrb[0].mxu0
        %1183 = vdwg.mxu0
        %v1184 = vpack.c.bf16 %v1125, %v1122
        %v1185 = vpack.c.bf16 %v1133, %v1130
        %v1186 = vpack.c.bf16 %v1141, %v1138
        %v1187 = vpack.c.bf16 %v1149, %v1146
        %v1188 = vpack.c.bf16 %v1157, %v1154
        %v1189 = vpack.c.bf16 %v1165, %v1162
        %v1190 = vpack.c.bf16 %v1173, %v1170
        %v1191 = vpack.c.bf16 %v1181, %v1178
        %v1192 = vld [vmem:[%s468] sm:$0xf]
        %v1193 = vld [vmem:[%s468 + $0x4] sm:$0xf]
        %v1194 = vld [vmem:[%s468 + $0x8] sm:$0xf]
        %v1195 = vld [vmem:[%s468 + $0xc] sm:$0xf]
        %v1200 = vunpack.c.l.b16 %v1192
        %v1201 = vunpack.c.l.b16 %v1193
        %v1202 = vunpack.c.l.b16 %v1194
        %v1203 = vunpack.c.l.b16 %v1195
        %v1204 = vpack.c.b16 %v1201, %v1200
        %v1205 = vpack.c.b16 %v1203, %v1202
        %vm1208 = vcmask 261120
        %v1210 = vsel %vm1208, %v1184, 0
        %v1213 = vsel %vm1208, %v1185, 0
        %v1216 = vsel %vm1208, %v1186, 0
        %v1219 = vsel %vm1208, %v1187, 0
        %v1222 = vsel %vm1208, %v1188, 0
        %v1225 = vsel %vm1208, %v1189, 0
        %v1228 = vsel %vm1208, %v1190, 0
        %v1231 = vsel %vm1208, %v1191, 0
        %1233 = vmatprep.subr.bf16.mxu0 0
        %1234 = vmatpush1.bf16.msra.mxu0 %v1204
        %1235 = vmatprep.subr.bf16.mxu0 0
        %1236 = vmatpush1.bf16.msra.mxu0 %v1205
        %1237 = vmatprep.subr.bf16.mxu0 0
        %1238 = vmatpush1.bf16.msra.mxu0 0
        %1239 = vmatprep.subr.bf16.mxu0 0
        %1240 = vmatpush1.bf16.msra.mxu0 0
        %1241 = vmatprep.subr.bf16.mxu0 0
        %1242 = vmatpush1.bf16.msra.mxu0 0
        %1243 = vmatprep.subr.bf16.mxu0 0
        %1244 = vmatpush1.bf16.msra.mxu0 0
        %1245 = vmatprep.subr.bf16.mxu0 0
        %1246 = vmatpush1.bf16.msra.mxu0 0
        %1247 = vmatprep.subr.bf16.mxu0 0
        %1248 = vmatpush1.bf16.msra.mxu0 0
        %1249 = vmatprep.subr.bf16.mxu0 0
        %1250 = vmatpush1.bf16.msra.mxu0 0
        %1251 = vmatprep.subr.bf16.mxu0 0
        %1252 = vmatpush1.bf16.msra.mxu0 0
        %1253 = vmatprep.subr.bf16.mxu0 0
        %1254 = vmatpush1.bf16.msra.mxu0 0
        %1255 = vmatprep.subr.bf16.mxu0 0
        %1256 = vmatpush1.bf16.msra.mxu0 0
        %1257 = vmatprep.subr.bf16.mxu0 0
        %1258 = vmatpush1.bf16.msra.mxu0 0
        %1259 = vmatprep.subr.bf16.mxu0 0
        %1260 = vmatpush1.bf16.msra.mxu0 0
        %1261 = vmatprep.subr.bf16.mxu0 0
        %1262 = vmatpush1.bf16.msra.mxu0 0
        %1263 = vmatprep.subr.bf16.mxu0 0
        %1264 = vmatpush1.bf16.msra.mxu0 0
        %1265 = vmatprep.mubr.bf16.mxu0 0
        %1266 = vmatmul.mubr.bf16.gmra.mrb[0].mxu0 %v1210
        %v1267 = vpop.f32.mrb[0].mxu0
        %v1268 = vadd.f32 0.0, %v1267
        %v1269 = vpop.f32.mrb[0].mxu0
        %v1270 = vpop.f32.mrb[0].mxu0
        %v1271 = vadd.f32 0.0, %v1270
        %v1272 = vpop.f32.mrb[0].mxu0
        %1273 = vmatprep.mubr.bf16.mxu0 0
        %1274 = vmatmul.mubr.bf16.gmra.mrb[0].mxu0 %v1213
        %v1275 = vpop.f32.mrb[0].mxu0
        %v1276 = vadd.f32 0.0, %v1275
        %v1277 = vpop.f32.mrb[0].mxu0
        %v1278 = vpop.f32.mrb[0].mxu0
        %v1279 = vadd.f32 0.0, %v1278
        %v1280 = vpop.f32.mrb[0].mxu0
        %1281 = vmatprep.mubr.bf16.mxu0 0
        %1282 = vmatmul.mubr.bf16.gmra.mrb[0].mxu0 %v1216
        %v1283 = vpop.f32.mrb[0].mxu0
        %v1284 = vadd.f32 0.0, %v1283
        %v1285 = vpop.f32.mrb[0].mxu0
        %v1286 = vpop.f32.mrb[0].mxu0
        %v1287 = vadd.f32 0.0, %v1286
        %v1288 = vpop.f32.mrb[0].mxu0
        %1289 = vmatprep.mubr.bf16.mxu0 0
        %1290 = vmatmul.mubr.bf16.gmra.mrb[0].mxu0 %v1219
        %v1291 = vpop.f32.mrb[0].mxu0
        %v1292 = vadd.f32 0.0, %v1291
        %v1293 = vpop.f32.mrb[0].mxu0
        %v1294 = vpop.f32.mrb[0].mxu0
        %v1295 = vadd.f32 0.0, %v1294
        %v1296 = vpop.f32.mrb[0].mxu0
        %1297 = vmatprep.mubr.bf16.mxu0 0
        %1298 = vmatmul.mubr.bf16.gmra.mrb[0].mxu0 %v1222
        %v1299 = vpop.f32.mrb[0].mxu0
        %v1300 = vadd.f32 0.0, %v1299
        %v1301 = vpop.f32.mrb[0].mxu0
        %v1302 = vpop.f32.mrb[0].mxu0
        %v1303 = vadd.f32 0.0, %v1302
        %v1304 = vpop.f32.mrb[0].mxu0
        %1305 = vmatprep.mubr.bf16.mxu0 0
        %1306 = vmatmul.mubr.bf16.gmra.mrb[0].mxu0 %v1225
        %v1307 = vpop.f32.mrb[0].mxu0
        %v1308 = vadd.f32 0.0, %v1307
        %v1309 = vpop.f32.mrb[0].mxu0
        %v1310 = vpop.f32.mrb[0].mxu0
        %v1311 = vadd.f32 0.0, %v1310
        %v1312 = vpop.f32.mrb[0].mxu0
        %1313 = vmatprep.mubr.bf16.mxu0 0
        %1314 = vmatmul.mubr.bf16.gmra.mrb[0].mxu0 %v1228
        %v1315 = vpop.f32.mrb[0].mxu0
        %v1316 = vadd.f32 0.0, %v1315
        %v1317 = vpop.f32.mrb[0].mxu0
        %v1318 = vpop.f32.mrb[0].mxu0
        %v1319 = vadd.f32 0.0, %v1318
        %v1320 = vpop.f32.mrb[0].mxu0
        %1321 = vmatprep.mubr.bf16.mxu0 0
        %1322 = vmatmul.mubr.bf16.gmra.mrb[0].mxu0 %v1231
        %v1323 = vpop.f32.mrb[0].mxu0
        %v1324 = vadd.f32 0.0, %v1323
        %v1325 = vpop.f32.mrb[0].mxu0
        %v1326 = vpop.f32.mrb[0].mxu0
        %v1327 = vadd.f32 0.0, %v1326
        %v1328 = vpop.f32.mrb[0].mxu0
        %1329 = vdwg.mxu0
        %v1330 = vadd.f32 %v1007, %v1268
        %v1331 = vadd.f32 %v1008, %v1271
        %v1332 = vadd.f32 %v1009, %v1276
        %v1333 = vadd.f32 %v1010, %v1279
        %v1334 = vadd.f32 %v1011, %v1284
        %v1335 = vadd.f32 %v1012, %v1287
        %v1336 = vadd.f32 %v1013, %v1292
        %v1337 = vadd.f32 %v1014, %v1295
        %v1338 = vadd.f32 %v1015, %v1300
        %v1339 = vadd.f32 %v1016, %v1303
        %v1340 = vadd.f32 %v1017, %v1308
        %v1341 = vadd.f32 %v1018, %v1311
        %v1342 = vadd.f32 %v1019, %v1316
        %v1343 = vadd.f32 %v1020, %v1319
        %v1344 = vadd.f32 %v1021, %v1324
        %v1345 = vadd.f32 %v1022, %v1327
        %v1346 = vmax.f32 %v1330, 0.0
        %v1347 = vmax.f32 %v1331, 0.0
        %v1348 = vmax.f32 %v1332, 0.0
        %v1349 = vmax.f32 %v1333, 0.0
        %v1350 = vmax.f32 %v1334, 0.0
        %v1351 = vmax.f32 %v1335, 0.0
        %v1352 = vmax.f32 %v1336, 0.0
        %v1353 = vmax.f32 %v1337, 0.0
        %v1354 = vmax.f32 %v1338, 0.0
        %v1355 = vmax.f32 %v1339, 0.0
        %v1356 = vmax.f32 %v1340, 0.0
        %v1357 = vmax.f32 %v1341, 0.0
        %v1358 = vmax.f32 %v1342, 0.0
        %v1359 = vmax.f32 %v1343, 0.0
        %v1360 = vmax.f32 %v1344, 0.0
        %v1361 = vmax.f32 %v1345, 0.0
        %s1362 = scalar_lea.vmem %s459, 16
        %v1363 = vld [vmem:[%s1362] sm:$0xff]
        %v1364 = vld [vmem:[%s1362 + $0x8] sm:$0xff]
        %v1365 = vunpack.c.0.s8 %v1363
        %v1366 = vunpack.c.1.s8 %v1363
        %v1367 = vunpack.c.2.s8 %v1363
        %v1368 = vunpack.c.3.s8 %v1363
        %v1369 = vunpack.c.0.s8 %v1364
        %v1370 = vunpack.c.1.s8 %v1364
        %v1371 = vunpack.c.2.s8 %v1364
        %v1372 = vunpack.c.3.s8 %v1364
        %v1373 = vshra.s32 %v1365, 4
        %v1374 = vshra.s32 %v1366, 4
        %v1375 = vshra.s32 %v1367, 4
        %v1376 = vshra.s32 %v1368, 4
        %v1377 = vshra.s32 %v1369, 4
        %v1378 = vshra.s32 %v1370, 4
        %v1379 = vshra.s32 %v1371, 4
        %v1380 = vshra.s32 %v1372, 4
        %v1381 = vcvt.s32.f32 %v1373
        %v1382 = vcvt.s32.f32 %v1374
        %v1383 = vcvt.s32.f32 %v1375
        %v1384 = vcvt.s32.f32 %v1376
        %v1385 = vcvt.s32.f32 %v1377
        %v1386 = vcvt.s32.f32 %v1378
        %v1387 = vcvt.s32.f32 %v1379
        %v1388 = vcvt.s32.f32 %v1380
        %v1389 = vpack.c.bf16 %v1382, %v1381
        %v1390 = vpack.c.bf16 %v1384, %v1383
        %v1391 = vpack.c.bf16 %v1386, %v1385
        %v1392 = vpack.c.bf16 %v1388, %v1387
        %v1393 = vand.u32 %v1365, 15
        %v1394 = vand.u32 %v1366, 15
        %v1395 = vand.u32 %v1367, 15
        %v1396 = vand.u32 %v1368, 15
        %v1397 = vand.u32 %v1369, 15
        %v1398 = vand.u32 %v1370, 15
        %v1399 = vand.u32 %v1371, 15
        %v1400 = vand.u32 %v1372, 15
        %v1401 = vsub.s32 %v1393, 8
        %v1402 = vsub.s32 %v1394, 8
        %v1403 = vsub.s32 %v1395, 8
        %v1404 = vsub.s32 %v1396, 8
        %v1405 = vsub.s32 %v1397, 8
        %v1406 = vsub.s32 %v1398, 8
        %v1407 = vsub.s32 %v1399, 8
        %v1408 = vsub.s32 %v1400, 8
        %v1409 = vcvt.s32.f32 %v1401
        %v1410 = vcvt.s32.f32 %v1402
        %v1411 = vcvt.s32.f32 %v1403
        %v1412 = vcvt.s32.f32 %v1404
        %v1413 = vcvt.s32.f32 %v1405
        %v1414 = vcvt.s32.f32 %v1406
        %v1415 = vcvt.s32.f32 %v1407
        %v1416 = vcvt.s32.f32 %v1408
        %v1417 = vpack.c.bf16 %v1410, %v1409
        %v1418 = vpack.c.bf16 %v1412, %v1411
        %v1419 = vpack.c.bf16 %v1414, %v1413
        %v1420 = vpack.c.bf16 %v1416, %v1415
        %s1421 = scalar_lea.vmem %s392, 4 [#allocation5]
        %v1422 = vld [vmem:[%s1421] sm:$0xf]
        %v1425 = vunpack.c.l.s4 1966171168
        %v1426 = vunpack.c.0.s8 %v1425
        %v1427 = vlaneseq
        %v1428 = vshrl.u32 %v1427, 7
        %v1429 = vsub.s32 %v1426, %v1428
        %v1430 = vrot.slane %v1422, %v1429
        %v1431 = vcombine.high %v1430, %v1430
        %v1433 = vunpack.c.l.s4 1966171168
        %v1434 = vunpack.c.0.s8 %v1433
        %v1435 = vlaneseq
        %v1436 = vshrl.u32 %v1435, 7
        %v1437 = vsub.s32 %v1434, %v1436
        %v1438 = vrot.slane %v1430, %v1437
        %v1440 = vunpack.c.l.s4 1966171168
        %v1441 = vunpack.c.0.s8 %v1440
        %v1442 = vlaneseq
        %v1443 = vshrl.u32 %v1442, 7
        %v1444 = vsub.s32 %v1441, %v1443
        %v1445 = vrot.slane %v1431, %v1444
        %v1446 = vunpack.i.l.s16 %v1438
        %v1447 = vunpack.i.h.s16 %v1438
        %v1448 = vunpack.i.l.s16 %v1445
        %v1449 = vunpack.i.h.s16 %v1445
        %v1450 = vpack.i.b16 %v1446, %v1446
        %v1451 = vpack.i.b16 %v1447, %v1447
        %v1452 = vpack.i.b16 %v1448, %v1448
        %v1453 = vpack.i.b16 %v1449, %v1449
        %v1454 = vlaneseq
        %v1455 = vshrl.u32 %v1454, 7
        %v1456 = vsub.s32 0, %v1455
        %v1457 = vrot.slane %v1450, %v1456
        %v1458 = vlaneseq
        %v1459 = vshrl.u32 %v1458, 7
        %v1460 = vsub.s32 0, %v1459
        %v1461 = vrot.slane %v1451, %v1460
        %v1462 = vlaneseq
        %v1463 = vshrl.u32 %v1462, 7
        %v1464 = vsub.s32 0, %v1463
        %v1465 = vrot.slane %v1452, %v1464
        %v1466 = vlaneseq
        %v1467 = vshrl.u32 %v1466, 7
        %v1468 = vsub.s32 0, %v1467
        %v1469 = vrot.slane %v1453, %v1468
        %v1471 = vpack.i.b16 %v1457, %v1457
        %v1473 = vlaneseq
        %v1474 = vshrl.u32 %v1473, 7
        %v1475 = vsub.s32 0, %v1474
        %v1476 = vrot.slane %v1471, %v1475
        %v1478 = vpack.i.b16 %v1461, %v1461
        %v1480 = vlaneseq
        %v1481 = vshrl.u32 %v1480, 7
        %v1482 = vsub.s32 0, %v1481
        %v1483 = vrot.slane %v1478, %v1482
        %v1485 = vpack.i.b16 %v1465, %v1465
        %v1487 = vlaneseq
        %v1488 = vshrl.u32 %v1487, 7
        %v1489 = vsub.s32 0, %v1488
        %v1490 = vrot.slane %v1485, %v1489
        %v1492 = vpack.i.b16 %v1469, %v1469
        %v1494 = vlaneseq
        %v1495 = vshrl.u32 %v1494, 7
        %v1496 = vsub.s32 0, %v1495
        %v1497 = vrot.slane %v1492, %v1496
        %v1498 = vcombine.high %v1438, %v1438
        %v1499 = vcombine.high %v1445, %v1445
        %v1500 = vunpack.i.l.s16 %v1498
        %v1501 = vunpack.i.h.s16 %v1498
        %v1502 = vunpack.i.l.s16 %v1499
        %v1503 = vunpack.i.h.s16 %v1499
        %v1504 = vpack.i.b16 %v1500, %v1500
        %v1505 = vpack.i.b16 %v1501, %v1501
        %v1506 = vpack.i.b16 %v1502, %v1502
        %v1507 = vpack.i.b16 %v1503, %v1503
        %v1508 = vlaneseq
        %v1509 = vshrl.u32 %v1508, 7
        %v1510 = vsub.s32 0, %v1509
        %v1511 = vrot.slane %v1504, %v1510
        %v1512 = vlaneseq
        %v1513 = vshrl.u32 %v1512, 7
        %v1514 = vsub.s32 0, %v1513
        %v1515 = vrot.slane %v1505, %v1514
        %v1516 = vlaneseq
        %v1517 = vshrl.u32 %v1516, 7
        %v1518 = vsub.s32 0, %v1517
        %v1519 = vrot.slane %v1506, %v1518
        %v1520 = vlaneseq
        %v1521 = vshrl.u32 %v1520, 7
        %v1522 = vsub.s32 0, %v1521
        %v1523 = vrot.slane %v1507, %v1522
        %v1525 = vpack.i.b16 %v1511, %v1511
        %v1527 = vlaneseq
        %v1528 = vshrl.u32 %v1527, 7
        %v1529 = vsub.s32 0, %v1528
        %v1530 = vrot.slane %v1525, %v1529
        %v1532 = vpack.i.b16 %v1515, %v1515
        %v1534 = vlaneseq
        %v1535 = vshrl.u32 %v1534, 7
        %v1536 = vsub.s32 0, %v1535
        %v1537 = vrot.slane %v1532, %v1536
        %v1539 = vpack.i.b16 %v1519, %v1519
        %v1541 = vlaneseq
        %v1542 = vshrl.u32 %v1541, 7
        %v1543 = vsub.s32 0, %v1542
        %v1544 = vrot.slane %v1539, %v1543
        %v1546 = vpack.i.b16 %v1523, %v1523
        %v1548 = vlaneseq
        %v1549 = vshrl.u32 %v1548, 7
        %v1550 = vsub.s32 0, %v1549
        %v1551 = vrot.slane %v1546, %v1550
        %v1552 = vmul.bf16 %v1417, %v1476
        %v1553 = vmul.bf16 %v1418, %v1483
        %v1554 = vmul.bf16 %v1419, %v1490
        %v1555 = vmul.bf16 %v1420, %v1497
        %v1556 = vmul.bf16 %v1389, %v1530
        %v1557 = vmul.bf16 %v1390, %v1537
        %v1558 = vmul.bf16 %v1391, %v1544
        %v1559 = vmul.bf16 %v1392, %v1551
        %v1560 = vpack.c.bf16 %v1347, %v1346
        %v1561 = vpack.c.bf16 %v1349, %v1348
        %v1562 = vpack.c.bf16 %v1351, %v1350
        %v1563 = vpack.c.bf16 %v1353, %v1352
        %v1564 = vpack.c.bf16 %v1355, %v1354
        %v1565 = vpack.c.bf16 %v1357, %v1356
        %v1566 = vpack.c.bf16 %v1359, %v1358
        %v1567 = vpack.c.bf16 %v1361, %v1360
        %1576 = vrot.lane.b32.xlu0 %v1560, 64
        %v1577 = vpop.permute.xlu0 %1576
        %1578 = vrot.lane.b32.xlu0 %v1561, 64
        %v1579 = vpop.permute.xlu0 %1578
        %1580 = vrot.lane.b32.xlu0 %v1562, 64
        %v1581 = vpop.permute.xlu0 %1580
        %1582 = vrot.lane.b32.xlu0 %v1563, 64
        %v1583 = vpop.permute.xlu0 %1582
        %1584 = vrot.lane.b32.xlu0 %v1564, 64
        %v1585 = vpop.permute.xlu0 %1584
        %1586 = vrot.lane.b32.xlu0 %v1565, 64
        %v1587 = vpop.permute.xlu0 %1586
        %1588 = vrot.lane.b32.xlu0 %v1566, 64
        %v1589 = vpop.permute.xlu0 %1588
        %1590 = vrot.lane.b32.xlu0 %v1567, 64
        %v1591 = vpop.permute.xlu0 %1590
        %v1593 = vsel %vm757, %v1577, 0
        %v1596 = vsel %vm757, %v1579, 0
        %v1599 = vsel %vm757, %v1581, 0
        %v1602 = vsel %vm757, %v1583, 0
        %v1605 = vsel %vm757, %v1585, 0
        %v1608 = vsel %vm757, %v1587, 0
        %v1611 = vsel %vm757, %v1589, 0
        %v1614 = vsel %vm757, %v1591, 0
        %1616 = vmatprep.subr.bf16.mxu0 0
        %1617 = vmatpush1.bf16.msra.mxu0 %v1556
        %1618 = vmatprep.subr.bf16.mxu0 0
        %1619 = vmatpush1.bf16.msra.mxu0 %v1557
        %1620 = vmatprep.subr.bf16.mxu0 0
        %1621 = vmatpush1.bf16.msra.mxu0 %v1558
        %1622 = vmatprep.subr.bf16.mxu0 0
        %1623 = vmatpush1.bf16.msra.mxu0 %v1559
        %1624 = vmatprep.subr.bf16.mxu0 0
        %1625 = vmatpush1.bf16.msra.mxu0 0
        %1626 = vmatprep.subr.bf16.mxu0 0
        %1627 = vmatpush1.bf16.msra.mxu0 0
        %1628 = vmatprep.subr.bf16.mxu0 0
        %1629 = vmatpush1.bf16.msra.mxu0 0
        %1630 = vmatprep.subr.bf16.mxu0 0
        %1631 = vmatpush1.bf16.msra.mxu0 0
        %1632 = vmatprep.subr.bf16.mxu0 0
        %1633 = vmatpush1.bf16.msra.mxu0 0
        %1634 = vmatprep.subr.bf16.mxu0 0
        %1635 = vmatpush1.bf16.msra.mxu0 0
        %1636 = vmatprep.subr.bf16.mxu0 0
        %1637 = vmatpush1.bf16.msra.mxu0 0
        %1638 = vmatprep.subr.bf16.mxu0 0
        %1639 = vmatpush1.bf16.msra.mxu0 0
        %1640 = vmatprep.subr.bf16.mxu0 0
        %1641 = vmatpush1.bf16.msra.mxu0 0
        %1642 = vmatprep.subr.bf16.mxu0 0
        %1643 = vmatpush1.bf16.msra.mxu0 0
        %1644 = vmatprep.subr.bf16.mxu0 0
        %1645 = vmatpush1.bf16.msra.mxu0 0
        %1646 = vmatprep.subr.bf16.mxu0 0
        %1647 = vmatpush1.bf16.msra.mxu0 0
        %1648 = vmatprep.mubr.bf16.mxu0 0
        %1649 = vmatmul.mubr.bf16.gmra.mrb[0].mxu0 %v1593
        %v1650 = vpop.f32.mrb[0].mxu0
        %v1651 = vadd.f32 0.0, %v1650
        %v1652 = vpop.f32.mrb[0].mxu0
        %v1653 = vpop.f32.mrb[0].mxu0
        %v1654 = vadd.f32 0.0, %v1653
        %v1655 = vpop.f32.mrb[0].mxu0
        %1656 = vmatprep.mubr.bf16.mxu0 0
        %1657 = vmatmul.mubr.bf16.gmra.mrb[0].mxu0 %v1596
        %v1658 = vpop.f32.mrb[0].mxu0
        %v1659 = vadd.f32 0.0, %v1658
        %v1660 = vpop.f32.mrb[0].mxu0
        %v1661 = vpop.f32.mrb[0].mxu0
        %v1662 = vadd.f32 0.0, %v1661
        %v1663 = vpop.f32.mrb[0].mxu0
        %1664 = vmatprep.mubr.bf16.mxu0 0
        %1665 = vmatmul.mubr.bf16.gmra.mrb[0].mxu0 %v1599
        %v1666 = vpop.f32.mrb[0].mxu0
        %v1667 = vadd.f32 0.0, %v1666
        %v1668 = vpop.f32.mrb[0].mxu0
        %v1669 = vpop.f32.mrb[0].mxu0
        %v1670 = vadd.f32 0.0, %v1669
        %v1671 = vpop.f32.mrb[0].mxu0
        %1672 = vmatprep.mubr.bf16.mxu0 0
        %1673 = vmatmul.mubr.bf16.gmra.mrb[0].mxu0 %v1602
        %v1674 = vpop.f32.mrb[0].mxu0
        %v1675 = vadd.f32 0.0, %v1674
        %v1676 = vpop.f32.mrb[0].mxu0
        %v1677 = vpop.f32.mrb[0].mxu0
        %v1678 = vadd.f32 0.0, %v1677
        %v1679 = vpop.f32.mrb[0].mxu0
        %1680 = vmatprep.mubr.bf16.mxu0 0
        %1681 = vmatmul.mubr.bf16.gmra.mrb[0].mxu0 %v1605
        %v1682 = vpop.f32.mrb[0].mxu0
        %v1683 = vadd.f32 0.0, %v1682
        %v1684 = vpop.f32.mrb[0].mxu0
        %v1685 = vpop.f32.mrb[0].mxu0
        %v1686 = vadd.f32 0.0, %v1685
        %v1687 = vpop.f32.mrb[0].mxu0
        %1688 = vmatprep.mubr.bf16.mxu0 0
        %1689 = vmatmul.mubr.bf16.gmra.mrb[0].mxu0 %v1608
        %v1690 = vpop.f32.mrb[0].mxu0
        %v1691 = vadd.f32 0.0, %v1690
        %v1692 = vpop.f32.mrb[0].mxu0
        %v1693 = vpop.f32.mrb[0].mxu0
        %v1694 = vadd.f32 0.0, %v1693
        %v1695 = vpop.f32.mrb[0].mxu0
        %1696 = vmatprep.mubr.bf16.mxu0 0
        %1697 = vmatmul.mubr.bf16.gmra.mrb[0].mxu0 %v1611
        %v1698 = vpop.f32.mrb[0].mxu0
        %v1699 = vadd.f32 0.0, %v1698
        %v1700 = vpop.f32.mrb[0].mxu0
        %v1701 = vpop.f32.mrb[0].mxu0
        %v1702 = vadd.f32 0.0, %v1701
        %v1703 = vpop.f32.mrb[0].mxu0
        %1704 = vmatprep.mubr.bf16.mxu0 0
        %1705 = vmatmul.mubr.bf16.gmra.mrb[0].mxu0 %v1614
        %v1706 = vpop.f32.mrb[0].mxu0
        %v1707 = vadd.f32 0.0, %v1706
        %v1708 = vpop.f32.mrb[0].mxu0
        %v1709 = vpop.f32.mrb[0].mxu0
        %v1710 = vadd.f32 0.0, %v1709
        %v1711 = vpop.f32.mrb[0].mxu0
        %1712 = vdwg.mxu0
        %v1714 = vsel %vm757, %v1560, 0
        %v1717 = vsel %vm757, %v1561, 0
        %v1720 = vsel %vm757, %v1562, 0
        %v1723 = vsel %vm757, %v1563, 0
        %v1726 = vsel %vm757, %v1564, 0
        %v1729 = vsel %vm757, %v1565, 0
        %v1732 = vsel %vm757, %v1566, 0
        %v1735 = vsel %vm757, %v1567, 0
        %1737 = vmatprep.subr.bf16.mxu0 0
        %1738 = vmatpush1.bf16.msra.mxu0 %v1552
        %1739 = vmatprep.subr.bf16.mxu0 0
        %1740 = vmatpush1.bf16.msra.mxu0 %v1553
        %1741 = vmatprep.subr.bf16.mxu0 0
        %1742 = vmatpush1.bf16.msra.mxu0 %v1554
        %1743 = vmatprep.subr.bf16.mxu0 0
        %1744 = vmatpush1.bf16.msra.mxu0 %v1555
        %1745 = vmatprep.subr.bf16.mxu0 0
        %1746 = vmatpush1.bf16.msra.mxu0 0
        %1747 = vmatprep.subr.bf16.mxu0 0
        %1748 = vmatpush1.bf16.msra.mxu0 0
        %1749 = vmatprep.subr.bf16.mxu0 0
        %1750 = vmatpush1.bf16.msra.mxu0 0
        %1751 = vmatprep.subr.bf16.mxu0 0
        %1752 = vmatpush1.bf16.msra.mxu0 0
        %1753 = vmatprep.subr.bf16.mxu0 0
        %1754 = vmatpush1.bf16.msra.mxu0 0
        %1755 = vmatprep.subr.bf16.mxu0 0
        %1756 = vmatpush1.bf16.msra.mxu0 0
        %1757 = vmatprep.subr.bf16.mxu0 0
        %1758 = vmatpush1.bf16.msra.mxu0 0
        %1759 = vmatprep.subr.bf16.mxu0 0
        %1760 = vmatpush1.bf16.msra.mxu0 0
        %1761 = vmatprep.subr.bf16.mxu0 0
        %1762 = vmatpush1.bf16.msra.mxu0 0
        %1763 = vmatprep.subr.bf16.mxu0 0
        %1764 = vmatpush1.bf16.msra.mxu0 0
        %1765 = vmatprep.subr.bf16.mxu0 0
        %1766 = vmatpush1.bf16.msra.mxu0 0
        %1767 = vmatprep.subr.bf16.mxu0 0
        %1768 = vmatpush1.bf16.msra.mxu0 0
        %1769 = vmatprep.mubr.bf16.mxu0 0
        %1770 = vmatmul.mubr.bf16.gmra.mrb[0].mxu0 %v1714
        %v1771 = vpop.f32.mrb[0].mxu0
        %v1772 = vadd.f32 %v1651, %v1771
        %v1773 = vpop.f32.mrb[0].mxu0
        %v1774 = vpop.f32.mrb[0].mxu0
        %v1775 = vadd.f32 %v1654, %v1774
        %v1776 = vpop.f32.mrb[0].mxu0
        %1777 = vmatprep.mubr.bf16.mxu0 0
        %1778 = vmatmul.mubr.bf16.gmra.mrb[0].mxu0 %v1717
        %v1779 = vpop.f32.mrb[0].mxu0
        %v1780 = vadd.f32 %v1659, %v1779
        %v1781 = vpop.f32.mrb[0].mxu0
        %v1782 = vpop.f32.mrb[0].mxu0
        %v1783 = vadd.f32 %v1662, %v1782
        %v1784 = vpop.f32.mrb[0].mxu0
        %1785 = vmatprep.mubr.bf16.mxu0 0
        %1786 = vmatmul.mubr.bf16.gmra.mrb[0].mxu0 %v1720
        %v1787 = vpop.f32.mrb[0].mxu0
        %v1788 = vadd.f32 %v1667, %v1787
        %v1789 = vpop.f32.mrb[0].mxu0
        %v1790 = vpop.f32.mrb[0].mxu0
        %v1791 = vadd.f32 %v1670, %v1790
        %v1792 = vpop.f32.mrb[0].mxu0
        %1793 = vmatprep.mubr.bf16.mxu0 0
        %1794 = vmatmul.mubr.bf16.gmra.mrb[0].mxu0 %v1723
        %v1795 = vpop.f32.mrb[0].mxu0
        %v1796 = vadd.f32 %v1675, %v1795
        %v1797 = vpop.f32.mrb[0].mxu0
        %v1798 = vpop.f32.mrb[0].mxu0
        %v1799 = vadd.f32 %v1678, %v1798
        %v1800 = vpop.f32.mrb[0].mxu0
        %1801 = vmatprep.mubr.bf16.mxu0 0
        %1802 = vmatmul.mubr.bf16.gmra.mrb[0].mxu0 %v1726
        %v1803 = vpop.f32.mrb[0].mxu0
        %v1804 = vadd.f32 %v1683, %v1803
        %v1805 = vpop.f32.mrb[0].mxu0
        %v1806 = vpop.f32.mrb[0].mxu0
        %v1807 = vadd.f32 %v1686, %v1806
        %v1808 = vpop.f32.mrb[0].mxu0
        %1809 = vmatprep.mubr.bf16.mxu0 0
        %1810 = vmatmul.mubr.bf16.gmra.mrb[0].mxu0 %v1729
        %v1811 = vpop.f32.mrb[0].mxu0
        %v1812 = vadd.f32 %v1691, %v1811
        %v1813 = vpop.f32.mrb[0].mxu0
        %v1814 = vpop.f32.mrb[0].mxu0
        %v1815 = vadd.f32 %v1694, %v1814
        %v1816 = vpop.f32.mrb[0].mxu0
        %1817 = vmatprep.mubr.bf16.mxu0 0
        %1818 = vmatmul.mubr.bf16.gmra.mrb[0].mxu0 %v1732
        %v1819 = vpop.f32.mrb[0].mxu0
        %v1820 = vadd.f32 %v1699, %v1819
        %v1821 = vpop.f32.mrb[0].mxu0
        %v1822 = vpop.f32.mrb[0].mxu0
        %v1823 = vadd.f32 %v1702, %v1822
        %v1824 = vpop.f32.mrb[0].mxu0
        %1825 = vmatprep.mubr.bf16.mxu0 0
        %1826 = vmatmul.mubr.bf16.gmra.mrb[0].mxu0 %v1735
        %v1827 = vpop.f32.mrb[0].mxu0
        %v1828 = vadd.f32 %v1707, %v1827
        %v1829 = vpop.f32.mrb[0].mxu0
        %v1830 = vpop.f32.mrb[0].mxu0
        %v1831 = vadd.f32 %v1710, %v1830
        %v1832 = vpop.f32.mrb[0].mxu0
        %1833 = vdwg.mxu0
        %s1834 = scalar_lea.vmem %s463, 1
        %v1835 = vld [vmem:[%s1834] sm:$0x1]
        %v1837 = vlaneseq
        %v1838 = vshrl.u32 %v1837, 7
        %v1839 = vsub.s32 0, %v1838
        %v1840 = vrot.slane %v1835, %v1839
        %v1842 = vadd.f32 %v1772, %v1840
        %v1843 = vadd.f32 %v1775, %v1840
        %v1844 = vadd.f32 %v1780, %v1840
        %v1845 = vadd.f32 %v1783, %v1840
        %v1846 = vadd.f32 %v1788, %v1840
        %v1847 = vadd.f32 %v1791, %v1840
        %v1848 = vadd.f32 %v1796, %v1840
        %v1849 = vadd.f32 %v1799, %v1840
        %v1850 = vadd.f32 %v1804, %v1840
        %v1851 = vadd.f32 %v1807, %v1840
        %v1852 = vadd.f32 %v1812, %v1840
        %v1853 = vadd.f32 %v1815, %v1840
        %v1854 = vadd.f32 %v1820, %v1840
        %v1855 = vadd.f32 %v1823, %v1840
        %v1856 = vadd.f32 %v1828, %v1840
        %v1857 = vadd.f32 %v1831, %v1840
        %s1858 = scalar_lea.vmem %s401, 64 [#allocation7]
        %v1859 = vld [vmem:[%s1858] sm:$0xf]
        %v1860 = vld [vmem:[%s1858 + $0x4] sm:$0xf]
        %v1861 = vld [vmem:[%s1858 + $0x8] sm:$0xf]
        %v1862 = vld [vmem:[%s1858 + $0xc] sm:$0xf]
        %v1863 = vld [vmem:[%s1858 + $0x10] sm:$0xf]
        %v1864 = vld [vmem:[%s1858 + $0x14] sm:$0xf]
        %v1865 = vld [vmem:[%s1858 + $0x18] sm:$0xf]
        %v1866 = vld [vmem:[%s1858 + $0x1c] sm:$0xf]
        %v1867 = vld [vmem:[%s1858 + $0x20] sm:$0xf]
        %v1868 = vld [vmem:[%s1858 + $0x24] sm:$0xf]
        %v1869 = vld [vmem:[%s1858 + $0x28] sm:$0xf]
        %v1870 = vld [vmem:[%s1858 + $0x2c] sm:$0xf]
        %v1871 = vld [vmem:[%s1858 + $0x30] sm:$0xf]
        %v1872 = vld [vmem:[%s1858 + $0x34] sm:$0xf]
        %v1873 = vld [vmem:[%s1858 + $0x38] sm:$0xf]
        %v1874 = vld [vmem:[%s1858 + $0x3c] sm:$0xf]
        %v1891 = vunpack.c.l.b16 %v1859
        %v1892 = vunpack.c.l.b16 %v1860
        %v1893 = vunpack.c.l.b16 %v1861
        %v1894 = vunpack.c.l.b16 %v1862
        %v1895 = vunpack.c.l.b16 %v1863
        %v1896 = vunpack.c.l.b16 %v1864
        %v1897 = vunpack.c.l.b16 %v1865
        %v1898 = vunpack.c.l.b16 %v1866
        %v1899 = vunpack.c.l.b16 %v1867
        %v1900 = vunpack.c.l.b16 %v1868
        %v1901 = vunpack.c.l.b16 %v1869
        %v1902 = vunpack.c.l.b16 %v1870
        %v1903 = vunpack.c.l.b16 %v1871
        %v1904 = vunpack.c.l.b16 %v1872
        %v1905 = vunpack.c.l.b16 %v1873
        %v1906 = vunpack.c.l.b16 %v1874
        %v1907 = vpack.c.b16 %v1892, %v1891
        %v1908 = vpack.c.b16 %v1894, %v1893
        %v1909 = vpack.c.b16 %v1896, %v1895
        %v1910 = vpack.c.b16 %v1898, %v1897
        %v1911 = vpack.c.b16 %v1900, %v1899
        %v1912 = vpack.c.b16 %v1902, %v1901
        %v1913 = vpack.c.b16 %v1904, %v1903
        %v1914 = vpack.c.b16 %v1906, %v1905
        %1923 = vmatprep.subr.bf16.mxu0 0
        %1924 = vmatpush1.bf16.msra.mxu0 %v1907
        %1925 = vmatprep.subr.bf16.mxu0 0
        %1926 = vmatpush1.bf16.msra.mxu0 %v1908
        %1927 = vmatprep.subr.bf16.mxu0 0
        %1928 = vmatpush1.bf16.msra.mxu0 %v1909
        %1929 = vmatprep.subr.bf16.mxu0 0
        %1930 = vmatpush1.bf16.msra.mxu0 %v1910
        %1931 = vmatprep.subr.bf16.mxu0 0
        %1932 = vmatpush1.bf16.msra.mxu0 %v1911
        %1933 = vmatprep.subr.bf16.mxu0 0
        %1934 = vmatpush1.bf16.msra.mxu0 %v1912
        %1935 = vmatprep.subr.bf16.mxu0 0
        %1936 = vmatpush1.bf16.msra.mxu0 %v1913
        %1937 = vmatprep.subr.bf16.mxu0 0
        %1938 = vmatpush1.bf16.msra.mxu0 %v1914
        %1939 = vmatprep.subr.bf16.mxu0 0
        %1940 = vmatpush1.bf16.msra.mxu0 0
        %1941 = vmatprep.subr.bf16.mxu0 0
        %1942 = vmatpush1.bf16.msra.mxu0 0
        %1943 = vmatprep.subr.bf16.mxu0 0
        %1944 = vmatpush1.bf16.msra.mxu0 0
        %1945 = vmatprep.subr.bf16.mxu0 0
        %1946 = vmatpush1.bf16.msra.mxu0 0
        %1947 = vmatprep.subr.bf16.mxu0 0
        %1948 = vmatpush1.bf16.msra.mxu0 0
        %1949 = vmatprep.subr.bf16.mxu0 0
        %1950 = vmatpush1.bf16.msra.mxu0 0
        %1951 = vmatprep.subr.bf16.mxu0 0
        %1952 = vmatpush1.bf16.msra.mxu0 0
        %1953 = vmatprep.subr.bf16.mxu0 0
        %1954 = vmatpush1.bf16.msra.mxu0 0
        %1955 = vmatprep.mubr.bf16.mxu0 0
        %1956 = vmatmul.mubr.bf16.gmra.mrb[0].mxu0 %v1560
        %v1957 = vpop.f32.mrb[0].mxu0
        %v1958 = vadd.f32 0.0, %v1957
        %v1959 = vpop.f32.mrb[0].mxu0
        %v1960 = vpop.f32.mrb[0].mxu0
        %v1961 = vadd.f32 0.0, %v1960
        %v1962 = vpop.f32.mrb[0].mxu0
        %1963 = vmatprep.mubr.bf16.mxu0 0
        %1964 = vmatmul.mubr.bf16.gmra.mrb[0].mxu0 %v1561
        %v1965 = vpop.f32.mrb[0].mxu0
        %v1966 = vadd.f32 0.0, %v1965
        %v1967 = vpop.f32.mrb[0].mxu0
        %v1968 = vpop.f32.mrb[0].mxu0
        %v1969 = vadd.f32 0.0, %v1968
        %v1970 = vpop.f32.mrb[0].mxu0
        %1971 = vmatprep.mubr.bf16.mxu0 0
        %1972 = vmatmul.mubr.bf16.gmra.mrb[0].mxu0 %v1562
        %v1973 = vpop.f32.mrb[0].mxu0
        %v1974 = vadd.f32 0.0, %v1973
        %v1975 = vpop.f32.mrb[0].mxu0
        %v1976 = vpop.f32.mrb[0].mxu0
        %v1977 = vadd.f32 0.0, %v1976
        %v1978 = vpop.f32.mrb[0].mxu0
        %1979 = vmatprep.mubr.bf16.mxu0 0
        %1980 = vmatmul.mubr.bf16.gmra.mrb[0].mxu0 %v1563
        %v1981 = vpop.f32.mrb[0].mxu0
        %v1982 = vadd.f32 0.0, %v1981
        %v1983 = vpop.f32.mrb[0].mxu0
        %v1984 = vpop.f32.mrb[0].mxu0
        %v1985 = vadd.f32 0.0, %v1984
        %v1986 = vpop.f32.mrb[0].mxu0
        %1987 = vmatprep.mubr.bf16.mxu0 0
        %1988 = vmatmul.mubr.bf16.gmra.mrb[0].mxu0 %v1564
        %v1989 = vpop.f32.mrb[0].mxu0
        %v1990 = vadd.f32 0.0, %v1989
        %v1991 = vpop.f32.mrb[0].mxu0
        %v1992 = vpop.f32.mrb[0].mxu0
        %v1993 = vadd.f32 0.0, %v1992
        %v1994 = vpop.f32.mrb[0].mxu0
        %1995 = vmatprep.mubr.bf16.mxu0 0
        %1996 = vmatmul.mubr.bf16.gmra.mrb[0].mxu0 %v1565
        %v1997 = vpop.f32.mrb[0].mxu0
        %v1998 = vadd.f32 0.0, %v1997
        %v1999 = vpop.f32.mrb[0].mxu0
        %v2000 = vpop.f32.mrb[0].mxu0
        %v2001 = vadd.f32 0.0, %v2000
        %v2002 = vpop.f32.mrb[0].mxu0
        %2003 = vmatprep.mubr.bf16.mxu0 0
        %2004 = vmatmul.mubr.bf16.gmra.mrb[0].mxu0 %v1566
        %v2005 = vpop.f32.mrb[0].mxu0
        %v2006 = vadd.f32 0.0, %v2005
        %v2007 = vpop.f32.mrb[0].mxu0
        %v2008 = vpop.f32.mrb[0].mxu0
        %v2009 = vadd.f32 0.0, %v2008
        %v2010 = vpop.f32.mrb[0].mxu0
        %2011 = vmatprep.mubr.bf16.mxu0 0
        %2012 = vmatmul.mubr.bf16.gmra.mrb[0].mxu0 %v1567
        %v2013 = vpop.f32.mrb[0].mxu0
        %v2014 = vadd.f32 0.0, %v2013
        %v2015 = vpop.f32.mrb[0].mxu0
        %v2016 = vpop.f32.mrb[0].mxu0
        %v2017 = vadd.f32 0.0, %v2016
        %v2018 = vpop.f32.mrb[0].mxu0
        %2019 = vdwg.mxu0
        %v2020 = vpack.c.bf16 %v1961, %v1958
        %v2021 = vpack.c.bf16 %v1969, %v1966
        %v2022 = vpack.c.bf16 %v1977, %v1974
        %v2023 = vpack.c.bf16 %v1985, %v1982
        %v2024 = vpack.c.bf16 %v1993, %v1990
        %v2025 = vpack.c.bf16 %v2001, %v1998
        %v2026 = vpack.c.bf16 %v2009, %v2006
        %v2027 = vpack.c.bf16 %v2017, %v2014
        %s2028 = scalar_lea.vmem %s468, 16
        %v2029 = vld [vmem:[%s2028] sm:$0xf]
        %v2030 = vld [vmem:[%s2028 + $0x4] sm:$0xf]
        %v2031 = vld [vmem:[%s2028 + $0x8] sm:$0xf]
        %v2032 = vld [vmem:[%s2028 + $0xc] sm:$0xf]
        %v2037 = vunpack.c.l.b16 %v2029
        %v2038 = vunpack.c.l.b16 %v2030
        %v2039 = vunpack.c.l.b16 %v2031
        %v2040 = vunpack.c.l.b16 %v2032
        %v2041 = vpack.c.b16 %v2038, %v2037
        %v2042 = vpack.c.b16 %v2040, %v2039
        %v2046 = vsel %vm1208, %v2020, 0
        %v2049 = vsel %vm1208, %v2021, 0
        %v2052 = vsel %vm1208, %v2022, 0
        %v2055 = vsel %vm1208, %v2023, 0
        %v2058 = vsel %vm1208, %v2024, 0
        %v2061 = vsel %vm1208, %v2025, 0
        %v2064 = vsel %vm1208, %v2026, 0
        %v2067 = vsel %vm1208, %v2027, 0
        %2069 = vmatprep.subr.bf16.mxu0 0
        %2070 = vmatpush1.bf16.msra.mxu0 %v2041
        %2071 = vmatprep.subr.bf16.mxu0 0
        %2072 = vmatpush1.bf16.msra.mxu0 %v2042
        %2073 = vmatprep.subr.bf16.mxu0 0
        %2074 = vmatpush1.bf16.msra.mxu0 0
        %2075 = vmatprep.subr.bf16.mxu0 0
        %2076 = vmatpush1.bf16.msra.mxu0 0
        %2077 = vmatprep.subr.bf16.mxu0 0
        %2078 = vmatpush1.bf16.msra.mxu0 0
        %2079 = vmatprep.subr.bf16.mxu0 0
        %2080 = vmatpush1.bf16.msra.mxu0 0
        %2081 = vmatprep.subr.bf16.mxu0 0
        %2082 = vmatpush1.bf16.msra.mxu0 0
        %2083 = vmatprep.subr.bf16.mxu0 0
        %2084 = vmatpush1.bf16.msra.mxu0 0
        %2085 = vmatprep.subr.bf16.mxu0 0
        %2086 = vmatpush1.bf16.msra.mxu0 0
        %2087 = vmatprep.subr.bf16.mxu0 0
        %2088 = vmatpush1.bf16.msra.mxu0 0
        %2089 = vmatprep.subr.bf16.mxu0 0
        %2090 = vmatpush1.bf16.msra.mxu0 0
        %2091 = vmatprep.subr.bf16.mxu0 0
        %2092 = vmatpush1.bf16.msra.mxu0 0
        %2093 = vmatprep.subr.bf16.mxu0 0
        %2094 = vmatpush1.bf16.msra.mxu0 0
        %2095 = vmatprep.subr.bf16.mxu0 0
        %2096 = vmatpush1.bf16.msra.mxu0 0
        %2097 = vmatprep.subr.bf16.mxu0 0
        %2098 = vmatpush1.bf16.msra.mxu0 0
        %2099 = vmatprep.subr.bf16.mxu0 0
        %2100 = vmatpush1.bf16.msra.mxu0 0
        %2101 = vmatprep.mubr.bf16.mxu0 0
        %2102 = vmatmul.mubr.bf16.gmra.mrb[0].mxu0 %v2046
        %v2103 = vpop.f32.mrb[0].mxu0
        %v2104 = vadd.f32 0.0, %v2103
        %v2105 = vpop.f32.mrb[0].mxu0
        %v2106 = vpop.f32.mrb[0].mxu0
        %v2107 = vadd.f32 0.0, %v2106
        %v2108 = vpop.f32.mrb[0].mxu0
        %2109 = vmatprep.mubr.bf16.mxu0 0
        %2110 = vmatmul.mubr.bf16.gmra.mrb[0].mxu0 %v2049
        %v2111 = vpop.f32.mrb[0].mxu0
        %v2112 = vadd.f32 0.0, %v2111
        %v2113 = vpop.f32.mrb[0].mxu0
        %v2114 = vpop.f32.mrb[0].mxu0
        %v2115 = vadd.f32 0.0, %v2114
        %v2116 = vpop.f32.mrb[0].mxu0
        %2117 = vmatprep.mubr.bf16.mxu0 0
        %2118 = vmatmul.mubr.bf16.gmra.mrb[0].mxu0 %v2052
        %v2119 = vpop.f32.mrb[0].mxu0
        %v2120 = vadd.f32 0.0, %v2119
        %v2121 = vpop.f32.mrb[0].mxu0
        %v2122 = vpop.f32.mrb[0].mxu0
        %v2123 = vadd.f32 0.0, %v2122
        %v2124 = vpop.f32.mrb[0].mxu0
        %2125 = vmatprep.mubr.bf16.mxu0 0
        %2126 = vmatmul.mubr.bf16.gmra.mrb[0].mxu0 %v2055
        %v2127 = vpop.f32.mrb[0].mxu0
        %v2128 = vadd.f32 0.0, %v2127
        %v2129 = vpop.f32.mrb[0].mxu0
        %v2130 = vpop.f32.mrb[0].mxu0
        %v2131 = vadd.f32 0.0, %v2130
        %v2132 = vpop.f32.mrb[0].mxu0
        %2133 = vmatprep.mubr.bf16.mxu0 0
        %2134 = vmatmul.mubr.bf16.gmra.mrb[0].mxu0 %v2058
        %v2135 = vpop.f32.mrb[0].mxu0
        %v2136 = vadd.f32 0.0, %v2135
        %v2137 = vpop.f32.mrb[0].mxu0
        %v2138 = vpop.f32.mrb[0].mxu0
        %v2139 = vadd.f32 0.0, %v2138
        %v2140 = vpop.f32.mrb[0].mxu0
        %2141 = vmatprep.mubr.bf16.mxu0 0
        %2142 = vmatmul.mubr.bf16.gmra.mrb[0].mxu0 %v2061
        %v2143 = vpop.f32.mrb[0].mxu0
        %v2144 = vadd.f32 0.0, %v2143
        %v2145 = vpop.f32.mrb[0].mxu0
        %v2146 = vpop.f32.mrb[0].mxu0
        %v2147 = vadd.f32 0.0, %v2146
        %v2148 = vpop.f32.mrb[0].mxu0
        %2149 = vmatprep.mubr.bf16.mxu0 0
        %2150 = vmatmul.mubr.bf16.gmra.mrb[0].mxu0 %v2064
        %v2151 = vpop.f32.mrb[0].mxu0
        %v2152 = vadd.f32 0.0, %v2151
        %v2153 = vpop.f32.mrb[0].mxu0
        %v2154 = vpop.f32.mrb[0].mxu0
        %v2155 = vadd.f32 0.0, %v2154
        %v2156 = vpop.f32.mrb[0].mxu0
        %2157 = vmatprep.mubr.bf16.mxu0 0
        %2158 = vmatmul.mubr.bf16.gmra.mrb[0].mxu0 %v2067
        %v2159 = vpop.f32.mrb[0].mxu0
        %v2160 = vadd.f32 0.0, %v2159
        %v2161 = vpop.f32.mrb[0].mxu0
        %v2162 = vpop.f32.mrb[0].mxu0
        %v2163 = vadd.f32 0.0, %v2162
        %v2164 = vpop.f32.mrb[0].mxu0
        %2165 = vdwg.mxu0
        %v2166 = vadd.f32 %v1842, %v2104
        %v2167 = vadd.f32 %v1843, %v2107
        %v2168 = vadd.f32 %v1844, %v2112
        %v2169 = vadd.f32 %v1845, %v2115
        %v2170 = vadd.f32 %v1846, %v2120
        %v2171 = vadd.f32 %v1847, %v2123
        %v2172 = vadd.f32 %v1848, %v2128
        %v2173 = vadd.f32 %v1849, %v2131
        %v2174 = vadd.f32 %v1850, %v2136
        %v2175 = vadd.f32 %v1851, %v2139
        %v2176 = vadd.f32 %v1852, %v2144
        %v2177 = vadd.f32 %v1853, %v2147
        %v2178 = vadd.f32 %v1854, %v2152
        %v2179 = vadd.f32 %v1855, %v2155
        %v2180 = vadd.f32 %v1856, %v2160
        %v2181 = vadd.f32 %v1857, %v2163
        %v2182 = vmax.f32 %v2166, 0.0
        %v2183 = vmax.f32 %v2167, 0.0
        %v2184 = vmax.f32 %v2168, 0.0
        %v2185 = vmax.f32 %v2169, 0.0
        %v2186 = vmax.f32 %v2170, 0.0
        %v2187 = vmax.f32 %v2171, 0.0
        %v2188 = vmax.f32 %v2172, 0.0
        %v2189 = vmax.f32 %v2173, 0.0
        %v2190 = vmax.f32 %v2174, 0.0
        %v2191 = vmax.f32 %v2175, 0.0
        %v2192 = vmax.f32 %v2176, 0.0
        %v2193 = vmax.f32 %v2177, 0.0
        %v2194 = vmax.f32 %v2178, 0.0
        %v2195 = vmax.f32 %v2179, 0.0
        %v2196 = vmax.f32 %v2180, 0.0
        %v2197 = vmax.f32 %v2181, 0.0
        %s2198 = scalar_lea.vmem %s459, 32
        %v2199 = vld [vmem:[%s2198] sm:$0xff]
        %v2200 = vld [vmem:[%s2198 + $0x8] sm:$0xff]
        %v2201 = vunpack.c.0.s8 %v2199
        %v2202 = vunpack.c.1.s8 %v2199
        %v2203 = vunpack.c.2.s8 %v2199
        %v2204 = vunpack.c.3.s8 %v2199
        %v2205 = vunpack.c.0.s8 %v2200
        %v2206 = vunpack.c.1.s8 %v2200
        %v2207 = vunpack.c.2.s8 %v2200
        %v2208 = vunpack.c.3.s8 %v2200
        %v2209 = vshra.s32 %v2201, 4
        %v2210 = vshra.s32 %v2202, 4
        %v2211 = vshra.s32 %v2203, 4
        %v2212 = vshra.s32 %v2204, 4
        %v2213 = vshra.s32 %v2205, 4
        %v2214 = vshra.s32 %v2206, 4
        %v2215 = vshra.s32 %v2207, 4
        %v2216 = vshra.s32 %v2208, 4
        %v2217 = vcvt.s32.f32 %v2209
        %v2218 = vcvt.s32.f32 %v2210
        %v2219 = vcvt.s32.f32 %v2211
        %v2220 = vcvt.s32.f32 %v2212
        %v2221 = vcvt.s32.f32 %v2213
        %v2222 = vcvt.s32.f32 %v2214
        %v2223 = vcvt.s32.f32 %v2215
        %v2224 = vcvt.s32.f32 %v2216
        %v2225 = vpack.c.bf16 %v2218, %v2217
        %v2226 = vpack.c.bf16 %v2220, %v2219
        %v2227 = vpack.c.bf16 %v2222, %v2221
        %v2228 = vpack.c.bf16 %v2224, %v2223
        %v2229 = vand.u32 %v2201, 15
        %v2230 = vand.u32 %v2202, 15
        %v2231 = vand.u32 %v2203, 15
        %v2232 = vand.u32 %v2204, 15
        %v2233 = vand.u32 %v2205, 15
        %v2234 = vand.u32 %v2206, 15
        %v2235 = vand.u32 %v2207, 15
        %v2236 = vand.u32 %v2208, 15
        %v2237 = vsub.s32 %v2229, 8
        %v2238 = vsub.s32 %v2230, 8
        %v2239 = vsub.s32 %v2231, 8
        %v2240 = vsub.s32 %v2232, 8
        %v2241 = vsub.s32 %v2233, 8
        %v2242 = vsub.s32 %v2234, 8
        %v2243 = vsub.s32 %v2235, 8
        %v2244 = vsub.s32 %v2236, 8
        %v2245 = vcvt.s32.f32 %v2237
        %v2246 = vcvt.s32.f32 %v2238
        %v2247 = vcvt.s32.f32 %v2239
        %v2248 = vcvt.s32.f32 %v2240
        %v2249 = vcvt.s32.f32 %v2241
        %v2250 = vcvt.s32.f32 %v2242
        %v2251 = vcvt.s32.f32 %v2243
        %v2252 = vcvt.s32.f32 %v2244
        %v2253 = vpack.c.bf16 %v2246, %v2245
        %v2254 = vpack.c.bf16 %v2248, %v2247
        %v2255 = vpack.c.bf16 %v2250, %v2249
        %v2256 = vpack.c.bf16 %v2252, %v2251
        %s2257 = scalar_lea.vmem %s392, 8 [#allocation5]
        %v2258 = vld [vmem:[%s2257] sm:$0xf]
        %v2261 = vunpack.c.l.s4 1966171168
        %v2262 = vunpack.c.0.s8 %v2261
        %v2263 = vlaneseq
        %v2264 = vshrl.u32 %v2263, 7
        %v2265 = vsub.s32 %v2262, %v2264
        %v2266 = vrot.slane %v2258, %v2265
        %v2267 = vcombine.high %v2266, %v2266
        %v2269 = vunpack.c.l.s4 1966171168
        %v2270 = vunpack.c.0.s8 %v2269
        %v2271 = vlaneseq
        %v2272 = vshrl.u32 %v2271, 7
        %v2273 = vsub.s32 %v2270, %v2272
        %v2274 = vrot.slane %v2266, %v2273
        %v2276 = vunpack.c.l.s4 1966171168
        %v2277 = vunpack.c.0.s8 %v2276
        %v2278 = vlaneseq
        %v2279 = vshrl.u32 %v2278, 7
        %v2280 = vsub.s32 %v2277, %v2279
        %v2281 = vrot.slane %v2267, %v2280
        %v2282 = vunpack.i.l.s16 %v2274
        %v2283 = vunpack.i.h.s16 %v2274
        %v2284 = vunpack.i.l.s16 %v2281
        %v2285 = vunpack.i.h.s16 %v2281
        %v2286 = vpack.i.b16 %v2282, %v2282
        %v2287 = vpack.i.b16 %v2283, %v2283
        %v2288 = vpack.i.b16 %v2284, %v2284
        %v2289 = vpack.i.b16 %v2285, %v2285
        %v2290 = vlaneseq
        %v2291 = vshrl.u32 %v2290, 7
        %v2292 = vsub.s32 0, %v2291
        %v2293 = vrot.slane %v2286, %v2292
        %v2294 = vlaneseq
        %v2295 = vshrl.u32 %v2294, 7
        %v2296 = vsub.s32 0, %v2295
        %v2297 = vrot.slane %v2287, %v2296
        %v2298 = vlaneseq
        %v2299 = vshrl.u32 %v2298, 7
        %v2300 = vsub.s32 0, %v2299
        %v2301 = vrot.slane %v2288, %v2300
        %v2302 = vlaneseq
        %v2303 = vshrl.u32 %v2302, 7
        %v2304 = vsub.s32 0, %v2303
        %v2305 = vrot.slane %v2289, %v2304
        %v2307 = vpack.i.b16 %v2293, %v2293
        %v2309 = vlaneseq
        %v2310 = vshrl.u32 %v2309, 7
        %v2311 = vsub.s32 0, %v2310
        %v2312 = vrot.slane %v2307, %v2311
        %v2314 = vpack.i.b16 %v2297, %v2297
        %v2316 = vlaneseq
        %v2317 = vshrl.u32 %v2316, 7
        %v2318 = vsub.s32 0, %v2317
        %v2319 = vrot.slane %v2314, %v2318
        %v2321 = vpack.i.b16 %v2301, %v2301
        %v2323 = vlaneseq
        %v2324 = vshrl.u32 %v2323, 7
        %v2325 = vsub.s32 0, %v2324
        %v2326 = vrot.slane %v2321, %v2325
        %v2328 = vpack.i.b16 %v2305, %v2305
        %v2330 = vlaneseq
        %v2331 = vshrl.u32 %v2330, 7
        %v2332 = vsub.s32 0, %v2331
        %v2333 = vrot.slane %v2328, %v2332
        %v2334 = vcombine.high %v2274, %v2274
        %v2335 = vcombine.high %v2281, %v2281
        %v2336 = vunpack.i.l.s16 %v2334
        %v2337 = vunpack.i.h.s16 %v2334
        %v2338 = vunpack.i.l.s16 %v2335
        %v2339 = vunpack.i.h.s16 %v2335
        %v2340 = vpack.i.b16 %v2336, %v2336
        %v2341 = vpack.i.b16 %v2337, %v2337
        %v2342 = vpack.i.b16 %v2338, %v2338
        %v2343 = vpack.i.b16 %v2339, %v2339
        %v2344 = vlaneseq
        %v2345 = vshrl.u32 %v2344, 7
        %v2346 = vsub.s32 0, %v2345
        %v2347 = vrot.slane %v2340, %v2346
        %v2348 = vlaneseq
        %v2349 = vshrl.u32 %v2348, 7
        %v2350 = vsub.s32 0, %v2349
        %v2351 = vrot.slane %v2341, %v2350
        %v2352 = vlaneseq
        %v2353 = vshrl.u32 %v2352, 7
        %v2354 = vsub.s32 0, %v2353
        %v2355 = vrot.slane %v2342, %v2354
        %v2356 = vlaneseq
        %v2357 = vshrl.u32 %v2356, 7
        %v2358 = vsub.s32 0, %v2357
        %v2359 = vrot.slane %v2343, %v2358
        %v2361 = vpack.i.b16 %v2347, %v2347
        %v2363 = vlaneseq
        %v2364 = vshrl.u32 %v2363, 7
        %v2365 = vsub.s32 0, %v2364
        %v2366 = vrot.slane %v2361, %v2365
        %v2368 = vpack.i.b16 %v2351, %v2351
        %v2370 = vlaneseq
        %v2371 = vshrl.u32 %v2370, 7
        %v2372 = vsub.s32 0, %v2371
        %v2373 = vrot.slane %v2368, %v2372
        %v2375 = vpack.i.b16 %v2355, %v2355
        %v2377 = vlaneseq
        %v2378 = vshrl.u32 %v2377, 7
        %v2379 = vsub.s32 0, %v2378
        %v2380 = vrot.slane %v2375, %v2379
        %v2382 = vpack.i.b16 %v2359, %v2359
        %v2384 = vlaneseq
        %v2385 = vshrl.u32 %v2384, 7
        %v2386 = vsub.s32 0, %v2385
        %v2387 = vrot.slane %v2382, %v2386
        %v2388 = vmul.bf16 %v2253, %v2312
        %v2389 = vmul.bf16 %v2254, %v2319
        %v2390 = vmul.bf16 %v2255, %v2326
        %v2391 = vmul.bf16 %v2256, %v2333
        %v2392 = vmul.bf16 %v2225, %v2366
        %v2393 = vmul.bf16 %v2226, %v2373
        %v2394 = vmul.bf16 %v2227, %v2380
        %v2395 = vmul.bf16 %v2228, %v2387
        %v2396 = vpack.c.bf16 %v2183, %v2182
        %v2397 = vpack.c.bf16 %v2185, %v2184
        %v2398 = vpack.c.bf16 %v2187, %v2186
        %v2399 = vpack.c.bf16 %v2189, %v2188
        %v2400 = vpack.c.bf16 %v2191, %v2190
        %v2401 = vpack.c.bf16 %v2193, %v2192
        %v2402 = vpack.c.bf16 %v2195, %v2194
        %v2403 = vpack.c.bf16 %v2197, %v2196
        %2412 = vrot.lane.b32.xlu0 %v2396, 64
        %v2413 = vpop.permute.xlu0 %2412
        %2414 = vrot.lane.b32.xlu0 %v2397, 64
        %v2415 = vpop.permute.xlu0 %2414
        %2416 = vrot.lane.b32.xlu0 %v2398, 64
        %v2417 = vpop.permute.xlu0 %2416
        %2418 = vrot.lane.b32.xlu0 %v2399, 64
        %v2419 = vpop.permute.xlu0 %2418
        %2420 = vrot.lane.b32.xlu0 %v2400, 64
        %v2421 = vpop.permute.xlu0 %2420
        %2422 = vrot.lane.b32.xlu0 %v2401, 64
        %v2423 = vpop.permute.xlu0 %2422
        %2424 = vrot.lane.b32.xlu0 %v2402, 64
        %v2425 = vpop.permute.xlu0 %2424
        %2426 = vrot.lane.b32.xlu0 %v2403, 64
        %v2427 = vpop.permute.xlu0 %2426
        %v2429 = vsel %vm757, %v2413, 0
        %v2432 = vsel %vm757, %v2415, 0
        %v2435 = vsel %vm757, %v2417, 0
        %v2438 = vsel %vm757, %v2419, 0
        %v2441 = vsel %vm757, %v2421, 0
        %v2444 = vsel %vm757, %v2423, 0
        %v2447 = vsel %vm757, %v2425, 0
        %v2450 = vsel %vm757, %v2427, 0
        %2452 = vmatprep.subr.bf16.mxu0 0
        %2453 = vmatpush1.bf16.msra.mxu0 %v2392
        %2454 = vmatprep.subr.bf16.mxu0 0
        %2455 = vmatpush1.bf16.msra.mxu0 %v2393
        %2456 = vmatprep.subr.bf16.mxu0 0
        %2457 = vmatpush1.bf16.msra.mxu0 %v2394
        %2458 = vmatprep.subr.bf16.mxu0 0
        %2459 = vmatpush1.bf16.msra.mxu0 %v2395
        %2460 = vmatprep.subr.bf16.mxu0 0
        %2461 = vmatpush1.bf16.msra.mxu0 0
        %2462 = vmatprep.subr.bf16.mxu0 0
        %2463 = vmatpush1.bf16.msra.mxu0 0
        %2464 = vmatprep.subr.bf16.mxu0 0
        %2465 = vmatpush1.bf16.msra.mxu0 0
        %2466 = vmatprep.subr.bf16.mxu0 0
        %2467 = vmatpush1.bf16.msra.mxu0 0
        %2468 = vmatprep.subr.bf16.mxu0 0
        %2469 = vmatpush1.bf16.msra.mxu0 0
        %2470 = vmatprep.subr.bf16.mxu0 0
        %2471 = vmatpush1.bf16.msra.mxu0 0
        %2472 = vmatprep.subr.bf16.mxu0 0
        %2473 = vmatpush1.bf16.msra.mxu0 0
        %2474 = vmatprep.subr.bf16.mxu0 0
        %2475 = vmatpush1.bf16.msra.mxu0 0
        %2476 = vmatprep.subr.bf16.mxu0 0
        %2477 = vmatpush1.bf16.msra.mxu0 0
        %2478 = vmatprep.subr.bf16.mxu0 0
        %2479 = vmatpush1.bf16.msra.mxu0 0
        %2480 = vmatprep.subr.bf16.mxu0 0
        %2481 = vmatpush1.bf16.msra.mxu0 0
        %2482 = vmatprep.subr.bf16.mxu0 0
        %2483 = vmatpush1.bf16.msra.mxu0 0
        %2484 = vmatprep.mubr.bf16.mxu0 0
        %2485 = vmatmul.mubr.bf16.gmra.mrb[0].mxu0 %v2429
        %v2486 = vpop.f32.mrb[0].mxu0
        %v2487 = vadd.f32 0.0, %v2486
        %v2488 = vpop.f32.mrb[0].mxu0
        %v2489 = vpop.f32.mrb[0].mxu0
        %v2490 = vadd.f32 0.0, %v2489
        %v2491 = vpop.f32.mrb[0].mxu0
        %2492 = vmatprep.mubr.bf16.mxu0 0
        %2493 = vmatmul.mubr.bf16.gmra.mrb[0].mxu0 %v2432
        %v2494 = vpop.f32.mrb[0].mxu0
        %v2495 = vadd.f32 0.0, %v2494
        %v2496 = vpop.f32.mrb[0].mxu0
        %v2497 = vpop.f32.mrb[0].mxu0
        %v2498 = vadd.f32 0.0, %v2497
        %v2499 = vpop.f32.mrb[0].mxu0
        %2500 = vmatprep.mubr.bf16.mxu0 0
        %2501 = vmatmul.mubr.bf16.gmra.mrb[0].mxu0 %v2435
        %v2502 = vpop.f32.mrb[0].mxu0
        %v2503 = vadd.f32 0.0, %v2502
        %v2504 = vpop.f32.mrb[0].mxu0
        %v2505 = vpop.f32.mrb[0].mxu0
        %v2506 = vadd.f32 0.0, %v2505
        %v2507 = vpop.f32.mrb[0].mxu0
        %2508 = vmatprep.mubr.bf16.mxu0 0
        %2509 = vmatmul.mubr.bf16.gmra.mrb[0].mxu0 %v2438
        %v2510 = vpop.f32.mrb[0].mxu0
        %v2511 = vadd.f32 0.0, %v2510
        %v2512 = vpop.f32.mrb[0].mxu0
        %v2513 = vpop.f32.mrb[0].mxu0
        %v2514 = vadd.f32 0.0, %v2513
        %v2515 = vpop.f32.mrb[0].mxu0
        %2516 = vmatprep.mubr.bf16.mxu0 0
        %2517 = vmatmul.mubr.bf16.gmra.mrb[0].mxu0 %v2441
        %v2518 = vpop.f32.mrb[0].mxu0
        %v2519 = vadd.f32 0.0, %v2518
        %v2520 = vpop.f32.mrb[0].mxu0
        %v2521 = vpop.f32.mrb[0].mxu0
        %v2522 = vadd.f32 0.0, %v2521
        %v2523 = vpop.f32.mrb[0].mxu0
        %2524 = vmatprep.mubr.bf16.mxu0 0
        %2525 = vmatmul.mubr.bf16.gmra.mrb[0].mxu0 %v2444
        %v2526 = vpop.f32.mrb[0].mxu0
        %v2527 = vadd.f32 0.0, %v2526
        %v2528 = vpop.f32.mrb[0].mxu0
        %v2529 = vpop.f32.mrb[0].mxu0
        %v2530 = vadd.f32 0.0, %v2529
        %v2531 = vpop.f32.mrb[0].mxu0
        %2532 = vmatprep.mubr.bf16.mxu0 0
        %2533 = vmatmul.mubr.bf16.gmra.mrb[0].mxu0 %v2447
        %v2534 = vpop.f32.mrb[0].mxu0
        %v2535 = vadd.f32 0.0, %v2534
        %v2536 = vpop.f32.mrb[0].mxu0
        %v2537 = vpop.f32.mrb[0].mxu0
        %v2538 = vadd.f32 0.0, %v2537
        %v2539 = vpop.f32.mrb[0].mxu0
        %2540 = vmatprep.mubr.bf16.mxu0 0
        %2541 = vmatmul.mubr.bf16.gmra.mrb[0].mxu0 %v2450
        %v2542 = vpop.f32.mrb[0].mxu0
        %v2543 = vadd.f32 0.0, %v2542
        %v2544 = vpop.f32.mrb[0].mxu0
        %v2545 = vpop.f32.mrb[0].mxu0
        %v2546 = vadd.f32 0.0, %v2545
        %v2547 = vpop.f32.mrb[0].mxu0
        %2548 = vdwg.mxu0
        %v2550 = vsel %vm757, %v2396, 0
        %v2553 = vsel %vm757, %v2397, 0
        %v2556 = vsel %vm757, %v2398, 0
        %v2559 = vsel %vm757, %v2399, 0
        %v2562 = vsel %vm757, %v2400, 0
        %v2565 = vsel %vm757, %v2401, 0
        %v2568 = vsel %vm757, %v2402, 0
        %v2571 = vsel %vm757, %v2403, 0
        %2573 = vmatprep.subr.bf16.mxu0 0
        %2574 = vmatpush1.bf16.msra.mxu0 %v2388
        %2575 = vmatprep.subr.bf16.mxu0 0
        %2576 = vmatpush1.bf16.msra.mxu0 %v2389
        %2577 = vmatprep.subr.bf16.mxu0 0
        %2578 = vmatpush1.bf16.msra.mxu0 %v2390
        %2579 = vmatprep.subr.bf16.mxu0 0
        %2580 = vmatpush1.bf16.msra.mxu0 %v2391
        %2581 = vmatprep.subr.bf16.mxu0 0
        %2582 = vmatpush1.bf16.msra.mxu0 0
        %2583 = vmatprep.subr.bf16.mxu0 0
        %2584 = vmatpush1.bf16.msra.mxu0 0
        %2585 = vmatprep.subr.bf16.mxu0 0
        %2586 = vmatpush1.bf16.msra.mxu0 0
        %2587 = vmatprep.subr.bf16.mxu0 0
        %2588 = vmatpush1.bf16.msra.mxu0 0
        %2589 = vmatprep.subr.bf16.mxu0 0
        %2590 = vmatpush1.bf16.msra.mxu0 0
        %2591 = vmatprep.subr.bf16.mxu0 0
        %2592 = vmatpush1.bf16.msra.mxu0 0
        %2593 = vmatprep.subr.bf16.mxu0 0
        %2594 = vmatpush1.bf16.msra.mxu0 0
        %2595 = vmatprep.subr.bf16.mxu0 0
        %2596 = vmatpush1.bf16.msra.mxu0 0
        %2597 = vmatprep.subr.bf16.mxu0 0
        %2598 = vmatpush1.bf16.msra.mxu0 0
        %2599 = vmatprep.subr.bf16.mxu0 0
        %2600 = vmatpush1.bf16.msra.mxu0 0
        %2601 = vmatprep.subr.bf16.mxu0 0
        %2602 = vmatpush1.bf16.msra.mxu0 0
        %2603 = vmatprep.subr.bf16.mxu0 0
        %2604 = vmatpush1.bf16.msra.mxu0 0
        %2605 = vmatprep.mubr.bf16.mxu0 0
        %2606 = vmatmul.mubr.bf16.gmra.mrb[0].mxu0 %v2550
        %v2607 = vpop.f32.mrb[0].mxu0
        %v2608 = vadd.f32 %v2487, %v2607
        %v2609 = vpop.f32.mrb[0].mxu0
        %v2610 = vpop.f32.mrb[0].mxu0
        %v2611 = vadd.f32 %v2490, %v2610
        %v2612 = vpop.f32.mrb[0].mxu0
        %2613 = vmatprep.mubr.bf16.mxu0 0
        %2614 = vmatmul.mubr.bf16.gmra.mrb[0].mxu0 %v2553
        %v2615 = vpop.f32.mrb[0].mxu0
        %v2616 = vadd.f32 %v2495, %v2615
        %v2617 = vpop.f32.mrb[0].mxu0
        %v2618 = vpop.f32.mrb[0].mxu0
        %v2619 = vadd.f32 %v2498, %v2618
        %v2620 = vpop.f32.mrb[0].mxu0
        %2621 = vmatprep.mubr.bf16.mxu0 0
        %2622 = vmatmul.mubr.bf16.gmra.mrb[0].mxu0 %v2556
        %v2623 = vpop.f32.mrb[0].mxu0
        %v2624 = vadd.f32 %v2503, %v2623
        %v2625 = vpop.f32.mrb[0].mxu0
        %v2626 = vpop.f32.mrb[0].mxu0
        %v2627 = vadd.f32 %v2506, %v2626
        %v2628 = vpop.f32.mrb[0].mxu0
        %2629 = vmatprep.mubr.bf16.mxu0 0
        %2630 = vmatmul.mubr.bf16.gmra.mrb[0].mxu0 %v2559
        %v2631 = vpop.f32.mrb[0].mxu0
        %v2632 = vadd.f32 %v2511, %v2631
        %v2633 = vpop.f32.mrb[0].mxu0
        %v2634 = vpop.f32.mrb[0].mxu0
        %v2635 = vadd.f32 %v2514, %v2634
        %v2636 = vpop.f32.mrb[0].mxu0
        %2637 = vmatprep.mubr.bf16.mxu0 0
        %2638 = vmatmul.mubr.bf16.gmra.mrb[0].mxu0 %v2562
        %v2639 = vpop.f32.mrb[0].mxu0
        %v2640 = vadd.f32 %v2519, %v2639
        %v2641 = vpop.f32.mrb[0].mxu0
        %v2642 = vpop.f32.mrb[0].mxu0
        %v2643 = vadd.f32 %v2522, %v2642
        %v2644 = vpop.f32.mrb[0].mxu0
        %2645 = vmatprep.mubr.bf16.mxu0 0
        %2646 = vmatmul.mubr.bf16.gmra.mrb[0].mxu0 %v2565
        %v2647 = vpop.f32.mrb[0].mxu0
        %v2648 = vadd.f32 %v2527, %v2647
        %v2649 = vpop.f32.mrb[0].mxu0
        %v2650 = vpop.f32.mrb[0].mxu0
        %v2651 = vadd.f32 %v2530, %v2650
        %v2652 = vpop.f32.mrb[0].mxu0
        %2653 = vmatprep.mubr.bf16.mxu0 0
        %2654 = vmatmul.mubr.bf16.gmra.mrb[0].mxu0 %v2568
        %v2655 = vpop.f32.mrb[0].mxu0
        %v2656 = vadd.f32 %v2535, %v2655
        %v2657 = vpop.f32.mrb[0].mxu0
        %v2658 = vpop.f32.mrb[0].mxu0
        %v2659 = vadd.f32 %v2538, %v2658
        %v2660 = vpop.f32.mrb[0].mxu0
        %2661 = vmatprep.mubr.bf16.mxu0 0
        %2662 = vmatmul.mubr.bf16.gmra.mrb[0].mxu0 %v2571
        %v2663 = vpop.f32.mrb[0].mxu0
        %v2664 = vadd.f32 %v2543, %v2663
        %v2665 = vpop.f32.mrb[0].mxu0
        %v2666 = vpop.f32.mrb[0].mxu0
        %v2667 = vadd.f32 %v2546, %v2666
        %v2668 = vpop.f32.mrb[0].mxu0
        %2669 = vdwg.mxu0
        %s2670 = scalar_lea.vmem %s463, 2
        %v2671 = vld [vmem:[%s2670] sm:$0x1]
        %v2673 = vlaneseq
        %v2674 = vshrl.u32 %v2673, 7
        %v2675 = vsub.s32 0, %v2674
        %v2676 = vrot.slane %v2671, %v2675
        %v2678 = vadd.f32 %v2608, %v2676
        %v2679 = vadd.f32 %v2611, %v2676
        %v2680 = vadd.f32 %v2616, %v2676
        %v2681 = vadd.f32 %v2619, %v2676
        %v2682 = vadd.f32 %v2624, %v2676
        %v2683 = vadd.f32 %v2627, %v2676
        %v2684 = vadd.f32 %v2632, %v2676
        %v2685 = vadd.f32 %v2635, %v2676
        %v2686 = vadd.f32 %v2640, %v2676
        %v2687 = vadd.f32 %v2643, %v2676
        %v2688 = vadd.f32 %v2648, %v2676
        %v2689 = vadd.f32 %v2651, %v2676
        %v2690 = vadd.f32 %v2656, %v2676
        %v2691 = vadd.f32 %v2659, %v2676
        %v2692 = vadd.f32 %v2664, %v2676
        %v2693 = vadd.f32 %v2667, %v2676
        %s2694 = scalar_lea.vmem %s401, 128 [#allocation7]
        %v2695 = vld [vmem:[%s2694] sm:$0xf]
        %v2696 = vld [vmem:[%s2694 + $0x4] sm:$0xf]
        %v2697 = vld [vmem:[%s2694 + $0x8] sm:$0xf]
        %v2698 = vld [vmem:[%s2694 + $0xc] sm:$0xf]
        %v2699 = vld [vmem:[%s2694 + $0x10] sm:$0xf]
        %v2700 = vld [vmem:[%s2694 + $0x14] sm:$0xf]
        %v2701 = vld [vmem:[%s2694 + $0x18] sm:$0xf]
        %v2702 = vld [vmem:[%s2694 + $0x1c] sm:$0xf]
        %v2703 = vld [vmem:[%s2694 + $0x20] sm:$0xf]
        %v2704 = vld [vmem:[%s2694 + $0x24] sm:$0xf]
        %v2705 = vld [vmem:[%s2694 + $0x28] sm:$0xf]
        %v2706 = vld [vmem:[%s2694 + $0x2c] sm:$0xf]
        %v2707 = vld [vmem:[%s2694 + $0x30] sm:$0xf]
        %v2708 = vld [vmem:[%s2694 + $0x34] sm:$0xf]
        %v2709 = vld [vmem:[%s2694 + $0x38] sm:$0xf]
        %v2710 = vld [vmem:[%s2694 + $0x3c] sm:$0xf]
        %v2727 = vunpack.c.l.b16 %v2695
        %v2728 = vunpack.c.l.b16 %v2696
        %v2729 = vunpack.c.l.b16 %v2697
        %v2730 = vunpack.c.l.b16 %v2698
        %v2731 = vunpack.c.l.b16 %v2699
        %v2732 = vunpack.c.l.b16 %v2700
        %v2733 = vunpack.c.l.b16 %v2701
        %v2734 = vunpack.c.l.b16 %v2702
        %v2735 = vunpack.c.l.b16 %v2703
        %v2736 = vunpack.c.l.b16 %v2704
        %v2737 = vunpack.c.l.b16 %v2705
        %v2738 = vunpack.c.l.b16 %v2706
        %v2739 = vunpack.c.l.b16 %v2707
        %v2740 = vunpack.c.l.b16 %v2708
        %v2741 = vunpack.c.l.b16 %v2709
        %v2742 = vunpack.c.l.b16 %v2710
        %v2743 = vpack.c.b16 %v2728, %v2727
        %v2744 = vpack.c.b16 %v2730, %v2729
        %v2745 = vpack.c.b16 %v2732, %v2731
        %v2746 = vpack.c.b16 %v2734, %v2733
        %v2747 = vpack.c.b16 %v2736, %v2735
        %v2748 = vpack.c.b16 %v2738, %v2737
        %v2749 = vpack.c.b16 %v2740, %v2739
        %v2750 = vpack.c.b16 %v2742, %v2741
        %2759 = vmatprep.subr.bf16.mxu0 0
        %2760 = vmatpush1.bf16.msra.mxu0 %v2743
        %2761 = vmatprep.subr.bf16.mxu0 0
        %2762 = vmatpush1.bf16.msra.mxu0 %v2744
        %2763 = vmatprep.subr.bf16.mxu0 0
        %2764 = vmatpush1.bf16.msra.mxu0 %v2745
        %2765 = vmatprep.subr.bf16.mxu0 0
        %2766 = vmatpush1.bf16.msra.mxu0 %v2746
        %2767 = vmatprep.subr.bf16.mxu0 0
        %2768 = vmatpush1.bf16.msra.mxu0 %v2747
        %2769 = vmatprep.subr.bf16.mxu0 0
        %2770 = vmatpush1.bf16.msra.mxu0 %v2748
        %2771 = vmatprep.subr.bf16.mxu0 0
        %2772 = vmatpush1.bf16.msra.mxu0 %v2749
        %2773 = vmatprep.subr.bf16.mxu0 0
        %2774 = vmatpush1.bf16.msra.mxu0 %v2750
        %2775 = vmatprep.subr.bf16.mxu0 0
        %2776 = vmatpush1.bf16.msra.mxu0 0
        %2777 = vmatprep.subr.bf16.mxu0 0
        %2778 = vmatpush1.bf16.msra.mxu0 0
        %2779 = vmatprep.subr.bf16.mxu0 0
        %2780 = vmatpush1.bf16.msra.mxu0 0
        %2781 = vmatprep.subr.bf16.mxu0 0
        %2782 = vmatpush1.bf16.msra.mxu0 0
        %2783 = vmatprep.subr.bf16.mxu0 0
        %2784 = vmatpush1.bf16.msra.mxu0 0
        %2785 = vmatprep.subr.bf16.mxu0 0
        %2786 = vmatpush1.bf16.msra.mxu0 0
        %2787 = vmatprep.subr.bf16.mxu0 0
        %2788 = vmatpush1.bf16.msra.mxu0 0
        %2789 = vmatprep.subr.bf16.mxu0 0
        %2790 = vmatpush1.bf16.msra.mxu0 0
        %2791 = vmatprep.mubr.bf16.mxu0 0
        %2792 = vmatmul.mubr.bf16.gmra.mrb[0].mxu0 %v2396
        %v2793 = vpop.f32.mrb[0].mxu0
        %v2794 = vadd.f32 0.0, %v2793
        %v2795 = vpop.f32.mrb[0].mxu0
        %v2796 = vpop.f32.mrb[0].mxu0
        %v2797 = vadd.f32 0.0, %v2796
        %v2798 = vpop.f32.mrb[0].mxu0
        %2799 = vmatprep.mubr.bf16.mxu0 0
        %2800 = vmatmul.mubr.bf16.gmra.mrb[0].mxu0 %v2397
        %v2801 = vpop.f32.mrb[0].mxu0
        %v2802 = vadd.f32 0.0, %v2801
        %v2803 = vpop.f32.mrb[0].mxu0
        %v2804 = vpop.f32.mrb[0].mxu0
        %v2805 = vadd.f32 0.0, %v2804
        %v2806 = vpop.f32.mrb[0].mxu0
        %2807 = vmatprep.mubr.bf16.mxu0 0
        %2808 = vmatmul.mubr.bf16.gmra.mrb[0].mxu0 %v2398
        %v2809 = vpop.f32.mrb[0].mxu0
        %v2810 = vadd.f32 0.0, %v2809
        %v2811 = vpop.f32.mrb[0].mxu0
        %v2812 = vpop.f32.mrb[0].mxu0
        %v2813 = vadd.f32 0.0, %v2812
        %v2814 = vpop.f32.mrb[0].mxu0
        %2815 = vmatprep.mubr.bf16.mxu0 0
        %2816 = vmatmul.mubr.bf16.gmra.mrb[0].mxu0 %v2399
        %v2817 = vpop.f32.mrb[0].mxu0
        %v2818 = vadd.f32 0.0, %v2817
        %v2819 = vpop.f32.mrb[0].mxu0
        %v2820 = vpop.f32.mrb[0].mxu0
        %v2821 = vadd.f32 0.0, %v2820
        %v2822 = vpop.f32.mrb[0].mxu0
        %2823 = vmatprep.mubr.bf16.mxu0 0
        %2824 = vmatmul.mubr.bf16.gmra.mrb[0].mxu0 %v2400
        %v2825 = vpop.f32.mrb[0].mxu0
        %v2826 = vadd.f32 0.0, %v2825
        %v2827 = vpop.f32.mrb[0].mxu0
        %v2828 = vpop.f32.mrb[0].mxu0
        %v2829 = vadd.f32 0.0, %v2828
        %v2830 = vpop.f32.mrb[0].mxu0
        %2831 = vmatprep.mubr.bf16.mxu0 0
        %2832 = vmatmul.mubr.bf16.gmra.mrb[0].mxu0 %v2401
        %v2833 = vpop.f32.mrb[0].mxu0
        %v2834 = vadd.f32 0.0, %v2833
        %v2835 = vpop.f32.mrb[0].mxu0
        %v2836 = vpop.f32.mrb[0].mxu0
        %v2837 = vadd.f32 0.0, %v2836
        %v2838 = vpop.f32.mrb[0].mxu0
        %2839 = vmatprep.mubr.bf16.mxu0 0
        %2840 = vmatmul.mubr.bf16.gmra.mrb[0].mxu0 %v2402
        %v2841 = vpop.f32.mrb[0].mxu0
        %v2842 = vadd.f32 0.0, %v2841
        %v2843 = vpop.f32.mrb[0].mxu0
        %v2844 = vpop.f32.mrb[0].mxu0
        %v2845 = vadd.f32 0.0, %v2844
        %v2846 = vpop.f32.mrb[0].mxu0
        %2847 = vmatprep.mubr.bf16.mxu0 0
        %2848 = vmatmul.mubr.bf16.gmra.mrb[0].mxu0 %v2403
        %v2849 = vpop.f32.mrb[0].mxu0
        %v2850 = vadd.f32 0.0, %v2849
        %v2851 = vpop.f32.mrb[0].mxu0
        %v2852 = vpop.f32.mrb[0].mxu0
        %v2853 = vadd.f32 0.0, %v2852
        %v2854 = vpop.f32.mrb[0].mxu0
        %2855 = vdwg.mxu0
        %v2856 = vpack.c.bf16 %v2797, %v2794
        %v2857 = vpack.c.bf16 %v2805, %v2802
        %v2858 = vpack.c.bf16 %v2813, %v2810
        %v2859 = vpack.c.bf16 %v2821, %v2818
        %v2860 = vpack.c.bf16 %v2829, %v2826
        %v2861 = vpack.c.bf16 %v2837, %v2834
        %v2862 = vpack.c.bf16 %v2845, %v2842
        %v2863 = vpack.c.bf16 %v2853, %v2850
        %s2864 = scalar_lea.vmem %s468, 32
        %v2865 = vld [vmem:[%s2864] sm:$0xf]
        %v2866 = vld [vmem:[%s2864 + $0x4] sm:$0xf]
        %v2867 = vld [vmem:[%s2864 + $0x8] sm:$0xf]
        %v2868 = vld [vmem:[%s2864 + $0xc] sm:$0xf]
        %v2873 = vunpack.c.l.b16 %v2865
        %v2874 = vunpack.c.l.b16 %v2866
        %v2875 = vunpack.c.l.b16 %v2867
        %v2876 = vunpack.c.l.b16 %v2868
        %v2877 = vpack.c.b16 %v2874, %v2873
        %v2878 = vpack.c.b16 %v2876, %v2875
        %v2882 = vsel %vm1208, %v2856, 0
        %v2885 = vsel %vm1208, %v2857, 0
        %v2888 = vsel %vm1208, %v2858, 0
        %v2891 = vsel %vm1208, %v2859, 0
        %v2894 = vsel %vm1208, %v2860, 0
        %v2897 = vsel %vm1208, %v2861, 0
        %v2900 = vsel %vm1208, %v2862, 0
        %v2903 = vsel %vm1208, %v2863, 0
        %2905 = vmatprep.subr.bf16.mxu0 0
        %2906 = vmatpush1.bf16.msra.mxu0 %v2877
        %2907 = vmatprep.subr.bf16.mxu0 0
        %2908 = vmatpush1.bf16.msra.mxu0 %v2878
        %2909 = vmatprep.subr.bf16.mxu0 0
        %2910 = vmatpush1.bf16.msra.mxu0 0
        %2911 = vmatprep.subr.bf16.mxu0 0
        %2912 = vmatpush1.bf16.msra.mxu0 0
        %2913 = vmatprep.subr.bf16.mxu0 0
        %2914 = vmatpush1.bf16.msra.mxu0 0
        %2915 = vmatprep.subr.bf16.mxu0 0
        %2916 = vmatpush1.bf16.msra.mxu0 0
        %2917 = vmatprep.subr.bf16.mxu0 0
        %2918 = vmatpush1.bf16.msra.mxu0 0
        %2919 = vmatprep.subr.bf16.mxu0 0
        %2920 = vmatpush1.bf16.msra.mxu0 0
        %2921 = vmatprep.subr.bf16.mxu0 0
        %2922 = vmatpush1.bf16.msra.mxu0 0
        %2923 = vmatprep.subr.bf16.mxu0 0
        %2924 = vmatpush1.bf16.msra.mxu0 0
        %2925 = vmatprep.subr.bf16.mxu0 0
        %2926 = vmatpush1.bf16.msra.mxu0 0
        %2927 = vmatprep.subr.bf16.mxu0 0
        %2928 = vmatpush1.bf16.msra.mxu0 0
        %2929 = vmatprep.subr.bf16.mxu0 0
        %2930 = vmatpush1.bf16.msra.mxu0 0
        %2931 = vmatprep.subr.bf16.mxu0 0
        %2932 = vmatpush1.bf16.msra.mxu0 0
        %2933 = vmatprep.subr.bf16.mxu0 0
        %2934 = vmatpush1.bf16.msra.mxu0 0
        %2935 = vmatprep.subr.bf16.mxu0 0
        %2936 = vmatpush1.bf16.msra.mxu0 0
        %2937 = vmatprep.mubr.bf16.mxu0 0
        %2938 = vmatmul.mubr.bf16.gmra.mrb[0].mxu0 %v2882
        %v2939 = vpop.f32.mrb[0].mxu0
        %v2940 = vadd.f32 0.0, %v2939
        %v2941 = vpop.f32.mrb[0].mxu0
        %v2942 = vpop.f32.mrb[0].mxu0
        %v2943 = vadd.f32 0.0, %v2942
        %v2944 = vpop.f32.mrb[0].mxu0
        %2945 = vmatprep.mubr.bf16.mxu0 0
        %2946 = vmatmul.mubr.bf16.gmra.mrb[0].mxu0 %v2885
        %v2947 = vpop.f32.mrb[0].mxu0
        %v2948 = vadd.f32 0.0, %v2947
        %v2949 = vpop.f32.mrb[0].mxu0
        %v2950 = vpop.f32.mrb[0].mxu0
        %v2951 = vadd.f32 0.0, %v2950
        %v2952 = vpop.f32.mrb[0].mxu0
        %2953 = vmatprep.mubr.bf16.mxu0 0
        %2954 = vmatmul.mubr.bf16.gmra.mrb[0].mxu0 %v2888
        %v2955 = vpop.f32.mrb[0].mxu0
        %v2956 = vadd.f32 0.0, %v2955
        %v2957 = vpop.f32.mrb[0].mxu0
        %v2958 = vpop.f32.mrb[0].mxu0
        %v2959 = vadd.f32 0.0, %v2958
        %v2960 = vpop.f32.mrb[0].mxu0
        %2961 = vmatprep.mubr.bf16.mxu0 0
        %2962 = vmatmul.mubr.bf16.gmra.mrb[0].mxu0 %v2891
        %v2963 = vpop.f32.mrb[0].mxu0
        %v2964 = vadd.f32 0.0, %v2963
        %v2965 = vpop.f32.mrb[0].mxu0
        %v2966 = vpop.f32.mrb[0].mxu0
        %v2967 = vadd.f32 0.0, %v2966
        %v2968 = vpop.f32.mrb[0].mxu0
        %2969 = vmatprep.mubr.bf16.mxu0 0
        %2970 = vmatmul.mubr.bf16.gmra.mrb[0].mxu0 %v2894
        %v2971 = vpop.f32.mrb[0].mxu0
        %v2972 = vadd.f32 0.0, %v2971
        %v2973 = vpop.f32.mrb[0].mxu0
        %v2974 = vpop.f32.mrb[0].mxu0
        %v2975 = vadd.f32 0.0, %v2974
        %v2976 = vpop.f32.mrb[0].mxu0
        %2977 = vmatprep.mubr.bf16.mxu0 0
        %2978 = vmatmul.mubr.bf16.gmra.mrb[0].mxu0 %v2897
        %v2979 = vpop.f32.mrb[0].mxu0
        %v2980 = vadd.f32 0.0, %v2979
        %v2981 = vpop.f32.mrb[0].mxu0
        %v2982 = vpop.f32.mrb[0].mxu0
        %v2983 = vadd.f32 0.0, %v2982
        %v2984 = vpop.f32.mrb[0].mxu0
        %2985 = vmatprep.mubr.bf16.mxu0 0
        %2986 = vmatmul.mubr.bf16.gmra.mrb[0].mxu0 %v2900
        %v2987 = vpop.f32.mrb[0].mxu0
        %v2988 = vadd.f32 0.0, %v2987
        %v2989 = vpop.f32.mrb[0].mxu0
        %v2990 = vpop.f32.mrb[0].mxu0
        %v2991 = vadd.f32 0.0, %v2990
        %v2992 = vpop.f32.mrb[0].mxu0
        %2993 = vmatprep.mubr.bf16.mxu0 0
        %2994 = vmatmul.mubr.bf16.gmra.mrb[0].mxu0 %v2903
        %v2995 = vpop.f32.mrb[0].mxu0
        %v2996 = vadd.f32 0.0, %v2995
        %v2997 = vpop.f32.mrb[0].mxu0
        %v2998 = vpop.f32.mrb[0].mxu0
        %v2999 = vadd.f32 0.0, %v2998
        %v3000 = vpop.f32.mrb[0].mxu0
        %3001 = vdwg.mxu0
        %v3002 = vadd.f32 %v2678, %v2940
        %v3003 = vadd.f32 %v2679, %v2943
        %v3004 = vadd.f32 %v2680, %v2948
        %v3005 = vadd.f32 %v2681, %v2951
        %v3006 = vadd.f32 %v2682, %v2956
        %v3007 = vadd.f32 %v2683, %v2959
        %v3008 = vadd.f32 %v2684, %v2964
        %v3009 = vadd.f32 %v2685, %v2967
        %v3010 = vadd.f32 %v2686, %v2972
        %v3011 = vadd.f32 %v2687, %v2975
        %v3012 = vadd.f32 %v2688, %v2980
        %v3013 = vadd.f32 %v2689, %v2983
        %v3014 = vadd.f32 %v2690, %v2988
        %v3015 = vadd.f32 %v2691, %v2991
        %v3016 = vadd.f32 %v2692, %v2996
        %v3017 = vadd.f32 %v2693, %v2999
        %v3018 = vadd.f32 %v3002, %v513
        %v3019 = vadd.f32 %v3003, %v514
        %v3020 = vadd.f32 %v3004, %v515
        %v3021 = vadd.f32 %v3005, %v516
        %v3022 = vadd.f32 %v3006, %v517
        %v3023 = vadd.f32 %v3007, %v518
        %v3024 = vadd.f32 %v3008, %v519
        %v3025 = vadd.f32 %v3009, %v520
        %v3026 = vadd.f32 %v3010, %v521
        %v3027 = vadd.f32 %v3011, %v522
        %v3028 = vadd.f32 %v3012, %v523
        %v3029 = vadd.f32 %v3013, %v524
        %v3030 = vadd.f32 %v3014, %v525
        %v3031 = vadd.f32 %v3015, %v526
        %v3032 = vadd.f32 %v3016, %v527
        %v3033 = vadd.f32 %v3017, %v528
        %p3034 = scmp.lt.s32.totalorder %s29, 5
        // Predicated region
        $region69: #{qlora_bignet_forward.1} parent=51 // pred_check
          %p3035 = pneg %p3034
        $region70: #{qlora_bignet_forward.1} parent=51 // pred_check_branch
          %3037 = sbr.rel (%p3035) target = $region72
        $region71: #{qlora_bignet_forward.1} parent=51 // pred_region
          %3038 = vadd.xlane.f32.xlu0 %v3018
          %v3039 = vpop.xlane.xlu0 %3038
          %3040 = vadd.xlane.f32.xlu0 %v3019
          %v3041 = vpop.xlane.xlu0 %3040
          %3042 = vadd.xlane.f32.xlu0 %v3020
          %v3043 = vpop.xlane.xlu0 %3042
          %3044 = vadd.xlane.f32.xlu0 %v3021
          %v3045 = vpop.xlane.xlu0 %3044
          %3046 = vadd.xlane.f32.xlu0 %v3022
          %v3047 = vpop.xlane.xlu0 %3046
          %3048 = vadd.xlane.f32.xlu0 %v3023
          %v3049 = vpop.xlane.xlu0 %3048
          %3050 = vadd.xlane.f32.xlu0 %v3024
          %v3051 = vpop.xlane.xlu0 %3050
          %3052 = vadd.xlane.f32.xlu0 %v3025
          %v3053 = vpop.xlane.xlu0 %3052
          %3054 = vadd.xlane.f32.xlu0 %v3026
          %v3055 = vpop.xlane.xlu0 %3054
          %3056 = vadd.xlane.f32.xlu0 %v3027
          %v3057 = vpop.xlane.xlu0 %3056
          %3058 = vadd.xlane.f32.xlu0 %v3028
          %v3059 = vpop.xlane.xlu0 %3058
          %3060 = vadd.xlane.f32.xlu0 %v3029
          %v3061 = vpop.xlane.xlu0 %3060
          %3062 = vadd.xlane.f32.xlu0 %v3030
          %v3063 = vpop.xlane.xlu0 %3062
          %3064 = vadd.xlane.f32.xlu0 %v3031
          %v3065 = vpop.xlane.xlu0 %3064
          %3066 = vadd.xlane.f32.xlu0 %v3032
          %v3067 = vpop.xlane.xlu0 %3066
          %3068 = vadd.xlane.f32.xlu0 %v3033
          %v3069 = vpop.xlane.xlu0 %3068
          %v3070 = vrcp.pop 128.0
          %v3071 = vmul.f32 %v3039, %v3070
          %v3072 = vmul.f32 %v3041, %v3070
          %v3073 = vmul.f32 %v3043, %v3070
          %v3074 = vmul.f32 %v3045, %v3070
          %v3075 = vmul.f32 %v3047, %v3070
          %v3076 = vmul.f32 %v3049, %v3070
          %v3077 = vmul.f32 %v3051, %v3070
          %v3078 = vmul.f32 %v3053, %v3070
          %v3079 = vmul.f32 %v3055, %v3070
          %v3080 = vmul.f32 %v3057, %v3070
          %v3081 = vmul.f32 %v3059, %v3070
          %v3082 = vmul.f32 %v3061, %v3070
          %v3083 = vmul.f32 %v3063, %v3070
          %v3084 = vmul.f32 %v3065, %v3070
          %v3085 = vmul.f32 %v3067, %v3070
          %v3086 = vmul.f32 %v3069, %v3070
          %v3087 = vsub.f32 %v3018, %v3071
          %v3088 = vsub.f32 %v3019, %v3072
          %v3089 = vsub.f32 %v3020, %v3073
          %v3090 = vsub.f32 %v3021, %v3074
          %v3091 = vsub.f32 %v3022, %v3075
          %v3092 = vsub.f32 %v3023, %v3076
          %v3093 = vsub.f32 %v3024, %v3077
          %v3094 = vsub.f32 %v3025, %v3078
          %v3095 = vsub.f32 %v3026, %v3079
          %v3096 = vsub.f32 %v3027, %v3080
          %v3097 = vsub.f32 %v3028, %v3081
          %v3098 = vsub.f32 %v3029, %v3082
          %v3099 = vsub.f32 %v3030, %v3083
          %v3100 = vsub.f32 %v3031, %v3084
          %v3101 = vsub.f32 %v3032, %v3085
          %v3102 = vsub.f32 %v3033, %v3086
          %v3103 = vmul.f32 %v3087, %v3087
          %v3104 = vmul.f32 %v3088, %v3088
          %v3105 = vmul.f32 %v3089, %v3089
          %v3106 = vmul.f32 %v3090, %v3090
          %v3107 = vmul.f32 %v3091, %v3091
          %v3108 = vmul.f32 %v3092, %v3092
          %v3109 = vmul.f32 %v3093, %v3093
          %v3110 = vmul.f32 %v3094, %v3094
          %v3111 = vmul.f32 %v3095, %v3095
          %v3112 = vmul.f32 %v3096, %v3096
          %v3113 = vmul.f32 %v3097, %v3097
          %v3114 = vmul.f32 %v3098, %v3098
          %v3115 = vmul.f32 %v3099, %v3099
          %v3116 = vmul.f32 %v3100, %v3100
          %v3117 = vmul.f32 %v3101, %v3101
          %v3118 = vmul.f32 %v3102, %v3102
          %3119 = vadd.xlane.f32.xlu0 %v3103
          %v3120 = vpop.xlane.xlu0 %3119
          %3121 = vadd.xlane.f32.xlu0 %v3104
          %v3122 = vpop.xlane.xlu0 %3121
          %3123 = vadd.xlane.f32.xlu0 %v3105
          %v3124 = vpop.xlane.xlu0 %3123
          %3125 = vadd.xlane.f32.xlu0 %v3106
          %v3126 = vpop.xlane.xlu0 %3125
          %3127 = vadd.xlane.f32.xlu0 %v3107
          %v3128 = vpop.xlane.xlu0 %3127
          %3129 = vadd.xlane.f32.xlu0 %v3108
          %v3130 = vpop.xlane.xlu0 %3129
          %3131 = vadd.xlane.f32.xlu0 %v3109
          %v3132 = vpop.xlane.xlu0 %3131
          %3133 = vadd.xlane.f32.xlu0 %v3110
          %v3134 = vpop.xlane.xlu0 %3133
          %3135 = vadd.xlane.f32.xlu0 %v3111
          %v3136 = vpop.xlane.xlu0 %3135
          %3137 = vadd.xlane.f32.xlu0 %v3112
          %v3138 = vpop.xlane.xlu0 %3137
          %3139 = vadd.xlane.f32.xlu0 %v3113
          %v3140 = vpop.xlane.xlu0 %3139
          %3141 = vadd.xlane.f32.xlu0 %v3114
          %v3142 = vpop.xlane.xlu0 %3141
          %3143 = vadd.xlane.f32.xlu0 %v3115
          %v3144 = vpop.xlane.xlu0 %3143
          %3145 = vadd.xlane.f32.xlu0 %v3116
          %v3146 = vpop.xlane.xlu0 %3145
          %3147 = vadd.xlane.f32.xlu0 %v3117
          %v3148 = vpop.xlane.xlu0 %3147
          %3149 = vadd.xlane.f32.xlu0 %v3118
          %v3150 = vpop.xlane.xlu0 %3149
          %v3151 = vmul.f32 %v3120, %v3070
          %v3152 = vmul.f32 %v3122, %v3070
          %v3153 = vmul.f32 %v3124, %v3070
          %v3154 = vmul.f32 %v3126, %v3070
          %v3155 = vmul.f32 %v3128, %v3070
          %v3156 = vmul.f32 %v3130, %v3070
          %v3157 = vmul.f32 %v3132, %v3070
          %v3158 = vmul.f32 %v3134, %v3070
          %v3159 = vmul.f32 %v3136, %v3070
          %v3160 = vmul.f32 %v3138, %v3070
          %v3161 = vmul.f32 %v3140, %v3070
          %v3162 = vmul.f32 %v3142, %v3070
          %v3163 = vmul.f32 %v3144, %v3070
          %v3164 = vmul.f32 %v3146, %v3070
          %v3165 = vmul.f32 %v3148, %v3070
          %v3166 = vmul.f32 %v3150, %v3070
          %v3167 = vadd.f32 %v3151, 1e-05
          %v3168 = vadd.f32 %v3152, 1e-05
          %v3169 = vadd.f32 %v3153, 1e-05
          %v3170 = vadd.f32 %v3154, 1e-05
          %v3171 = vadd.f32 %v3155, 1e-05
          %v3172 = vadd.f32 %v3156, 1e-05
          %v3173 = vadd.f32 %v3157, 1e-05
          %v3174 = vadd.f32 %v3158, 1e-05
          %v3175 = vadd.f32 %v3159, 1e-05
          %v3176 = vadd.f32 %v3160, 1e-05
          %v3177 = vadd.f32 %v3161, 1e-05
          %v3178 = vadd.f32 %v3162, 1e-05
          %v3179 = vadd.f32 %v3163, 1e-05
          %v3180 = vadd.f32 %v3164, 1e-05
          %v3181 = vadd.f32 %v3165, 1e-05
          %v3182 = vadd.f32 %v3166, 1e-05
          %v3183 = vrsqrt.pop %v3167
          %v3184 = vrsqrt.pop %v3168
          %v3185 = vrsqrt.pop %v3169
          %v3186 = vrsqrt.pop %v3170
          %v3187 = vrsqrt.pop %v3171
          %v3188 = vrsqrt.pop %v3172
          %v3189 = vrsqrt.pop %v3173
          %v3190 = vrsqrt.pop %v3174
          %v3191 = vrsqrt.pop %v3175
          %v3192 = vrsqrt.pop %v3176
          %v3193 = vrsqrt.pop %v3177
          %v3194 = vrsqrt.pop %v3178
          %v3195 = vrsqrt.pop %v3179
          %v3196 = vrsqrt.pop %v3180
          %v3197 = vrsqrt.pop %v3181
          %v3198 = vrsqrt.pop %v3182
          %v3199 = vmul.f32 %v3087, %v3183
          %v3200 = vmul.f32 %v3088, %v3184
          %v3201 = vmul.f32 %v3089, %v3185
          %v3202 = vmul.f32 %v3090, %v3186
          %v3203 = vmul.f32 %v3091, %v3187
          %v3204 = vmul.f32 %v3092, %v3188
          %v3205 = vmul.f32 %v3093, %v3189
          %v3206 = vmul.f32 %v3094, %v3190
          %v3207 = vmul.f32 %v3095, %v3191
          %v3208 = vmul.f32 %v3096, %v3192
          %v3209 = vmul.f32 %v3097, %v3193
          %v3210 = vmul.f32 %v3098, %v3194
          %v3211 = vmul.f32 %v3099, %v3195
          %v3212 = vmul.f32 %v3100, %v3196
          %v3213 = vmul.f32 %v3101, %v3197
          %v3214 = vmul.f32 %v3102, %v3198
          %v3215 = vld [vmem:[%s471] sm:$0x1]
          %v3217 = vlaneseq
          %v3218 = vshrl.u32 %v3217, 7
          %v3219 = vsub.s32 0, %v3218
          %v3220 = vrot.slane %v3215, %v3219
          %v3222 = vmul.f32 %v3199, %v3220
          %v3223 = vmul.f32 %v3200, %v3220
          %v3224 = vmul.f32 %v3201, %v3220
          %v3225 = vmul.f32 %v3202, %v3220
          %v3226 = vmul.f32 %v3203, %v3220
          %v3227 = vmul.f32 %v3204, %v3220
          %v3228 = vmul.f32 %v3205, %v3220
          %v3229 = vmul.f32 %v3206, %v3220
          %v3230 = vmul.f32 %v3207, %v3220
          %v3231 = vmul.f32 %v3208, %v3220
          %v3232 = vmul.f32 %v3209, %v3220
          %v3233 = vmul.f32 %v3210, %v3220
          %v3234 = vmul.f32 %v3211, %v3220
          %v3235 = vmul.f32 %v3212, %v3220
          %v3236 = vmul.f32 %v3213, %v3220
          %v3237 = vmul.f32 %v3214, %v3220
          %v3238 = vld [vmem:[%s474] sm:$0x1]
          %v3240 = vlaneseq
          %v3241 = vshrl.u32 %v3240, 7
          %v3242 = vsub.s32 0, %v3241
          %v3243 = vrot.slane %v3238, %v3242
          %v3245 = vadd.f32 %v3222, %v3243
          %v3246 = vadd.f32 %v3223, %v3243
          %v3247 = vadd.f32 %v3224, %v3243
          %v3248 = vadd.f32 %v3225, %v3243
          %v3249 = vadd.f32 %v3226, %v3243
          %v3250 = vadd.f32 %v3227, %v3243
          %v3251 = vadd.f32 %v3228, %v3243
          %v3252 = vadd.f32 %v3229, %v3243
          %v3253 = vadd.f32 %v3230, %v3243
          %v3254 = vadd.f32 %v3231, %v3243
          %v3255 = vadd.f32 %v3232, %v3243
          %v3256 = vadd.f32 %v3233, %v3243
          %v3257 = vadd.f32 %v3234, %v3243
          %v3258 = vadd.f32 %v3235, %v3243
          %v3259 = vadd.f32 %v3236, %v3243
          %v3260 = vadd.f32 %v3237, %v3243
          %3261 = vst [vmem:[#allocation8] sm:$0xff] %v3245
          %3262 = vst [vmem:[#allocation8 + $0x8] sm:$0xff] %v3246
          %3263 = vst [vmem:[#allocation8 + $0x10] sm:$0xff] %v3247
          %3264 = vst [vmem:[#allocation8 + $0x18] sm:$0xff] %v3248
          %3265 = vst [vmem:[#allocation8 + $0x20] sm:$0xff] %v3249
          %3266 = vst [vmem:[#allocation8 + $0x28] sm:$0xff] %v3250
          %3267 = vst [vmem:[#allocation8 + $0x30] sm:$0xff] %v3251
          %3268 = vst [vmem:[#allocation8 + $0x38] sm:$0xff] %v3252
          %3269 = vst [vmem:[#allocation8 + $0x40] sm:$0xff] %v3253
          %3270 = vst [vmem:[#allocation8 + $0x48] sm:$0xff] %v3254
          %3271 = vst [vmem:[#allocation8 + $0x50] sm:$0xff] %v3255
          %3272 = vst [vmem:[#allocation8 + $0x58] sm:$0xff] %v3256
          %3273 = vst [vmem:[#allocation8 + $0x60] sm:$0xff] %v3257
          %3274 = vst [vmem:[#allocation8 + $0x68] sm:$0xff] %v3258
          %3275 = vst [vmem:[#allocation8 + $0x70] sm:$0xff] %v3259
          %3276 = vst [vmem:[#allocation8 + $0x78] sm:$0xff] %v3260
        $region72: #{qlora_bignet_forward.1} parent=51 // pred_fallthru
          _
        %p3277 = scmp.eq.s32.totalorder %s29, 5
        // Predicated region
        $region73: #{qlora_bignet_forward.1} parent=51 // pred_check
          %p3278 = pneg %p3277
        $region74: #{qlora_bignet_forward.1} parent=51 // pred_check_branch
          %3280 = sbr.rel (%p3278) target = $region76
        $region75: #{qlora_bignet_forward.1} parent=51 // pred_region
          %3281 = vst [vmem:[#allocation8] sm:$0xff] %v3018
          %3282 = vst [vmem:[#allocation8 + $0x8] sm:$0xff] %v3019
          %3283 = vst [vmem:[#allocation8 + $0x10] sm:$0xff] %v3020
          %3284 = vst [vmem:[#allocation8 + $0x18] sm:$0xff] %v3021
          %3285 = vst [vmem:[#allocation8 + $0x20] sm:$0xff] %v3022
          %3286 = vst [vmem:[#allocation8 + $0x28] sm:$0xff] %v3023
          %3287 = vst [vmem:[#allocation8 + $0x30] sm:$0xff] %v3024
          %3288 = vst [vmem:[#allocation8 + $0x38] sm:$0xff] %v3025
          %3289 = vst [vmem:[#allocation8 + $0x40] sm:$0xff] %v3026
          %3290 = vst [vmem:[#allocation8 + $0x48] sm:$0xff] %v3027
          %3291 = vst [vmem:[#allocation8 + $0x50] sm:$0xff] %v3028
          %3292 = vst [vmem:[#allocation8 + $0x58] sm:$0xff] %v3029
          %3293 = vst [vmem:[#allocation8 + $0x60] sm:$0xff] %v3030
          %3294 = vst [vmem:[#allocation8 + $0x68] sm:$0xff] %v3031
          %3295 = vst [vmem:[#allocation8 + $0x70] sm:$0xff] %v3032
          %3296 = vst [vmem:[#allocation8 + $0x78] sm:$0xff] %v3033
        $region76: #{qlora_bignet_forward.1} parent=51 // pred_fallthru
          _
        // Predicated region
        $region77: #{qlora_bignet_forward.1} parent=51 // pred_check
          %p3297 = pneg %p262
        $region78: #{qlora_bignet_forward.1} parent=51 // pred_check_branch
          %3299 = sbr.rel (%p3297) target = $region80
        $region79: #{qlora_bignet_forward.1} parent=51 // pred_region
          %s3300 = smul.u32 16, %s28
          %s3302 = ssub.s32 2048, 2048
          %3303 = vsyncadd [#allocation4], %s3302
          %s3304 = smul.addr %s3300, 128
          %s3305 = scalar_lea.hbm %s8, %s3304
          %s3306 = sshll.u32 [#allocation8], 4
          %s3307 = int_to_ptr.vmem [resolvable:$true] %s3306
          %3312 = dma.vmem_to_hbm [thread:$0]  %s3307, 2048, %s3305, [#allocation4], 128, 128, 8
        $region80: #{qlora_bignet_forward.1} parent=51 // pred_fallthru
          _
        // Predicated region
        $region81: #{qlora_bignet_forward.1} parent=51 // pred_check
          %p3313 = pneg %p262
        $region82: #{qlora_bignet_forward.1} parent=51 // pred_check_branch
          %3315 = sbr.rel (%p3313) target = $region84
        $region83: #{qlora_bignet_forward.1} parent=51 // pred_region
          %3316 = dma.done [#allocation4], 2048
        $region84: #{qlora_bignet_forward.1} parent=51 // pred_fallthru
          _
      $region52: #{qlora_bignet_forward.1} parent=5 // pred_fallthru
        _
      %p3317 = scmp.le.s32.totalorder 2, %s19
      // Predicated region
      $region85: #{qlora_bignet_forward.1} parent=5 // pred_check
        %p3318 = pneg %p3317
      $region86: #{qlora_bignet_forward.1} parent=5 // pred_check_branch
        %3320 = sbr.rel (%p3318) target = $region88
      $region87: #{qlora_bignet_forward.1} parent=5 // pred_region
        %s3321 = ssub.s32 %s19, 2
      $region88: #{qlora_bignet_forward.1} parent=5 // pred_fallthru
        _
    $region6: #{qlora_bignet_forward.1} parent=1 // loop_footer
      %s23 = sadd.s32 1, %s19
    $region7: #{qlora_bignet_forward.1} parent=1 // loop_footer_branch
      %18 = sbr.rel target = $region3
    $region8: #{qlora_bignet_forward.1} parent=1 // loop_exit
      _
    %3322 = vsyncpa [#allocation3], 1
    %s3323 = scalar_lea.sflag [#allocation3], 1
    %3324 = vsyncpa %s3323, 1
    %3325 = vsyncpa [#allocation6], 1
    %s3326 = scalar_lea.sflag [#allocation6], 1
    %3327 = vsyncpa %s3326, 1
    %3328 = vsyncpa [#allocation4], 1
    %s3329 = scalar_lea.sflag [#allocation4], 1
    %3330 = vsyncpa %s3329, 1

</llo_original>
